<compile_context>
chip_gen: v7x
topology: tpu7x:2x2x1
jax: 0.10.0
libtpu: 0.0.40
codegen_flags: <defaults>
</compile_context>

<pallas_src>
import functools

import jax
import jax.numpy as jnp
from jax.experimental import pallas as pl
from jax.experimental.pallas import tpu as pltpu


def _round_up(a, m):
    return (a + m - 1) // m * m


def _fused_kernel(x_ref, halo_ref, pw_ref, w9_ref, bconv_ref, wcls_ref,
                  bcls_ref, out_ref, col_ref, acc_ref, *, tp, wp, c):
    """3x3 SAME conv -> ReLU -> masked global-avg-pool -> classifier."""
    p = pl.program_id(1)
    n_p = pl.num_programs(1)

    @pl.when(p == 0)
    def _init():
        acc_ref[...] = jnp.zeros_like(acc_ref)

    # Build the fused [tp, 9*C] im2col LHS directly from the streamed tile
    # (flat rows [p*tp, p*tp+tp)) and the small halo block (flat rows
    # [p*tp+tp, p*tp+tp+2*wp+2)).  No window copy; image stream fetched once.
    for t in range(9):
        dy, dx = t // 3, t % 3
        s = dy * wp + dx                     # static flat-row shift of tap t
        lo, hi = t * c, (t + 1) * c
        if s == 0:
            col_ref[:, lo:hi] = x_ref[0]
        else:
            if s < tp:
                col_ref[0:tp - s, lo:hi] = x_ref[0, s:tp, :]
            col_ref[tp - s:tp, lo:hi] = halo_ref[0, 0, 0:s, :]

    # Single K = 9*C MXU dot (bf16 operands, f32 accumulation), bias, ReLU.
    conv = jnp.dot(col_ref[...], w9_ref[...],
                   preferred_element_type=jnp.float32)
    conv = jnp.maximum(conv + bconv_ref[...], 0.0)

    # Masked global-average-pool as a [1, tp] x [tp, F] MXU dot: pw_ref holds
    # 1/(H*W) on valid interior pixels and 0 on SAME padding / tile overhang,
    # so padded rows contribute exact zeros (f32 operands for accuracy).
    acc_ref[...] += jnp.dot(pw_ref[0], conv,
                            preferred_element_type=jnp.float32)

    @pl.when(p == n_p - 1)
    def _finalize():
        pooled = acc_ref[...].astype(jnp.bfloat16)       # already averaged
        logits = jnp.dot(pooled, wcls_ref[...],
                         preferred_element_type=jnp.float32) + bcls_ref[...]
        out_ref[...] = logits.reshape(out_ref.shape).astype(out_ref.dtype)


def bird_clef_forward(x, conv_w, conv_b, cls_w, cls_b, *, p_tile_rows=1024,
                      interpret=False):
    """BirdCLEFModel (stand-in backbone) forward.

    x:      [B, C, H, W] f32 (NCHW, PyTorch layout)
    conv_w: [F, C, 3, 3] f32   conv_b: [F] f32
    cls_w:  [num_classes, F] f32 (nn.Linear layout)   cls_b: [num_classes] f32
    returns [B, num_classes] f32 logits
    """
    b, c, h, w = x.shape
    f = conv_w.shape[0]
    num_classes = cls_w.shape[0]
    assert f % 128 == 0, "feat_dim must be a multiple of 128 (lane-dense F)"

    hp, wp = h + 2, w + 2
    halo = 2 * wp + 2                        # max flat-row shift of the taps

    # Channels-last, spatially padded, flattened bf16 image [B, Hp*Wp, C].
    xp = jnp.pad(x, ((0, 0), (0, 0), (1, 1), (1, 1)))
    xflat = (jnp.transpose(xp, (0, 2, 3, 1))
             .reshape(b, hp * wp, c).astype(jnp.bfloat16))

    q_total = hp * wp - (wp + 1)             # flat positions swept by the grid
    tp = max(_round_up(halo, 8),
             min(_round_up(p_tile_rows, 8), _round_up(q_total, 8)))
    n_p = (q_total + tp - 1) // tp
    rows_main = n_p * tp
    rows_all = rows_main + halo
    xflat = jnp.pad(xflat, ((0, 0), (0, rows_all - hp * wp), (0, 0)))

    # Tiny per-tile halo side array [B, n_p, halo, C]: the 2*Wp+2-row overlap
    # each tile needs past its own rows (keeps the main stream single-fetch).
    hidx = jnp.arange(n_p)[:, None] * tp + tp + jnp.arange(halo)[None, :]
    x_halo = xflat[:, hidx, :]

    # Pooling weights per swept flat position: 1/(H*W) on valid interior
    # pixels, 0 on SAME padding / tile overhang.  Shape [n_p, 1, tp] f32.
    q = jnp.arange(rows_main) + (wp + 1)
    row = q // wp
    col = q - row * wp
    valid = (row >= 1) & (row <= h) & (col >= 1) & (col <= w)
    poolw = jnp.where(valid, 1.0 / (h * w), 0.0).astype(jnp.float32)
    poolw = poolw.reshape(n_p, 1, tp)

    # Weights: fused conv taps [9*C, F] bf16 (single MXU dot), conv bias f32,
    # classifier weight bf16, classifier bias f32, class dim padded to 128.
    w9 = (jnp.transpose(conv_w, (2, 3, 1, 0))
          .reshape(9 * c, f).astype(jnp.bfloat16))
    bconv = conv_b.reshape(1, f).astype(jnp.float32)
    c_pad = _round_up(max(num_classes, 1), 128)
    wcls = (jnp.zeros((f, c_pad), jnp.float32)
            .at[:, :num_classes].set(cls_w.T).astype(jnp.bfloat16))
    bcls = jnp.zeros((1, c_pad), jnp.float32).at[:, :num_classes].set(cls_b)

    kernel = functools.partial(_fused_kernel, tp=tp, wp=wp, c=c)

    grid_spec = pltpu.PrefetchScalarGridSpec(
        num_scalar_prefetch=0,
        grid=(b, n_p),
        in_specs=[
            # main image stream: each tile read exactly once per batch item
            pl.BlockSpec((1, tp, c), lambda bi, pi: (bi, pi, 0)),
            # per-tile halo rows
            pl.BlockSpec((1, 1, halo, c), lambda bi, pi: (bi, pi, 0, 0)),
            # per-tile pooling weights
            pl.BlockSpec((1, 1, tp), lambda bi, pi: (pi, 0, 0)),
            # weights / biases: constant index maps -> DMA'd once, resident
            pl.BlockSpec((9 * c, f), lambda bi, pi: (0, 0)),
            pl.BlockSpec((1, f), lambda bi, pi: (0, 0)),
            pl.BlockSpec((f, c_pad), lambda bi, pi: (0, 0)),
            pl.BlockSpec((1, c_pad), lambda bi, pi: (0, 0)),
        ],
        out_specs=pl.BlockSpec((1, 1, c_pad), lambda bi, pi: (bi, 0, 0)),
        scratch_shapes=[
            pltpu.VMEM((tp, 9 * c), jnp.bfloat16),   # fused im2col LHS
            pltpu.VMEM((1, f), jnp.float32),         # pooled-sum accumulator
        ],
    )

    out = pl.pallas_call(
        kernel,
        out_shape=jax.ShapeDtypeStruct((b, 1, c_pad), jnp.float32),
        grid_spec=grid_spec,
        compiler_params=pltpu.CompilerParams(
            # B parallel (megacore: keep B even on v7x), P-tiles arbitrary
            # (reduction axis, innermost so the accumulator gating is valid).
            dimension_semantics=("parallel", "arbitrary"),
            # Safe on all generations; re-derive if F / tp grow (v7x has
            # 64 MiB physical VMEM -> stay <= ~48 MiB; v5e/v6e can go higher).
            vmem_limit_bytes=32 * 1024 * 1024,
        ),
        interpret=interpret,
    )(xflat, x_halo, poolw, w9, bconv, wcls, bcls)

    return out.reshape(b, c_pad)[:, :num_classes]


if __name__ == "__main__":
    key = jax.random.PRNGKey(0)
    k1, k2, k3, k4, k5 = jax.random.split(key, 5)

    B, C_IN, H, W = 2, 4, 16, 16          # small spectrogram-like input
    FEAT_DIM = 256                         # stand-in backbone feature dim
    NUM_CLASSES = 206                      # BirdCLEF-style class count

    x = jax.random.normal(k1, (B, C_IN, H, W), jnp.float32)
    conv_w = jax.random.normal(k2, (FEAT_DIM, C_IN, 3, 3), jnp.float32) * 0.1
    conv_b = jax.random.normal(k3, (FEAT_DIM,), jnp.float32) * 0.1
    cls_w = jax.random.normal(k4, (NUM_CLASSES, FEAT_DIM), jnp.float32) * 0.1
    cls_b = jax.random.normal(k5, (NUM_CLASSES,), jnp.float32) * 0.1

    logits = jax.jit(bird_clef_forward)(x, conv_w, conv_b, cls_w, cls_b)
    logits = jax.block_until_ready(logits)

    # Reference with the same operand quantisation as the kernel (bf16 conv
    # operands, bf16 classifier operands, f32 accumulation everywhere).
    xq = x.astype(jnp.bfloat16).astype(jnp.float32)
    wq = conv_w.astype(jnp.bfloat16).astype(jnp.float32)
    feats = jax.lax.conv_general_dilated(
        xq, wq, window_strides=(1, 1), padding="SAME",
        dimension_numbers=("NCHW", "OIHW", "NCHW"))
    feats = jnp.maximum(feats + conv_b[None, :, None, None], 0.0)
    pooled = feats.mean(axis=(2, 3))
    pooled_q = pooled.astype(jnp.bfloat16).astype(jnp.float32)
    wcls_q = cls_w.astype(jnp.bfloat16).astype(jnp.float32)
    ref = pooled_q @ wcls_q.T + cls_b[None, :]

    if not jnp.allclose(logits, ref, rtol=5e-2, atol=5e-2):
        raise AssertionError("Pallas kernel output mismatch vs reference")
    print("KERNEL_OK")
</pallas_src>

<mosaic_0001>
module attributes {stable_mosaic.version = 11 : i64} {
  func.func @_fused_kernel(%arg0: i32, %arg1: i32, %arg2: memref<1x312x4xbf16, #tpu.memory_space<vmem>>, %arg3: memref<1x1x38x4xbf16, #tpu.memory_space<vmem>>, %arg4: memref<1x1x312xf32, #tpu.memory_space<vmem>>, %arg5: memref<36x256xbf16, #tpu.memory_space<vmem>>, %arg6: memref<1x256xf32, #tpu.memory_space<vmem>>, %arg7: memref<256x256xbf16, #tpu.memory_space<vmem>>, %arg8: memref<1x256xf32, #tpu.memory_space<vmem>>, %arg9: memref<1x1x256xf32, #tpu.memory_space<vmem>>, %arg10: memref<312x36xbf16, #tpu.memory_space<vmem>>, %arg11: memref<1x256xf32, #tpu.memory_space<vmem>>) attributes {dimension_semantics = [#tpu.dimension_semantics<parallel>, #tpu.dimension_semantics<arbitrary>], iteration_bounds = array<i64: 2, 1>, scalar_prefetch = 0 : i64, scratch_operands = 2 : i64, tpu.core_type = #tpu.core_type<tc>, window_params = [{transform_indices = @transform_0, window_bounds = array<i64: 1, 312, 4>}, {transform_indices = @transform_1, window_bounds = array<i64: 1, 1, 38, 4>}, {transform_indices = @transform_2, window_bounds = array<i64: 1, 1, 312>}, {pipeline_mode = #tpu.pipeline_mode<synchronous>, transform_indices = @transform_3, window_bounds = array<i64: 36, 256>}, {pipeline_mode = #tpu.pipeline_mode<synchronous>, transform_indices = @transform_4, window_bounds = array<i64: 1, 256>}, {pipeline_mode = #tpu.pipeline_mode<synchronous>, transform_indices = @transform_5, window_bounds = array<i64: 256, 256>}, {pipeline_mode = #tpu.pipeline_mode<synchronous>, transform_indices = @transform_6, window_bounds = array<i64: 1, 256>}, {transform_indices = @transform_7, window_bounds = array<i64: 1, 1, 256>}]} {
    %c0_i32 = arith.constant 0 : i32
    %0 = arith.cmpi eq, %arg1, %c0_i32 : i32
    %1 = arith.extui %0 : i1 to i32
    %c0_i32_0 = arith.constant 0 : i32
    %2 = arith.cmpi ne, %1, %c0_i32_0 : i32
    scf.if %2 {
      %cst_87 = arith.constant 0.000000e+00 : f32
      %71 = vector.broadcast %cst_87 : f32 to vector<1x256xf32>
      %c0_88 = arith.constant 0 : index
      %c0_89 = arith.constant 0 : index
      %72 = vector.load %arg11[%c0_88, %c0_89] : memref<1x256xf32, #tpu.memory_space<vmem>>, vector<1x256xf32>
      tpu.vector_store %arg11[%c0_88, %c0_89], %71 {strides = array<i32>} : memref<1x256xf32, #tpu.memory_space<vmem>>, vector<1x256xf32>,
    } else {
    }
    %c0 = arith.constant 0 : index
    %c0_1 = arith.constant 0 : index
    %c0_2 = arith.constant 0 : index
    %3 = vector.load %arg2[%c0, %c0_1, %c0_2] : memref<1x312x4xbf16, #tpu.memory_space<vmem>>, vector<1x312x4xbf16>
    %4 = vector.shape_cast %3 : vector<1x312x4xbf16> to vector<312x4xbf16>
    %c0_3 = arith.constant 0 : index
    %c0_4 = arith.constant 0 : index
    %5 = vector.load %arg10[%c0_3, %c0_4] : memref<312x36xbf16, #tpu.memory_space<vmem>>, vector<312x4xbf16>
    tpu.vector_store %arg10[%c0_3, %c0_4], %4 {strides = array<i32>} : memref<312x36xbf16, #tpu.memory_space<vmem>>, vector<312x4xbf16>,
    %c0_5 = arith.constant 0 : index
    %c1 = arith.constant 1 : index
    %c0_6 = arith.constant 0 : index
    %6 = vector.load %arg2[%c0_5, %c1, %c0_6] : memref<1x312x4xbf16, #tpu.memory_space<vmem>>, vector<1x311x4xbf16>
    %7 = vector.shape_cast %6 : vector<1x311x4xbf16> to vector<311x4xbf16>
    %c0_7 = arith.constant 0 : index
    %c4 = arith.constant 4 : index
    %8 = vector.load %arg10[%c0_7, %c4] : memref<312x36xbf16, #tpu.memory_space<vmem>>, vector<311x4xbf16>
    tpu.vector_store %arg10[%c0_7, %c4], %7 {strides = array<i32>} : memref<312x36xbf16, #tpu.memory_space<vmem>>, vector<311x4xbf16>,
    %c0_8 = arith.constant 0 : index
    %c0_9 = arith.constant 0 : index
    %c0_10 = arith.constant 0 : index
    %c0_11 = arith.constant 0 : index
    %9 = vector.load %arg3[%c0_8, %c0_9, %c0_10, %c0_11] : memref<1x1x38x4xbf16, #tpu.memory_space<vmem>>, vector<1x1x1x4xbf16>
    %10 = vector.shape_cast %9 : vector<1x1x1x4xbf16> to vector<1x4xbf16>
    %c311 = arith.constant 311 : index
    %c4_12 = arith.constant 4 : index
    %11 = vector.load %arg10[%c311, %c4_12] : memref<312x36xbf16, #tpu.memory_space<vmem>>, vector<1x4xbf16>
    tpu.vector_store %arg10[%c311, %c4_12], %10 {strides = array<i32>} : memref<312x36xbf16, #tpu.memory_space<vmem>>, vector<1x4xbf16>,
    %c0_13 = arith.constant 0 : index
    %c2 = arith.constant 2 : index
    %c0_14 = arith.constant 0 : index
    %12 = vector.load %arg2[%c0_13, %c2, %c0_14] : memref<1x312x4xbf16, #tpu.memory_space<vmem>>, vector<1x310x4xbf16>
    %13 = vector.shape_cast %12 : vector<1x310x4xbf16> to vector<310x4xbf16>
    %c0_15 = arith.constant 0 : index
    %c8 = arith.constant 8 : index
    %14 = vector.load %arg10[%c0_15, %c8] : memref<312x36xbf16, #tpu.memory_space<vmem>>, vector<310x4xbf16>
    tpu.vector_store %arg10[%c0_15, %c8], %13 {strides = array<i32>} : memref<312x36xbf16, #tpu.memory_space<vmem>>, vector<310x4xbf16>,
    %c0_16 = arith.constant 0 : index
    %c0_17 = arith.constant 0 : index
    %c0_18 = arith.constant 0 : index
    %c0_19 = arith.constant 0 : index
    %15 = vector.load %arg3[%c0_16, %c0_17, %c0_18, %c0_19] : memref<1x1x38x4xbf16, #tpu.memory_space<vmem>>, vector<1x1x2x4xbf16>
    %16 = vector.shape_cast %15 : vector<1x1x2x4xbf16> to vector<2x4xbf16>
    %c310 = arith.constant 310 : index
    %c8_20 = arith.constant 8 : index
    %17 = vector.load %arg10[%c310, %c8_20] : memref<312x36xbf16, #tpu.memory_space<vmem>>, vector<2x4xbf16>
    tpu.vector_store %arg10[%c310, %c8_20], %16 {strides = array<i32>} : memref<312x36xbf16, #tpu.memory_space<vmem>>, vector<2x4xbf16>,
    %c0_21 = arith.constant 0 : index
    %c18 = arith.constant 18 : index
    %c0_22 = arith.constant 0 : index
    %18 = vector.load %arg2[%c0_21, %c18, %c0_22] : memref<1x312x4xbf16, #tpu.memory_space<vmem>>, vector<1x294x4xbf16>
    %19 = vector.shape_cast %18 : vector<1x294x4xbf16> to vector<294x4xbf16>
    %c0_23 = arith.constant 0 : index
    %c12 = arith.constant 12 : index
    %20 = vector.load %arg10[%c0_23, %c12] : memref<312x36xbf16, #tpu.memory_space<vmem>>, vector<294x4xbf16>
    tpu.vector_store %arg10[%c0_23, %c12], %19 {strides = array<i32>} : memref<312x36xbf16, #tpu.memory_space<vmem>>, vector<294x4xbf16>,
    %c0_24 = arith.constant 0 : index
    %c0_25 = arith.constant 0 : index
    %c0_26 = arith.constant 0 : index
    %c0_27 = arith.constant 0 : index
    %21 = vector.load %arg3[%c0_24, %c0_25, %c0_26, %c0_27] : memref<1x1x38x4xbf16, #tpu.memory_space<vmem>>, vector<1x1x18x4xbf16>
    %22 = vector.shape_cast %21 : vector<1x1x18x4xbf16> to vector<18x4xbf16>
    %c294 = arith.constant 294 : index
    %c12_28 = arith.constant 12 : index
    %23 = vector.load %arg10[%c294, %c12_28] : memref<312x36xbf16, #tpu.memory_space<vmem>>, vector<18x4xbf16>
    tpu.vector_store %arg10[%c294, %c12_28], %22 {strides = array<i32>} : memref<312x36xbf16, #tpu.memory_space<vmem>>, vector<18x4xbf16>,
    %c0_29 = arith.constant 0 : index
    %c19 = arith.constant 19 : index
    %c0_30 = arith.constant 0 : index
    %24 = vector.load %arg2[%c0_29, %c19, %c0_30] : memref<1x312x4xbf16, #tpu.memory_space<vmem>>, vector<1x293x4xbf16>
    %25 = vector.shape_cast %24 : vector<1x293x4xbf16> to vector<293x4xbf16>
    %c0_31 = arith.constant 0 : index
    %c16 = arith.constant 16 : index
    %26 = vector.load %arg10[%c0_31, %c16] : memref<312x36xbf16, #tpu.memory_space<vmem>>, vector<293x4xbf16>
    tpu.vector_store %arg10[%c0_31, %c16], %25 {strides = array<i32>} : memref<312x36xbf16, #tpu.memory_space<vmem>>, vector<293x4xbf16>,
    %c0_32 = arith.constant 0 : index
    %c0_33 = arith.constant 0 : index
    %c0_34 = arith.constant 0 : index
    %c0_35 = arith.constant 0 : index
    %27 = vector.load %arg3[%c0_32, %c0_33, %c0_34, %c0_35] : memref<1x1x38x4xbf16, #tpu.memory_space<vmem>>, vector<1x1x19x4xbf16>
    %28 = vector.shape_cast %27 : vector<1x1x19x4xbf16> to vector<19x4xbf16>
    %c293 = arith.constant 293 : index
    %c16_36 = arith.constant 16 : index
    %29 = vector.load %arg10[%c293, %c16_36] : memref<312x36xbf16, #tpu.memory_space<vmem>>, vector<19x4xbf16>
    tpu.vector_store %arg10[%c293, %c16_36], %28 {strides = array<i32>} : memref<312x36xbf16, #tpu.memory_space<vmem>>, vector<19x4xbf16>,
    %c0_37 = arith.constant 0 : index
    %c20 = arith.constant 20 : index
    %c0_38 = arith.constant 0 : index
    %30 = vector.load %arg2[%c0_37, %c20, %c0_38] : memref<1x312x4xbf16, #tpu.memory_space<vmem>>, vector<1x292x4xbf16>
    %31 = vector.shape_cast %30 : vector<1x292x4xbf16> to vector<292x4xbf16>
    %c0_39 = arith.constant 0 : index
    %c20_40 = arith.constant 20 : index
    %32 = vector.load %arg10[%c0_39, %c20_40] : memref<312x36xbf16, #tpu.memory_space<vmem>>, vector<292x4xbf16>
    tpu.vector_store %arg10[%c0_39, %c20_40], %31 {strides = array<i32>} : memref<312x36xbf16, #tpu.memory_space<vmem>>, vector<292x4xbf16>,
    %c0_41 = arith.constant 0 : index
    %c0_42 = arith.constant 0 : index
    %c0_43 = arith.constant 0 : index
    %c0_44 = arith.constant 0 : index
    %33 = vector.load %arg3[%c0_41, %c0_42, %c0_43, %c0_44] : memref<1x1x38x4xbf16, #tpu.memory_space<vmem>>, vector<1x1x20x4xbf16>
    %34 = vector.shape_cast %33 : vector<1x1x20x4xbf16> to vector<20x4xbf16>
    %c292 = arith.constant 292 : index
    %c20_45 = arith.constant 20 : index
    %35 = vector.load %arg10[%c292, %c20_45] : memref<312x36xbf16, #tpu.memory_space<vmem>>, vector<20x4xbf16>
    tpu.vector_store %arg10[%c292, %c20_45], %34 {strides = array<i32>} : memref<312x36xbf16, #tpu.memory_space<vmem>>, vector<20x4xbf16>,
    %c0_46 = arith.constant 0 : index
    %c36 = arith.constant 36 : index
    %c0_47 = arith.constant 0 : index
    %36 = vector.load %arg2[%c0_46, %c36, %c0_47] : memref<1x312x4xbf16, #tpu.memory_space<vmem>>, vector<1x276x4xbf16>
    %37 = vector.shape_cast %36 : vector<1x276x4xbf16> to vector<276x4xbf16>
    %c0_48 = arith.constant 0 : index
    %c24 = arith.constant 24 : index
    %38 = vector.load %arg10[%c0_48, %c24] : memref<312x36xbf16, #tpu.memory_space<vmem>>, vector<276x4xbf16>
    tpu.vector_store %arg10[%c0_48, %c24], %37 {strides = array<i32>} : memref<312x36xbf16, #tpu.memory_space<vmem>>, vector<276x4xbf16>,
    %c0_49 = arith.constant 0 : index
    %c0_50 = arith.constant 0 : index
    %c0_51 = arith.constant 0 : index
    %c0_52 = arith.constant 0 : index
    %39 = vector.load %arg3[%c0_49, %c0_50, %c0_51, %c0_52] : memref<1x1x38x4xbf16, #tpu.memory_space<vmem>>, vector<1x1x36x4xbf16>
    %40 = vector.shape_cast %39 : vector<1x1x36x4xbf16> to vector<36x4xbf16>
    %c276 = arith.constant 276 : index
    %c24_53 = arith.constant 24 : index
    %41 = vector.load %arg10[%c276, %c24_53] : memref<312x36xbf16, #tpu.memory_space<vmem>>, vector<36x4xbf16>
    tpu.vector_store %arg10[%c276, %c24_53], %40 {strides = array<i32>} : memref<312x36xbf16, #tpu.memory_space<vmem>>, vector<36x4xbf16>,
    %c0_54 = arith.constant 0 : index
    %c37 = arith.constant 37 : index
    %c0_55 = arith.constant 0 : index
    %42 = vector.load %arg2[%c0_54, %c37, %c0_55] : memref<1x312x4xbf16, #tpu.memory_space<vmem>>, vector<1x275x4xbf16>
    %43 = vector.shape_cast %42 : vector<1x275x4xbf16> to vector<275x4xbf16>
    %c0_56 = arith.constant 0 : index
    %c28 = arith.constant 28 : index
    %44 = vector.load %arg10[%c0_56, %c28] : memref<312x36xbf16, #tpu.memory_space<vmem>>, vector<275x4xbf16>
    tpu.vector_store %arg10[%c0_56, %c28], %43 {strides = array<i32>} : memref<312x36xbf16, #tpu.memory_space<vmem>>, vector<275x4xbf16>,
    %c0_57 = arith.constant 0 : index
    %c0_58 = arith.constant 0 : index
    %c0_59 = arith.constant 0 : index
    %c0_60 = arith.constant 0 : index
    %45 = vector.load %arg3[%c0_57, %c0_58, %c0_59, %c0_60] : memref<1x1x38x4xbf16, #tpu.memory_space<vmem>>, vector<1x1x37x4xbf16>
    %46 = vector.shape_cast %45 : vector<1x1x37x4xbf16> to vector<37x4xbf16>
    %c275 = arith.constant 275 : index
    %c28_61 = arith.constant 28 : index
    %47 = vector.load %arg10[%c275, %c28_61] : memref<312x36xbf16, #tpu.memory_space<vmem>>, vector<37x4xbf16>
    tpu.vector_store %arg10[%c275, %c28_61], %46 {strides = array<i32>} : memref<312x36xbf16, #tpu.memory_space<vmem>>, vector<37x4xbf16>,
    %c0_62 = arith.constant 0 : index
    %c38 = arith.constant 38 : index
    %c0_63 = arith.constant 0 : index
    %48 = vector.load %arg2[%c0_62, %c38, %c0_63] : memref<1x312x4xbf16, #tpu.memory_space<vmem>>, vector<1x274x4xbf16>
    %49 = vector.shape_cast %48 : vector<1x274x4xbf16> to vector<274x4xbf16>
    %c0_64 = arith.constant 0 : index
    %c32 = arith.constant 32 : index
    %50 = vector.load %arg10[%c0_64, %c32] : memref<312x36xbf16, #tpu.memory_space<vmem>>, vector<274x4xbf16>
    tpu.vector_store %arg10[%c0_64, %c32], %49 {strides = array<i32>} : memref<312x36xbf16, #tpu.memory_space<vmem>>, vector<274x4xbf16>,
    %c0_65 = arith.constant 0 : index
    %c0_66 = arith.constant 0 : index
    %c0_67 = arith.constant 0 : index
    %c0_68 = arith.constant 0 : index
    %51 = vector.load %arg3[%c0_65, %c0_66, %c0_67, %c0_68] : memref<1x1x38x4xbf16, #tpu.memory_space<vmem>>, vector<1x1x38x4xbf16>
    %52 = vector.shape_cast %51 : vector<1x1x38x4xbf16> to vector<38x4xbf16>
    %c274 = arith.constant 274 : index
    %c32_69 = arith.constant 32 : index
    %53 = vector.load %arg10[%c274, %c32_69] : memref<312x36xbf16, #tpu.memory_space<vmem>>, vector<38x4xbf16>
    tpu.vector_store %arg10[%c274, %c32_69], %52 {strides = array<i32>} : memref<312x36xbf16, #tpu.memory_space<vmem>>, vector<38x4xbf16>,
    %c0_70 = arith.constant 0 : index
    %c0_71 = arith.constant 0 : index
    %54 = vector.load %arg10[%c0_70, %c0_71] : memref<312x36xbf16, #tpu.memory_space<vmem>>, vector<312x36xbf16>
    %c0_72 = arith.constant 0 : index
    %c0_73 = arith.constant 0 : index
    %55 = vector.load %arg5[%c0_72, %c0_73] : memref<36x256xbf16, #tpu.memory_space<vmem>>, vector<36x256xbf16>
    %cst = arith.constant dense<0.000000e+00> : vector<312x256xf32>
    %56 = tpu.matmul %54, %55, %cst {dimension_numbers = #tpu.dot_dimension_numbers<[1], [0], [0], [1], [0, 0, 1, 1], [], []>} : vector<312x36xbf16>, vector<36x256xbf16>, vector<312x256xf32> -> vector<312x256xf32>
    %c0_74 = arith.constant 0 : index
    %c0_75 = arith.constant 0 : index
    %57 = vector.load %arg6[%c0_74, %c0_75] : memref<1x256xf32, #tpu.memory_space<vmem>>, vector<1x256xf32>
    %58 = vector.broadcast %57 : vector<1x256xf32> to vector<312x256xf32>
    %59 = arith.addf %56, %58 : vector<312x256xf32>
    %cst_76 = arith.constant 0.000000e+00 : f32
    %60 = vector.broadcast %cst_76 : f32 to vector<312x256xf32>
    %61 = arith.maximumf %59, %60 : vector<312x256xf32>
    %c0_77 = arith.constant 0 : index
    %c0_78 = arith.constant 0 : index
    %62 = vector.load %arg11[%c0_77, %c0_78] : memref<1x256xf32, #tpu.memory_space<vmem>>, vector<1x256xf32>
    %c0_79 = arith.constant 0 : index
    %c0_80 = arith.constant 0 : index
    %c0_81 = arith.constant 0 : index
    %63 = vector.load %arg4[%c0_79, %c0_80, %c0_81] : memref<1x1x312xf32, #tpu.memory_space<vmem>>, vector<1x1x312xf32>
    %64 = vector.shape_cast %63 : vector<1x1x312xf32> to vector<1x312xf32>
    %cst_82 = arith.constant dense<0.000000e+00> : vector<1x256xf32>
    %65 = tpu.matmul %64, %61, %cst_82 {dimension_numbers = #tpu.dot_dimension_numbers<[1], [0], [0], [1], [0, 0, 1, 1], [], []>} : vector<1x312xf32>, vector<312x256xf32>, vector<1x256xf32> -> vector<1x256xf32>
    %66 = arith.addf %62, %65 : vector<1x256xf32>
    %c0_83 = arith.constant 0 : index
    %c0_84 = arith.constant 0 : index
    %67 = vector.load %arg11[%c0_83, %c0_84] : memref<1x256xf32, #tpu.memory_space<vmem>>, vector<1x256xf32>
    tpu.vector_store %arg11[%c0_83, %c0_84], %66 {strides = array<i32>} : memref<1x256xf32, #tpu.memory_space<vmem>>, vector<1x256xf32>,
    %c0_i32_85 = arith.constant 0 : i32
    %68 = arith.cmpi eq, %arg1, %c0_i32_85 : i32
    %69 = arith.extui %68 : i1 to i32
    %c0_i32_86 = arith.constant 0 : i32
    %70 = arith.cmpi ne, %69, %c0_i32_86 : i32
    scf.if %70 {
      %c0_87 = arith.constant 0 : index
      %c0_88 = arith.constant 0 : index
      %71 = vector.load %arg11[%c0_87, %c0_88] : memref<1x256xf32, #tpu.memory_space<vmem>>, vector<1x256xf32>
      %72 = arith.truncf %71 : vector<1x256xf32> to vector<1x256xbf16>
      %c0_89 = arith.constant 0 : index
      %c0_90 = arith.constant 0 : index
      %73 = vector.load %arg7[%c0_89, %c0_90] : memref<256x256xbf16, #tpu.memory_space<vmem>>, vector<256x256xbf16>
      %cst_91 = arith.constant dense<0.000000e+00> : vector<1x256xf32>
      %74 = tpu.matmul %72, %73, %cst_91 {dimension_numbers = #tpu.dot_dimension_numbers<[1], [0], [0], [1], [0, 0, 1, 1], [], []>} : vector<1x256xbf16>, vector<256x256xbf16>, vector<1x256xf32> -> vector<1x256xf32>
      %c0_92 = arith.constant 0 : index
      %c0_93 = arith.constant 0 : index
      %75 = vector.load %arg8[%c0_92, %c0_93] : memref<1x256xf32, #tpu.memory_space<vmem>>, vector<1x256xf32>
      %76 = arith.addf %74, %75 : vector<1x256xf32>
      %77 = vector.shape_cast %76 : vector<1x256xf32> to vector<1x1x256xf32>
      %c0_94 = arith.constant 0 : index
      %c0_95 = arith.constant 0 : index
      %c0_96 = arith.constant 0 : index
      %78 = vector.load %arg9[%c0_94, %c0_95, %c0_96] : memref<1x1x256xf32, #tpu.memory_space<vmem>>, vector<1x1x256xf32>
      tpu.vector_store %arg9[%c0_94, %c0_95, %c0_96], %77 {strides = array<i32>} : memref<1x1x256xf32, #tpu.memory_space<vmem>>, vector<1x1x256xf32>,
    } else {
    }
    return
  }
  func.func @transform_0(%arg0: i32, %arg1: i32) -> (i32, i32, i32) {
    %c0_i32 = arith.constant 0 : i32
    %c0_i32_0 = arith.constant 0 : i32
    return %arg0, %arg1, %c0_i32 : i32, i32, i32
  }
  func.func @transform_1(%arg0: i32, %arg1: i32) -> (i32, i32, i32, i32) {
    %c0_i32 = arith.constant 0 : i32
    %c0_i32_0 = arith.constant 0 : i32
    %c0_i32_1 = arith.constant 0 : i32
    return %arg0, %arg1, %c0_i32, %c0_i32_0 : i32, i32, i32, i32
  }
  func.func @transform_2(%arg0: i32, %arg1: i32) -> (i32, i32, i32) {
    %c0_i32 = arith.constant 0 : i32
    %c0_i32_0 = arith.constant 0 : i32
    %c0_i32_1 = arith.constant 0 : i32
    return %arg1, %c0_i32, %c0_i32_0 : i32, i32, i32
  }
  func.func @transform_3(%arg0: i32, %arg1: i32) -> (i32, i32) {
    %c0_i32 = arith.constant 0 : i32
    %c0_i32_0 = arith.constant 0 : i32
    %c0_i32_1 = arith.constant 0 : i32
    return %c0_i32, %c0_i32_0 : i32, i32
  }
  func.func @transform_4(%arg0: i32, %arg1: i32) -> (i32, i32) {
    %c0_i32 = arith.constant 0 : i32
    %c0_i32_0 = arith.constant 0 : i32
    %c0_i32_1 = arith.constant 0 : i32
    return %c0_i32, %c0_i32_0 : i32, i32
  }
  func.func @transform_5(%arg0: i32, %arg1: i32) -> (i32, i32) {
    %c0_i32 = arith.constant 0 : i32
    %c0_i32_0 = arith.constant 0 : i32
    %c0_i32_1 = arith.constant 0 : i32
    return %c0_i32, %c0_i32_0 : i32, i32
  }
  func.func @transform_6(%arg0: i32, %arg1: i32) -> (i32, i32) {
    %c0_i32 = arith.constant 0 : i32
    %c0_i32_0 = arith.constant 0 : i32
    %c0_i32_1 = arith.constant 0 : i32
    return %c0_i32, %c0_i32_0 : i32, i32
  }
  func.func @transform_7(%arg0: i32, %arg1: i32) -> (i32, i32, i32) {
    %c0_i32 = arith.constant 0 : i32
    %c0_i32_0 = arith.constant 0 : i32
    %c0_i32_1 = arith.constant 0 : i32
    return %arg0, %c0_i32, %c0_i32_0 : i32, i32, i32
  }
}

</mosaic_0001>

<llo_original>
// kernel: bird_clef_forward.1
$region0: #{bird_clef_forward.1}
  #allocation0 [shape = 'u32[]', space=smem, size = 0x4, offset = 0x4, fixed_abs, tag = 'smem constant byte address 0x4 - core index']
  #allocation1 [shape = 'u32[144,128]{1,0:T(1,128)}', space=vmem, size = 0x12000, scoped, tag = 'internal scratch']
  #allocation2 [shape = 'bf16[312,36]{1,0:T(8,128)(2,1)}', space=vmem, size = 0x13800, scoped, tag = 'scratch operand']
  #allocation3 [shape = 'f32[1,256]{1,0:T(1,128)}', space=vmem, size = 0x400, scoped, tag = 'scratch operand']
  %s0 = inlined_call_operand.vmem [shape: bf16[2,350,4], index: 0, kind: input, shape index: {}]
  %s1 = inlined_call_operand.vmem [shape: bf16[2,1,38,4], index: 1, kind: input, shape index: {}]
  %s2 = inlined_call_operand.vmem [shape: f32[1,1,312], index: 2, kind: input, shape index: {}]
  %s3 = inlined_call_operand.vmem [shape: bf16[36,256], index: 3, kind: input, shape index: {}]
  %s4 = inlined_call_operand.vmem [shape: f32[1,256], index: 4, kind: input, shape index: {}]
  %s5 = inlined_call_operand.vmem [shape: bf16[256,256], index: 5, kind: input, shape index: {}]
  %s6 = inlined_call_operand.vmem [shape: f32[1,256], index: 6, kind: input, shape index: {}]
  %s7 = inlined_call_operand.vmem [shape: f32[2,1,256], index: 7, kind: output, shape index: {}]
  %s8 = sld [smem:[#allocation0]]
  $region69: #{bird_clef_forward.1} parent=0
    _
  %s10 = ssub.s32 1, %s8
  %s11 = scalar_select 0, %s10, %s8
  loop: start=0, step=1, limit=4
  $region2: #{bird_clef_forward.1} parent=0 // loop_pre_header
    _
  $region3: #{bird_clef_forward.1} parent=0 // loop_header
    %s13 = sphi 0, %s17
    %p14 = scmp.ge.s32.totalorder %s13, 4
    %s20 = sphi 0, %s32
    %s21 = sphi 0, %s28
    %s22 = sphi 0, %s20
    %s23 = sphi 0, %s21
    %s24 = sphi 0, %s22
    %s25 = sphi 0, %s23
    %s37 = sphi 0, %s39
    %s40 = sphi 0, %s37
    %s41 = sphi 0, %s40
    %s57 = sphi 0, %s41
    %s65 = sphi 0, %s67
    %s68 = sphi 0, %s65
    %s69 = sphi 0, %s68
    %s85 = sphi 0, %s69
    %s91 = sphi 0, %s93
    %s94 = sphi 0, %s91
    %s95 = sphi 0, %s94
    %s111 = sphi 0, %s95
    %s115 = sphi 0, %s115
    %s117 = sphi 0, %s115
    %s118 = sphi 0, %s117
    %s132 = sphi 0, %s118
    %s136 = sphi 0, %s136
    %s138 = sphi 0, %s136
    %s139 = sphi 0, %s138
    %s153 = sphi 0, %s139
    %s157 = sphi 0, %s157
    %s159 = sphi 0, %s157
    %s160 = sphi 0, %s159
    %s174 = sphi 0, %s160
    %s178 = sphi 0, %s178
    %s180 = sphi 0, %s178
    %s181 = sphi 0, %s180
    %s195 = sphi 0, %s181
    %s201 = sphi 0, %s203
    %s204 = sphi 0, %s201
    %s205 = sphi 0, %s204
    %s221 = sphi 0, %s205
  $region4: #{bird_clef_forward.1} parent=0 // loop_header_branch
    %16 = sbr.rel (%p14) target = $region8
  $region5: #{bird_clef_forward.1} parent=0 // loop_body
    %s18 = ssub.s32 %s13, 1
    %s19 = ssub.s32 %s13, 2
    %s26 = sadd.s32 1, %s21
    %p27 = scmp.ge.s32.totalorder %s26, 1
    %s28 = scalar_select %p27, 0, %s26
    %s29 = sadd.s32 1, %s20
    %s30 = scalar_select %p27, %s29, %s20
    %p31 = scmp.ge.s32.totalorder %s30, 2
    %s32 = scalar_select %p31, 0, %s30
    %s33 = ssub.s32 %s20, %s32
    %s34 = ssub.s32 %s21, %s28
    %s35 = sor.u32 %s33, %s34
    %p36 = scmp.eq.s32.totalorder %s35, 0
    %s38 = sadd.s32 %s37, 1
    %s39 = scalar_select %p36, %s37, %s38
    %p42 = pneg %p36
    %p43 = scmp.eq.s32.totalorder %s13, 1
    %p44 = por %p42, %p43
    %p45 = scmp.ne.s32.totalorder %s37, %s40
    %p46 = scmp.eq.s32.totalorder %s13, 0
    %p47 = por %p45, %p46
    %p48 = scmp.ne.s32.totalorder %s37, %s40
    %p49 = scmp.eq.s32.totalorder %s18, 1
    %p50 = por %p48, %p49
    %p51 = scmp.ne.s32.totalorder %s40, %s41
    %p52 = scmp.eq.s32.totalorder %s18, 0
    %p53 = por %p51, %p52
    %p54 = scmp.ne.s32.totalorder %s40, %s41
    %p55 = scmp.eq.s32.totalorder %s19, 1
    %p56 = por %p54, %p55
    %p58 = scmp.ne.s32.totalorder %s41, %s57
    %p59 = scmp.eq.s32.totalorder %s19, 0
    %p60 = por %p58, %p59
    %s61 = ssub.s32 %s20, %s32
    %s62 = ssub.s32 %s21, %s28
    %s63 = sor.u32 %s61, %s62
    %p64 = scmp.eq.s32.totalorder %s63, 0
    %s66 = sadd.s32 %s65, 1
    %s67 = scalar_select %p64, %s65, %s66
    %p70 = pneg %p64
    %p71 = scmp.eq.s32.totalorder %s13, 1
    %p72 = por %p70, %p71
    %p73 = scmp.ne.s32.totalorder %s65, %s68
    %p74 = scmp.eq.s32.totalorder %s13, 0
    %p75 = por %p73, %p74
    %p76 = scmp.ne.s32.totalorder %s65, %s68
    %p77 = scmp.eq.s32.totalorder %s18, 1
    %p78 = por %p76, %p77
    %p79 = scmp.ne.s32.totalorder %s68, %s69
    %p80 = scmp.eq.s32.totalorder %s18, 0
    %p81 = por %p79, %p80
    %p82 = scmp.ne.s32.totalorder %s68, %s69
    %p83 = scmp.eq.s32.totalorder %s19, 1
    %p84 = por %p82, %p83
    %p86 = scmp.ne.s32.totalorder %s69, %s85
    %p87 = scmp.eq.s32.totalorder %s19, 0
    %p88 = por %p86, %p87
    %s89 = ssub.s32 %s21, %s28
    %p90 = scmp.eq.s32.totalorder %s89, 0
    %s92 = sadd.s32 %s91, 1
    %s93 = scalar_select %p90, %s91, %s92
    %p96 = pneg %p90
    %p97 = scmp.eq.s32.totalorder %s13, 1
    %p98 = por %p96, %p97
    %p99 = scmp.ne.s32.totalorder %s91, %s94
    %p100 = scmp.eq.s32.totalorder %s13, 0
    %p101 = por %p99, %p100
    %p102 = scmp.ne.s32.totalorder %s91, %s94
    %p103 = scmp.eq.s32.totalorder %s18, 1
    %p104 = por %p102, %p103
    %p105 = scmp.ne.s32.totalorder %s94, %s95
    %p106 = scmp.eq.s32.totalorder %s18, 0
    %p107 = por %p105, %p106
    %p108 = scmp.ne.s32.totalorder %s94, %s95
    %p109 = scmp.eq.s32.totalorder %s19, 1
    %p110 = por %p108, %p109
    %p112 = scmp.ne.s32.totalorder %s95, %s111
    %p113 = scmp.eq.s32.totalorder %s19, 0
    %p114 = por %p112, %p113
    %s116 = sadd.s32 %s115, 1
    %p119 = scmp.eq.s32.totalorder %s13, 1
    %p120 = scmp.ne.s32.totalorder %s115, %s117
    %p121 = scmp.eq.s32.totalorder %s13, 0
    %p122 = por %p120, %p121
    %p123 = scmp.ne.s32.totalorder %s115, %s117
    %p124 = scmp.eq.s32.totalorder %s18, 1
    %p125 = por %p123, %p124
    %p126 = scmp.ne.s32.totalorder %s117, %s118
    %p127 = scmp.eq.s32.totalorder %s18, 0
    %p128 = por %p126, %p127
    %p129 = scmp.ne.s32.totalorder %s117, %s118
    %p130 = scmp.eq.s32.totalorder %s19, 1
    %p131 = por %p129, %p130
    %p133 = scmp.ne.s32.totalorder %s118, %s132
    %p134 = scmp.eq.s32.totalorder %s19, 0
    %p135 = por %p133, %p134
    %s137 = sadd.s32 %s136, 1
    %p140 = scmp.eq.s32.totalorder %s13, 1
    %p141 = scmp.ne.s32.totalorder %s136, %s138
    %p142 = scmp.eq.s32.totalorder %s13, 0
    %p143 = por %p141, %p142
    %p144 = scmp.ne.s32.totalorder %s136, %s138
    %p145 = scmp.eq.s32.totalorder %s18, 1
    %p146 = por %p144, %p145
    %p147 = scmp.ne.s32.totalorder %s138, %s139
    %p148 = scmp.eq.s32.totalorder %s18, 0
    %p149 = por %p147, %p148
    %p150 = scmp.ne.s32.totalorder %s138, %s139
    %p151 = scmp.eq.s32.totalorder %s19, 1
    %p152 = por %p150, %p151
    %p154 = scmp.ne.s32.totalorder %s139, %s153
    %p155 = scmp.eq.s32.totalorder %s19, 0
    %p156 = por %p154, %p155
    %s158 = sadd.s32 %s157, 1
    %p161 = scmp.eq.s32.totalorder %s13, 1
    %p162 = scmp.ne.s32.totalorder %s157, %s159
    %p163 = scmp.eq.s32.totalorder %s13, 0
    %p164 = por %p162, %p163
    %p165 = scmp.ne.s32.totalorder %s157, %s159
    %p166 = scmp.eq.s32.totalorder %s18, 1
    %p167 = por %p165, %p166
    %p168 = scmp.ne.s32.totalorder %s159, %s160
    %p169 = scmp.eq.s32.totalorder %s18, 0
    %p170 = por %p168, %p169
    %p171 = scmp.ne.s32.totalorder %s159, %s160
    %p172 = scmp.eq.s32.totalorder %s19, 1
    %p173 = por %p171, %p172
    %p175 = scmp.ne.s32.totalorder %s160, %s174
    %p176 = scmp.eq.s32.totalorder %s19, 0
    %p177 = por %p175, %p176
    %s179 = sadd.s32 %s178, 1
    %p182 = scmp.eq.s32.totalorder %s13, 1
    %p183 = scmp.ne.s32.totalorder %s178, %s180
    %p184 = scmp.eq.s32.totalorder %s13, 0
    %p185 = por %p183, %p184
    %p186 = scmp.ne.s32.totalorder %s178, %s180
    %p187 = scmp.eq.s32.totalorder %s18, 1
    %p188 = por %p186, %p187
    %p189 = scmp.ne.s32.totalorder %s180, %s181
    %p190 = scmp.eq.s32.totalorder %s18, 0
    %p191 = por %p189, %p190
    %p192 = scmp.ne.s32.totalorder %s180, %s181
    %p193 = scmp.eq.s32.totalorder %s19, 1
    %p194 = por %p192, %p193
    %p196 = scmp.ne.s32.totalorder %s181, %s195
    %p197 = scmp.eq.s32.totalorder %s19, 0
    %p198 = por %p196, %p197
    %s199 = ssub.s32 %s20, %s32
    %p200 = scmp.eq.s32.totalorder %s199, 0
    %s202 = sadd.s32 %s201, 1
    %s203 = scalar_select %p200, %s201, %s202
    %p206 = pneg %p200
    %p207 = scmp.eq.s32.totalorder %s13, 1
    %p208 = por %p206, %p207
    %p209 = scmp.ne.s32.totalorder %s201, %s204
    %p210 = scmp.eq.s32.totalorder %s13, 0
    %p211 = por %p209, %p210
    %p212 = scmp.ne.s32.totalorder %s201, %s204
    %p213 = scmp.eq.s32.totalorder %s18, 1
    %p214 = por %p212, %p213
    %p215 = scmp.ne.s32.totalorder %s204, %s205
    %p216 = scmp.eq.s32.totalorder %s18, 0
    %p217 = por %p215, %p216
    %p218 = scmp.ne.s32.totalorder %s204, %s205
    %p219 = scmp.eq.s32.totalorder %s19, 1
    %p220 = por %p218, %p219
    %p222 = scmp.ne.s32.totalorder %s205, %s221
    %p223 = scmp.eq.s32.totalorder %s19, 0
    %p224 = por %p222, %p223
    %p225 = scmp.le.s32.totalorder 1, %s13
    %p226 = scmp.lt.s32.totalorder %s13, 3
    %p227 = pnand %p225, %p226
    %p228 = pneg %p227
    // Predicated region
    $region9: #{bird_clef_forward.1} parent=5 // pred_check
      _
    $region10: #{bird_clef_forward.1} parent=5 // pred_check_branch
      %230 = sbr.rel (%p227) target = $region12
    $region11: #{bird_clef_forward.1} parent=5 // pred_region
      %s231 = ssub.s32 %s13, 1
      // Predicated region
      $region13: #{bird_clef_forward.1} parent=11 // pred_check
        %p232 = pneg %p107
      $region14: #{bird_clef_forward.1} parent=11 // pred_check_branch
        %234 = sbr.rel (%p232) target = $region16
      $region15: #{bird_clef_forward.1} parent=11 // pred_region
        %p235 = scmp.lt.s32.totalorder %s23, 0
        %s236 = scalar_select %p235, %s23, 0
        %s237 = smul.addr %s236, 3
        %s238 = scalar_lea.vmem %s2, %s237
      $region16: #{bird_clef_forward.1} parent=11 // pred_fallthru
        _
      // Predicated region
      $region17: #{bird_clef_forward.1} parent=11 // pred_check
        %p239 = pneg %p128
      $region18: #{bird_clef_forward.1} parent=11 // pred_check_branch
        %241 = sbr.rel (%p239) target = $region20
      $region19: #{bird_clef_forward.1} parent=11 // pred_region
        _
      $region20: #{bird_clef_forward.1} parent=11 // pred_fallthru
        _
      // Predicated region
      $region21: #{bird_clef_forward.1} parent=11 // pred_check
        %p242 = pneg %p149
      $region22: #{bird_clef_forward.1} parent=11 // pred_check_branch
        %244 = sbr.rel (%p242) target = $region24
      $region23: #{bird_clef_forward.1} parent=11 // pred_region
        _
      $region24: #{bird_clef_forward.1} parent=11 // pred_fallthru
        _
      // Predicated region
      $region25: #{bird_clef_forward.1} parent=11 // pred_check
        %p245 = pneg %p170
      $region26: #{bird_clef_forward.1} parent=11 // pred_check_branch
        %247 = sbr.rel (%p245) target = $region28
      $region27: #{bird_clef_forward.1} parent=11 // pred_region
        _
      $region28: #{bird_clef_forward.1} parent=11 // pred_fallthru
        _
      // Predicated region
      $region29: #{bird_clef_forward.1} parent=11 // pred_check
        %p248 = pneg %p191
      $region30: #{bird_clef_forward.1} parent=11 // pred_check_branch
        %250 = sbr.rel (%p248) target = $region32
      $region31: #{bird_clef_forward.1} parent=11 // pred_region
        _
      $region32: #{bird_clef_forward.1} parent=11 // pred_fallthru
        _
    $region12: #{bird_clef_forward.1} parent=5 // pred_fallthru
      _
    %p251 = scmp.lt.s32.totalorder %s13, 2
    // Predicated region
    $region33: #{bird_clef_forward.1} parent=5 // pred_check
      %p252 = pneg %p251
    $region34: #{bird_clef_forward.1} parent=5 // pred_check_branch
      %254 = sbr.rel (%p252) target = $region36
    $region35: #{bird_clef_forward.1} parent=5 // pred_region
      // Predicated region
      $region37: #{bird_clef_forward.1} parent=35 // pred_check
        %p255 = pneg %p47
      $region38: #{bird_clef_forward.1} parent=35 // pred_check_branch
        %257 = sbr.rel (%p255) target = $region40
      $region39: #{bird_clef_forward.1} parent=35 // pred_region
        %s258 = smul.u32 39, %s21
        %s259 = ssub.s32 44, %s258
        %p260 = scmp.lt.s32.totalorder %s259, 39
        %s261 = scalar_select %p260, %s259, 39
        %s262 = smul.u32 64, %s261
        %p263 = scmp.lt.s32.totalorder %s20, 1
        %s264 = scalar_select %p263, %s20, 1
        %p265 = scmp.lt.s32.totalorder %s258, 43
        %s266 = scalar_select %p265, %s258, 43
        %s267 = smul.addr %s264, 44
        %s268 = sadd.s32 %s266, %s267
        %s269 = smul.addr %s268, 4
        %s270 = scalar_lea.vmem %s0, %s269
        %s271 = smul.u32 39, %s21
        %s272 = ssub.s32 44, %s271
        %p273 = scmp.lt.s32.totalorder %s272, 39
        %s274 = scalar_select %p273, %s272, 39
        %s275 = smul.u32 64, %s274
      $region40: #{bird_clef_forward.1} parent=35 // pred_fallthru
        _
      // Predicated region
      $region41: #{bird_clef_forward.1} parent=35 // pred_check
        %p276 = pneg %p75
      $region42: #{bird_clef_forward.1} parent=35 // pred_check_branch
        %278 = sbr.rel (%p276) target = $region44
      $region43: #{bird_clef_forward.1} parent=35 // pred_region
        %p279 = scmp.lt.s32.totalorder %s20, 1
        %s280 = scalar_select %p279, %s20, 1
        %p281 = scmp.lt.s32.totalorder %s21, 0
        %s282 = scalar_select %p281, %s21, 0
        %s283 = smul.addr %s282, 5
        %s284 = smul.addr %s280, 5
        %s285 = sadd.s32 %s283, %s284
        %s286 = smul.addr %s285, 4
        %s287 = scalar_lea.vmem %s1, %s286
      $region44: #{bird_clef_forward.1} parent=35 // pred_fallthru
        _
    $region36: #{bird_clef_forward.1} parent=5 // pred_fallthru
      _
    %p288 = scmp.le.s32.totalorder 1, %s13
    %p289 = scmp.lt.s32.totalorder %s13, 3
    %p290 = pnand %p288, %p289
    %p291 = pneg %p290
    // Predicated region
    $region45: #{bird_clef_forward.1} parent=5 // pred_check
      _
    $region46: #{bird_clef_forward.1} parent=5 // pred_check_branch
      %293 = sbr.rel (%p290) target = $region48
    $region47: #{bird_clef_forward.1} parent=5 // pred_region
      %s294 = ssub.s32 %s13, 1
      %s295 = smul.u32 39, %s23
      %s296 = ssub.s32 44, %s295
      %p297 = scmp.lt.s32.totalorder %s296, 39
      %s298 = scalar_select %p297, %s296, 39
      %s299 = smul.u32 64, %s298
      %p300 = scmp.lt.s32.totalorder %s22, 1
      %s301 = scalar_select %p300, %s22, 1
      %p302 = scmp.lt.s32.totalorder %s295, 43
      %s303 = scalar_select %p302, %s295, 43
      %s304 = smul.addr %s301, 44
      %s305 = sadd.s32 %s303, %s304
      %s306 = smul.addr %s305, 4
      %s307 = scalar_lea.vmem %s0, %s306
      %p308 = pneg %p53
      %p309 = pneg %p50
      %p310 = scmp.lt.s32.totalorder %s22, 1
      %s311 = scalar_select %p310, %s22, 1
      %p312 = scmp.lt.s32.totalorder %s23, 0
      %s313 = scalar_select %p312, %s23, 0
      %s314 = smul.addr %s313, 5
      %s315 = smul.addr %s311, 5
      %s316 = sadd.s32 %s314, %s315
      %s317 = smul.addr %s316, 4
      %s318 = scalar_lea.vmem %s1, %s317
      %p319 = pneg %p81
      %p320 = pneg %p78
      %p321 = scmp.lt.s32.totalorder %s23, 0
      %s322 = scalar_select %p321, %s23, 0
      %s323 = smul.addr %s322, 3
      %s324 = scalar_lea.vmem %s2, %s323
      %p325 = pneg %p107
      %p326 = pneg %p104
      %p327 = pneg %p128
      %p328 = pneg %p125
      %p329 = pneg %p149
      %p330 = pneg %p146
      %p331 = pneg %p170
      %p332 = pneg %p167
      %p333 = pneg %p191
      %p334 = pneg %p188
      %p335 = pneg %p217
      %p336 = pneg %p214
      %p337 = scmp.lt.s32.totalorder %s22, 1
      %s338 = scalar_select %p337, %s22, 1
      %s339 = smul.addr %s338, 2
      %s340 = scalar_lea.vmem %s7, %s339
      %s341 = smul.u32 39, %s23
      %s342 = ssub.s32 44, %s341
      %p343 = scmp.lt.s32.totalorder %s342, 39
      %s344 = scalar_select %p343, %s342, 39
      %s345 = smul.u32 64, %s344
      %p346 = scmp.lt.s32.totalorder %s22, 1
      %s347 = scalar_select %p346, %s22, 1
      %p348 = scmp.lt.s32.totalorder %s341, 43
      %s349 = scalar_select %p348, %s341, 43
      %s350 = smul.addr %s347, 44
      %s351 = sadd.s32 %s349, %s350
      %s352 = smul.addr %s351, 4
      %s353 = scalar_lea.vmem %s0, %s352
      %s354 = smul.u32 39, %s23
      %s355 = ssub.s32 44, %s354
      %p356 = scmp.lt.s32.totalorder %s355, 39
      %s357 = scalar_select %p356, %s355, 39
      %s358 = smul.u32 64, %s357
      %p359 = scmp.lt.s32.totalorder %s22, 1
      %s360 = scalar_select %p359, %s22, 1
      %p361 = scmp.lt.s32.totalorder %s23, 0
      %s362 = scalar_select %p361, %s23, 0
      %s363 = smul.addr %s362, 5
      %s364 = smul.addr %s360, 5
      %s365 = sadd.s32 %s363, %s364
      %s366 = smul.addr %s365, 4
      %s367 = scalar_lea.vmem %s1, %s366
      %p368 = scmp.lt.s32.totalorder %s23, 0
      %s369 = scalar_select %p368, %s23, 0
      %s370 = smul.addr %s369, 3
      %s371 = scalar_lea.vmem %s2, %s370
      %p372 = scmp.lt.s32.totalorder %s22, 1
      %s373 = scalar_select %p372, %s22, 1
      %s374 = smul.addr %s373, 2
      %s375 = scalar_lea.vmem %s7, %s374
      %p377 = scmp.eq.s32.totalorder %s23, 0
      // Predicated region
      $region49: #{bird_clef_forward.1} parent=47 // pred_check
        %p378 = pneg %p377
      $region50: #{bird_clef_forward.1} parent=47 // pred_check_branch
        %380 = sbr.rel (%p378) target = $region52
      $region51: #{bird_clef_forward.1} parent=47 // pred_region
        %v381 = vlaneseq
        %vm382 = vcmp.ge.s32.totalorder %v381, 0
        %vm383 = vcmp.lt.s32.totalorder %v381, 256
        %vm384 = vmand %vm382, %vm383
        %385 = vst.msk [vmem:[#allocation3] sm:$0x3] %vm384, 0.0
      $region52: #{bird_clef_forward.1} parent=47 // pred_fallthru
        _
      %v386 = vld [vmem:[%s353] sm:$0xf]
      %v387 = vld [vmem:[%s353 + $0x4] sm:$0xf]
      %v388 = vld [vmem:[%s353 + $0x8] sm:$0xf]
      %v389 = vld [vmem:[%s353 + $0xc] sm:$0xf]
      %v390 = vld [vmem:[%s353 + $0x10] sm:$0xf]
      %v391 = vld [vmem:[%s353 + $0x14] sm:$0xf]
      %v392 = vld [vmem:[%s353 + $0x18] sm:$0xf]
      %v393 = vld [vmem:[%s353 + $0x1c] sm:$0xf]
      %v394 = vld [vmem:[%s353 + $0x20] sm:$0xf]
      %v395 = vld [vmem:[%s353 + $0x24] sm:$0xf]
      %v396 = vld [vmem:[%s353 + $0x28] sm:$0xf]
      %v397 = vld [vmem:[%s353 + $0x2c] sm:$0xf]
      %v398 = vld [vmem:[%s353 + $0x30] sm:$0xf]
      %v399 = vld [vmem:[%s353 + $0x34] sm:$0xf]
      %v400 = vld [vmem:[%s353 + $0x38] sm:$0xf]
      %v401 = vld [vmem:[%s353 + $0x3c] sm:$0xf]
      %v402 = vld [vmem:[%s353 + $0x40] sm:$0xf]
      %v403 = vld [vmem:[%s353 + $0x44] sm:$0xf]
      %v404 = vld [vmem:[%s353 + $0x48] sm:$0xf]
      %v405 = vld [vmem:[%s353 + $0x4c] sm:$0xf]
      %v406 = vld [vmem:[%s353 + $0x50] sm:$0xf]
      %v407 = vld [vmem:[%s353 + $0x54] sm:$0xf]
      %v408 = vld [vmem:[%s353 + $0x58] sm:$0xf]
      %v409 = vld [vmem:[%s353 + $0x5c] sm:$0xf]
      %v410 = vld [vmem:[%s353 + $0x60] sm:$0xf]
      %v411 = vld [vmem:[%s353 + $0x64] sm:$0xf]
      %v412 = vld [vmem:[%s353 + $0x68] sm:$0xf]
      %v413 = vld [vmem:[%s353 + $0x6c] sm:$0xf]
      %v414 = vld [vmem:[%s353 + $0x70] sm:$0xf]
      %v415 = vld [vmem:[%s353 + $0x74] sm:$0xf]
      %v416 = vld [vmem:[%s353 + $0x78] sm:$0xf]
      %v417 = vld [vmem:[%s353 + $0x7c] sm:$0xf]
      %v418 = vld [vmem:[%s353 + $0x80] sm:$0xf]
      %v419 = vld [vmem:[%s353 + $0x84] sm:$0xf]
      %v420 = vld [vmem:[%s353 + $0x88] sm:$0xf]
      %v421 = vld [vmem:[%s353 + $0x8c] sm:$0xf]
      %v422 = vld [vmem:[%s353 + $0x90] sm:$0xf]
      %v423 = vld [vmem:[%s353 + $0x94] sm:$0xf]
      %v424 = vld [vmem:[%s353 + $0x98] sm:$0xf]
      %vm425 = vcmask 27648
      %426 = vst.msk [vmem:[#allocation2] sm:$0xf] %vm425, %v386
      %427 = vst.msk [vmem:[#allocation2 + $0x4] sm:$0xf] %vm425, %v387
      %428 = vst.msk [vmem:[#allocation2 + $0x8] sm:$0xf] %vm425, %v388
      %429 = vst.msk [vmem:[#allocation2 + $0xc] sm:$0xf] %vm425, %v389
      %430 = vst.msk [vmem:[#allocation2 + $0x10] sm:$0xf] %vm425, %v390
      %431 = vst.msk [vmem:[#allocation2 + $0x14] sm:$0xf] %vm425, %v391
      %432 = vst.msk [vmem:[#allocation2 + $0x18] sm:$0xf] %vm425, %v392
      %433 = vst.msk [vmem:[#allocation2 + $0x1c] sm:$0xf] %vm425, %v393
      %434 = vst.msk [vmem:[#allocation2 + $0x20] sm:$0xf] %vm425, %v394
      %435 = vst.msk [vmem:[#allocation2 + $0x24] sm:$0xf] %vm425, %v395
      %436 = vst.msk [vmem:[#allocation2 + $0x28] sm:$0xf] %vm425, %v396
      %437 = vst.msk [vmem:[#allocation2 + $0x2c] sm:$0xf] %vm425, %v397
      %438 = vst.msk [vmem:[#allocation2 + $0x30] sm:$0xf] %vm425, %v398
      %439 = vst.msk [vmem:[#allocation2 + $0x34] sm:$0xf] %vm425, %v399
      %440 = vst.msk [vmem:[#allocation2 + $0x38] sm:$0xf] %vm425, %v400
      %441 = vst.msk [vmem:[#allocation2 + $0x3c] sm:$0xf] %vm425, %v401
      %442 = vst.msk [vmem:[#allocation2 + $0x40] sm:$0xf] %vm425, %v402
      %443 = vst.msk [vmem:[#allocation2 + $0x44] sm:$0xf] %vm425, %v403
      %444 = vst.msk [vmem:[#allocation2 + $0x48] sm:$0xf] %vm425, %v404
      %445 = vst.msk [vmem:[#allocation2 + $0x4c] sm:$0xf] %vm425, %v405
      %446 = vst.msk [vmem:[#allocation2 + $0x50] sm:$0xf] %vm425, %v406
      %447 = vst.msk [vmem:[#allocation2 + $0x54] sm:$0xf] %vm425, %v407
      %448 = vst.msk [vmem:[#allocation2 + $0x58] sm:$0xf] %vm425, %v408
      %449 = vst.msk [vmem:[#allocation2 + $0x5c] sm:$0xf] %vm425, %v409
      %450 = vst.msk [vmem:[#allocation2 + $0x60] sm:$0xf] %vm425, %v410
      %451 = vst.msk [vmem:[#allocation2 + $0x64] sm:$0xf] %vm425, %v411
      %452 = vst.msk [vmem:[#allocation2 + $0x68] sm:$0xf] %vm425, %v412
      %453 = vst.msk [vmem:[#allocation2 + $0x6c] sm:$0xf] %vm425, %v413
      %454 = vst.msk [vmem:[#allocation2 + $0x70] sm:$0xf] %vm425, %v414
      %455 = vst.msk [vmem:[#allocation2 + $0x74] sm:$0xf] %vm425, %v415
      %456 = vst.msk [vmem:[#allocation2 + $0x78] sm:$0xf] %vm425, %v416
      %457 = vst.msk [vmem:[#allocation2 + $0x7c] sm:$0xf] %vm425, %v417
      %458 = vst.msk [vmem:[#allocation2 + $0x80] sm:$0xf] %vm425, %v418
      %459 = vst.msk [vmem:[#allocation2 + $0x84] sm:$0xf] %vm425, %v419
      %460 = vst.msk [vmem:[#allocation2 + $0x88] sm:$0xf] %vm425, %v420
      %461 = vst.msk [vmem:[#allocation2 + $0x8c] sm:$0xf] %vm425, %v421
      %462 = vst.msk [vmem:[#allocation2 + $0x90] sm:$0xf] %vm425, %v422
      %463 = vst.msk [vmem:[#allocation2 + $0x94] sm:$0xf] %vm425, %v423
      %464 = vst.msk [vmem:[#allocation2 + $0x98] sm:$0xf] %vm425, %v424
      %v465 = vld [vmem:[%s353] sm:$0xf]
      %v466 = vld [vmem:[%s353 + $0x4] sm:$0xf]
      %v467 = vld [vmem:[%s353 + $0x8] sm:$0xf]
      %v468 = vld [vmem:[%s353 + $0xc] sm:$0xf]
      %v469 = vld [vmem:[%s353 + $0x10] sm:$0xf]
      %v470 = vld [vmem:[%s353 + $0x14] sm:$0xf]
      %v471 = vld [vmem:[%s353 + $0x18] sm:$0xf]
      %v472 = vld [vmem:[%s353 + $0x1c] sm:$0xf]
      %v473 = vld [vmem:[%s353 + $0x20] sm:$0xf]
      %v474 = vld [vmem:[%s353 + $0x24] sm:$0xf]
      %v475 = vld [vmem:[%s353 + $0x28] sm:$0xf]
      %v476 = vld [vmem:[%s353 + $0x2c] sm:$0xf]
      %v477 = vld [vmem:[%s353 + $0x30] sm:$0xf]
      %v478 = vld [vmem:[%s353 + $0x34] sm:$0xf]
      %v479 = vld [vmem:[%s353 + $0x38] sm:$0xf]
      %v480 = vld [vmem:[%s353 + $0x3c] sm:$0xf]
      %v481 = vld [vmem:[%s353 + $0x40] sm:$0xf]
      %v482 = vld [vmem:[%s353 + $0x44] sm:$0xf]
      %v483 = vld [vmem:[%s353 + $0x48] sm:$0xf]
      %v484 = vld [vmem:[%s353 + $0x4c] sm:$0xf]
      %v485 = vld [vmem:[%s353 + $0x50] sm:$0xf]
      %v486 = vld [vmem:[%s353 + $0x54] sm:$0xf]
      %v487 = vld [vmem:[%s353 + $0x58] sm:$0xf]
      %v488 = vld [vmem:[%s353 + $0x5c] sm:$0xf]
      %v489 = vld [vmem:[%s353 + $0x60] sm:$0xf]
      %v490 = vld [vmem:[%s353 + $0x64] sm:$0xf]
      %v491 = vld [vmem:[%s353 + $0x68] sm:$0xf]
      %v492 = vld [vmem:[%s353 + $0x6c] sm:$0xf]
      %v493 = vld [vmem:[%s353 + $0x70] sm:$0xf]
      %v494 = vld [vmem:[%s353 + $0x74] sm:$0xf]
      %v495 = vld [vmem:[%s353 + $0x78] sm:$0xf]
      %v496 = vld [vmem:[%s353 + $0x7c] sm:$0xf]
      %v497 = vld [vmem:[%s353 + $0x80] sm:$0xf]
      %v498 = vld [vmem:[%s353 + $0x84] sm:$0xf]
      %v499 = vld [vmem:[%s353 + $0x88] sm:$0xf]
      %v500 = vld [vmem:[%s353 + $0x8c] sm:$0xf]
      %v501 = vld [vmem:[%s353 + $0x90] sm:$0xf]
      %v502 = vld [vmem:[%s353 + $0x94] sm:$0xf]
      %v503 = vld [vmem:[%s353 + $0x98] sm:$0xf]
      %vm504 = vsmask.f32 3328
      %vm505 = vsmask.f32 7440
      %vm506 = vmor %vm504, %vm505
      %v508 = vshrl.u32 %v465, 16
      %v510 = vrot.slane %v508, 4
      %v511 = vshll.u32 %v465, 16
      %v513 = vrot.slane %v511, 5
      %v514 = vor.u32 %v510, %v513
      %v515 = vrot.slane %v514, 4
      %v517 = vshll.u32 %v466, 16
      %v519 = vrot.slane %v517, 5
      %v520 = vsel %vm506, %v515, %v519
      %v521 = vshrl.u32 %v466, 16
      %v523 = vrot.slane %v521, 4
      %v524 = vor.u32 %v523, %v519
      %v525 = vrot.slane %v524, 4
      %v527 = vshll.u32 %v467, 16
      %v529 = vrot.slane %v527, 5
      %v530 = vsel %vm506, %v525, %v529
      %v531 = vshrl.u32 %v467, 16
      %v533 = vrot.slane %v531, 4
      %v534 = vor.u32 %v533, %v529
      %v535 = vrot.slane %v534, 4
      %v537 = vshll.u32 %v468, 16
      %v539 = vrot.slane %v537, 5
      %v540 = vsel %vm506, %v535, %v539
      %v541 = vshrl.u32 %v468, 16
      %v543 = vrot.slane %v541, 4
      %v544 = vor.u32 %v543, %v539
      %v545 = vrot.slane %v544, 4
      %v547 = vshll.u32 %v469, 16
      %v549 = vrot.slane %v547, 5
      %v550 = vsel %vm506, %v545, %v549
      %v551 = vshrl.u32 %v469, 16
      %v553 = vrot.slane %v551, 4
      %v554 = vor.u32 %v553, %v549
      %v555 = vrot.slane %v554, 4
      %v557 = vshll.u32 %v470, 16
      %v559 = vrot.slane %v557, 5
      %v560 = vsel %vm506, %v555, %v559
      %v561 = vshrl.u32 %v470, 16
      %v563 = vrot.slane %v561, 4
      %v564 = vor.u32 %v563, %v559
      %v565 = vrot.slane %v564, 4
      %v567 = vshll.u32 %v471, 16
      %v569 = vrot.slane %v567, 5
      %v570 = vsel %vm506, %v565, %v569
      %v571 = vshrl.u32 %v471, 16
      %v573 = vrot.slane %v571, 4
      %v574 = vor.u32 %v573, %v569
      %v575 = vrot.slane %v574, 4
      %v577 = vshll.u32 %v472, 16
      %v579 = vrot.slane %v577, 5
      %v580 = vsel %vm506, %v575, %v579
      %v581 = vshrl.u32 %v472, 16
      %v583 = vrot.slane %v581, 4
      %v584 = vor.u32 %v583, %v579
      %v585 = vrot.slane %v584, 4
      %v587 = vshll.u32 %v473, 16
      %v589 = vrot.slane %v587, 5
      %v590 = vsel %vm506, %v585, %v589
      %v591 = vshrl.u32 %v473, 16
      %v593 = vrot.slane %v591, 4
      %v594 = vor.u32 %v593, %v589
      %v595 = vrot.slane %v594, 4
      %v597 = vshll.u32 %v474, 16
      %v599 = vrot.slane %v597, 5
      %v600 = vsel %vm506, %v595, %v599
      %v601 = vshrl.u32 %v474, 16
      %v603 = vrot.slane %v601, 4
      %v604 = vor.u32 %v603, %v599
      %v605 = vrot.slane %v604, 4
      %v607 = vshll.u32 %v475, 16
      %v609 = vrot.slane %v607, 5
      %v610 = vsel %vm506, %v605, %v609
      %v611 = vshrl.u32 %v475, 16
      %v613 = vrot.slane %v611, 4
      %v614 = vor.u32 %v613, %v609
      %v615 = vrot.slane %v614, 4
      %v617 = vshll.u32 %v476, 16
      %v619 = vrot.slane %v617, 5
      %v620 = vsel %vm506, %v615, %v619
      %v621 = vshrl.u32 %v476, 16
      %v623 = vrot.slane %v621, 4
      %v624 = vor.u32 %v623, %v619
      %v625 = vrot.slane %v624, 4
      %v627 = vshll.u32 %v477, 16
      %v629 = vrot.slane %v627, 5
      %v630 = vsel %vm506, %v625, %v629
      %v631 = vshrl.u32 %v477, 16
      %v633 = vrot.slane %v631, 4
      %v634 = vor.u32 %v633, %v629
      %v635 = vrot.slane %v634, 4
      %v637 = vshll.u32 %v478, 16
      %v639 = vrot.slane %v637, 5
      %v640 = vsel %vm506, %v635, %v639
      %v641 = vshrl.u32 %v478, 16
      %v643 = vrot.slane %v641, 4
      %v644 = vor.u32 %v643, %v639
      %v645 = vrot.slane %v644, 4
      %v647 = vshll.u32 %v479, 16
      %v649 = vrot.slane %v647, 5
      %v650 = vsel %vm506, %v645, %v649
      %v651 = vshrl.u32 %v479, 16
      %v653 = vrot.slane %v651, 4
      %v654 = vor.u32 %v653, %v649
      %v655 = vrot.slane %v654, 4
      %v657 = vshll.u32 %v480, 16
      %v659 = vrot.slane %v657, 5
      %v660 = vsel %vm506, %v655, %v659
      %v661 = vshrl.u32 %v480, 16
      %v663 = vrot.slane %v661, 4
      %v664 = vor.u32 %v663, %v659
      %v665 = vrot.slane %v664, 4
      %v667 = vshll.u32 %v481, 16
      %v669 = vrot.slane %v667, 5
      %v670 = vsel %vm506, %v665, %v669
      %v671 = vshrl.u32 %v481, 16
      %v673 = vrot.slane %v671, 4
      %v674 = vor.u32 %v673, %v669
      %v675 = vrot.slane %v674, 4
      %v677 = vshll.u32 %v482, 16
      %v679 = vrot.slane %v677, 5
      %v680 = vsel %vm506, %v675, %v679
      %v681 = vshrl.u32 %v482, 16
      %v683 = vrot.slane %v681, 4
      %v684 = vor.u32 %v683, %v679
      %v685 = vrot.slane %v684, 4
      %v687 = vshll.u32 %v483, 16
      %v689 = vrot.slane %v687, 5
      %v690 = vsel %vm506, %v685, %v689
      %v691 = vshrl.u32 %v483, 16
      %v693 = vrot.slane %v691, 4
      %v694 = vor.u32 %v693, %v689
      %v695 = vrot.slane %v694, 4
      %v697 = vshll.u32 %v484, 16
      %v699 = vrot.slane %v697, 5
      %v700 = vsel %vm506, %v695, %v699
      %v701 = vshrl.u32 %v484, 16
      %v703 = vrot.slane %v701, 4
      %v704 = vor.u32 %v703, %v699
      %v705 = vrot.slane %v704, 4
      %v707 = vshll.u32 %v485, 16
      %v709 = vrot.slane %v707, 5
      %v710 = vsel %vm506, %v705, %v709
      %v711 = vshrl.u32 %v485, 16
      %v713 = vrot.slane %v711, 4
      %v714 = vor.u32 %v713, %v709
      %v715 = vrot.slane %v714, 4
      %v717 = vshll.u32 %v486, 16
      %v719 = vrot.slane %v717, 5
      %v720 = vsel %vm506, %v715, %v719
      %v721 = vshrl.u32 %v486, 16
      %v723 = vrot.slane %v721, 4
      %v724 = vor.u32 %v723, %v719
      %v725 = vrot.slane %v724, 4
      %v727 = vshll.u32 %v487, 16
      %v729 = vrot.slane %v727, 5
      %v730 = vsel %vm506, %v725, %v729
      %v731 = vshrl.u32 %v487, 16
      %v733 = vrot.slane %v731, 4
      %v734 = vor.u32 %v733, %v729
      %v735 = vrot.slane %v734, 4
      %v737 = vshll.u32 %v488, 16
      %v739 = vrot.slane %v737, 5
      %v740 = vsel %vm506, %v735, %v739
      %v741 = vshrl.u32 %v488, 16
      %v743 = vrot.slane %v741, 4
      %v744 = vor.u32 %v743, %v739
      %v745 = vrot.slane %v744, 4
      %v747 = vshll.u32 %v489, 16
      %v749 = vrot.slane %v747, 5
      %v750 = vsel %vm506, %v745, %v749
      %v751 = vshrl.u32 %v489, 16
      %v753 = vrot.slane %v751, 4
      %v754 = vor.u32 %v753, %v749
      %v755 = vrot.slane %v754, 4
      %v757 = vshll.u32 %v490, 16
      %v759 = vrot.slane %v757, 5
      %v760 = vsel %vm506, %v755, %v759
      %v761 = vshrl.u32 %v490, 16
      %v763 = vrot.slane %v761, 4
      %v764 = vor.u32 %v763, %v759
      %v765 = vrot.slane %v764, 4
      %v767 = vshll.u32 %v491, 16
      %v769 = vrot.slane %v767, 5
      %v770 = vsel %vm506, %v765, %v769
      %v771 = vshrl.u32 %v491, 16
      %v773 = vrot.slane %v771, 4
      %v774 = vor.u32 %v773, %v769
      %v775 = vrot.slane %v774, 4
      %v777 = vshll.u32 %v492, 16
      %v779 = vrot.slane %v777, 5
      %v780 = vsel %vm506, %v775, %v779
      %v781 = vshrl.u32 %v492, 16
      %v783 = vrot.slane %v781, 4
      %v784 = vor.u32 %v783, %v779
      %v785 = vrot.slane %v784, 4
      %v787 = vshll.u32 %v493, 16
      %v789 = vrot.slane %v787, 5
      %v790 = vsel %vm506, %v785, %v789
      %v791 = vshrl.u32 %v493, 16
      %v793 = vrot.slane %v791, 4
      %v794 = vor.u32 %v793, %v789
      %v795 = vrot.slane %v794, 4
      %v797 = vshll.u32 %v494, 16
      %v799 = vrot.slane %v797, 5
      %v800 = vsel %vm506, %v795, %v799
      %v801 = vshrl.u32 %v494, 16
      %v803 = vrot.slane %v801, 4
      %v804 = vor.u32 %v803, %v799
      %v805 = vrot.slane %v804, 4
      %v807 = vshll.u32 %v495, 16
      %v809 = vrot.slane %v807, 5
      %v810 = vsel %vm506, %v805, %v809
      %v811 = vshrl.u32 %v495, 16
      %v813 = vrot.slane %v811, 4
      %v814 = vor.u32 %v813, %v809
      %v815 = vrot.slane %v814, 4
      %v817 = vshll.u32 %v496, 16
      %v819 = vrot.slane %v817, 5
      %v820 = vsel %vm506, %v815, %v819
      %v821 = vshrl.u32 %v496, 16
      %v823 = vrot.slane %v821, 4
      %v824 = vor.u32 %v823, %v819
      %v825 = vrot.slane %v824, 4
      %v827 = vshll.u32 %v497, 16
      %v829 = vrot.slane %v827, 5
      %v830 = vsel %vm506, %v825, %v829
      %v831 = vshrl.u32 %v497, 16
      %v833 = vrot.slane %v831, 4
      %v834 = vor.u32 %v833, %v829
      %v835 = vrot.slane %v834, 4
      %v837 = vshll.u32 %v498, 16
      %v839 = vrot.slane %v837, 5
      %v840 = vsel %vm506, %v835, %v839
      %v841 = vshrl.u32 %v498, 16
      %v843 = vrot.slane %v841, 4
      %v844 = vor.u32 %v843, %v839
      %v845 = vrot.slane %v844, 4
      %v847 = vshll.u32 %v499, 16
      %v849 = vrot.slane %v847, 5
      %v850 = vsel %vm506, %v845, %v849
      %v851 = vshrl.u32 %v499, 16
      %v853 = vrot.slane %v851, 4
      %v854 = vor.u32 %v853, %v849
      %v855 = vrot.slane %v854, 4
      %v857 = vshll.u32 %v500, 16
      %v859 = vrot.slane %v857, 5
      %v860 = vsel %vm506, %v855, %v859
      %v861 = vshrl.u32 %v500, 16
      %v863 = vrot.slane %v861, 4
      %v864 = vor.u32 %v863, %v859
      %v865 = vrot.slane %v864, 4
      %v867 = vshll.u32 %v501, 16
      %v869 = vrot.slane %v867, 5
      %v870 = vsel %vm506, %v865, %v869
      %v871 = vshrl.u32 %v501, 16
      %v873 = vrot.slane %v871, 4
      %v874 = vor.u32 %v873, %v869
      %v875 = vrot.slane %v874, 4
      %v877 = vshll.u32 %v502, 16
      %v879 = vrot.slane %v877, 5
      %v880 = vsel %vm506, %v875, %v879
      %v881 = vshrl.u32 %v502, 16
      %v883 = vrot.slane %v881, 4
      %v884 = vor.u32 %v883, %v879
      %v885 = vrot.slane %v884, 4
      %v887 = vshll.u32 %v503, 16
      %v889 = vrot.slane %v887, 5
      %v890 = vsel %vm506, %v885, %v889
      %v891 = vshrl.u32 %v503, 16
      %v893 = vrot.slane %v891, 4
      %v894 = vor.u32 %v893, %v889
      %v895 = vrot.slane %v894, 4
      %896 = vrot.lane.b32.xlu0 %v520, 4
      %v897 = vpop.permute.xlu0 %896
      %898 = vrot.lane.b32.xlu0 %v530, 4
      %v899 = vpop.permute.xlu0 %898
      %900 = vrot.lane.b32.xlu0 %v540, 4
      %v901 = vpop.permute.xlu0 %900
      %902 = vrot.lane.b32.xlu0 %v550, 4
      %v903 = vpop.permute.xlu0 %902
      %904 = vrot.lane.b32.xlu0 %v560, 4
      %v905 = vpop.permute.xlu0 %904
      %906 = vrot.lane.b32.xlu0 %v570, 4
      %v907 = vpop.permute.xlu0 %906
      %908 = vrot.lane.b32.xlu0 %v580, 4
      %v909 = vpop.permute.xlu0 %908
      %910 = vrot.lane.b32.xlu0 %v590, 4
      %v911 = vpop.permute.xlu0 %910
      %912 = vrot.lane.b32.xlu0 %v600, 4
      %v913 = vpop.permute.xlu0 %912
      %914 = vrot.lane.b32.xlu0 %v610, 4
      %v915 = vpop.permute.xlu0 %914
      %916 = vrot.lane.b32.xlu0 %v620, 4
      %v917 = vpop.permute.xlu0 %916
      %918 = vrot.lane.b32.xlu0 %v630, 4
      %v919 = vpop.permute.xlu0 %918
      %920 = vrot.lane.b32.xlu0 %v640, 4
      %v921 = vpop.permute.xlu0 %920
      %922 = vrot.lane.b32.xlu0 %v650, 4
      %v923 = vpop.permute.xlu0 %922
      %924 = vrot.lane.b32.xlu0 %v660, 4
      %v925 = vpop.permute.xlu0 %924
      %926 = vrot.lane.b32.xlu0 %v670, 4
      %v927 = vpop.permute.xlu0 %926
      %928 = vrot.lane.b32.xlu0 %v680, 4
      %v929 = vpop.permute.xlu0 %928
      %930 = vrot.lane.b32.xlu0 %v690, 4
      %v931 = vpop.permute.xlu0 %930
      %932 = vrot.lane.b32.xlu0 %v700, 4
      %v933 = vpop.permute.xlu0 %932
      %934 = vrot.lane.b32.xlu0 %v710, 4
      %v935 = vpop.permute.xlu0 %934
      %936 = vrot.lane.b32.xlu0 %v720, 4
      %v937 = vpop.permute.xlu0 %936
      %938 = vrot.lane.b32.xlu0 %v730, 4
      %v939 = vpop.permute.xlu0 %938
      %940 = vrot.lane.b32.xlu0 %v740, 4
      %v941 = vpop.permute.xlu0 %940
      %942 = vrot.lane.b32.xlu0 %v750, 4
      %v943 = vpop.permute.xlu0 %942
      %944 = vrot.lane.b32.xlu0 %v760, 4
      %v945 = vpop.permute.xlu0 %944
      %946 = vrot.lane.b32.xlu0 %v770, 4
      %v947 = vpop.permute.xlu0 %946
      %948 = vrot.lane.b32.xlu0 %v780, 4
      %v949 = vpop.permute.xlu0 %948
      %950 = vrot.lane.b32.xlu0 %v790, 4
      %v951 = vpop.permute.xlu0 %950
      %952 = vrot.lane.b32.xlu0 %v800, 4
      %v953 = vpop.permute.xlu0 %952
      %954 = vrot.lane.b32.xlu0 %v810, 4
      %v955 = vpop.permute.xlu0 %954
      %956 = vrot.lane.b32.xlu0 %v820, 4
      %v957 = vpop.permute.xlu0 %956
      %958 = vrot.lane.b32.xlu0 %v830, 4
      %v959 = vpop.permute.xlu0 %958
      %960 = vrot.lane.b32.xlu0 %v840, 4
      %v961 = vpop.permute.xlu0 %960
      %962 = vrot.lane.b32.xlu0 %v850, 4
      %v963 = vpop.permute.xlu0 %962
      %964 = vrot.lane.b32.xlu0 %v860, 4
      %v965 = vpop.permute.xlu0 %964
      %966 = vrot.lane.b32.xlu0 %v870, 4
      %v967 = vpop.permute.xlu0 %966
      %968 = vrot.lane.b32.xlu0 %v880, 4
      %v969 = vpop.permute.xlu0 %968
      %970 = vrot.lane.b32.xlu0 %v890, 4
      %v971 = vpop.permute.xlu0 %970
      %972 = vrot.lane.b32.xlu0 %v895, 4
      %v973 = vpop.permute.xlu0 %972
      %vm1013 = vcmask 60448
      %1014 = vst.msk [vmem:[#allocation2] sm:$0xf] %vm1013, %v897
      %1015 = vst.msk [vmem:[#allocation2 + $0x4] sm:$0xf] %vm1013, %v899
      %1016 = vst.msk [vmem:[#allocation2 + $0x8] sm:$0xf] %vm1013, %v901
      %1017 = vst.msk [vmem:[#allocation2 + $0xc] sm:$0xf] %vm1013, %v903
      %1018 = vst.msk [vmem:[#allocation2 + $0x10] sm:$0xf] %vm1013, %v905
      %1019 = vst.msk [vmem:[#allocation2 + $0x14] sm:$0xf] %vm1013, %v907
      %1020 = vst.msk [vmem:[#allocation2 + $0x18] sm:$0xf] %vm1013, %v909
      %1021 = vst.msk [vmem:[#allocation2 + $0x1c] sm:$0xf] %vm1013, %v911
      %1022 = vst.msk [vmem:[#allocation2 + $0x20] sm:$0xf] %vm1013, %v913
      %1023 = vst.msk [vmem:[#allocation2 + $0x24] sm:$0xf] %vm1013, %v915
      %1024 = vst.msk [vmem:[#allocation2 + $0x28] sm:$0xf] %vm1013, %v917
      %1025 = vst.msk [vmem:[#allocation2 + $0x2c] sm:$0xf] %vm1013, %v919
      %1026 = vst.msk [vmem:[#allocation2 + $0x30] sm:$0xf] %vm1013, %v921
      %1027 = vst.msk [vmem:[#allocation2 + $0x34] sm:$0xf] %vm1013, %v923
      %1028 = vst.msk [vmem:[#allocation2 + $0x38] sm:$0xf] %vm1013, %v925
      %1029 = vst.msk [vmem:[#allocation2 + $0x3c] sm:$0xf] %vm1013, %v927
      %1030 = vst.msk [vmem:[#allocation2 + $0x40] sm:$0xf] %vm1013, %v929
      %1031 = vst.msk [vmem:[#allocation2 + $0x44] sm:$0xf] %vm1013, %v931
      %1032 = vst.msk [vmem:[#allocation2 + $0x48] sm:$0xf] %vm1013, %v933
      %1033 = vst.msk [vmem:[#allocation2 + $0x4c] sm:$0xf] %vm1013, %v935
      %1034 = vst.msk [vmem:[#allocation2 + $0x50] sm:$0xf] %vm1013, %v937
      %1035 = vst.msk [vmem:[#allocation2 + $0x54] sm:$0xf] %vm1013, %v939
      %1036 = vst.msk [vmem:[#allocation2 + $0x58] sm:$0xf] %vm1013, %v941
      %1037 = vst.msk [vmem:[#allocation2 + $0x5c] sm:$0xf] %vm1013, %v943
      %1038 = vst.msk [vmem:[#allocation2 + $0x60] sm:$0xf] %vm1013, %v945
      %1039 = vst.msk [vmem:[#allocation2 + $0x64] sm:$0xf] %vm1013, %v947
      %1040 = vst.msk [vmem:[#allocation2 + $0x68] sm:$0xf] %vm1013, %v949
      %1041 = vst.msk [vmem:[#allocation2 + $0x6c] sm:$0xf] %vm1013, %v951
      %1042 = vst.msk [vmem:[#allocation2 + $0x70] sm:$0xf] %vm1013, %v953
      %1043 = vst.msk [vmem:[#allocation2 + $0x74] sm:$0xf] %vm1013, %v955
      %1044 = vst.msk [vmem:[#allocation2 + $0x78] sm:$0xf] %vm1013, %v957
      %1045 = vst.msk [vmem:[#allocation2 + $0x7c] sm:$0xf] %vm1013, %v959
      %1046 = vst.msk [vmem:[#allocation2 + $0x80] sm:$0xf] %vm1013, %v961
      %1047 = vst.msk [vmem:[#allocation2 + $0x84] sm:$0xf] %vm1013, %v963
      %1048 = vst.msk [vmem:[#allocation2 + $0x88] sm:$0xf] %vm1013, %v965
      %1049 = vst.msk [vmem:[#allocation2 + $0x8c] sm:$0xf] %vm1013, %v967
      %1050 = vst.msk [vmem:[#allocation2 + $0x90] sm:$0xf] %vm1013, %v969
      %1051 = vst.msk [vmem:[#allocation2 + $0x94] sm:$0xf] %vm1013, %v971
      %vm1052 = vcmask 60448
      %vm1053 = vmand %vm1052, %vm504
      %v1054 = vld [vmem:[#allocation2 + $0x98] sm:$0xf]
      %v1055 = vsel %vm1053, %v973, %v1054
      %1056 = vst [vmem:[#allocation2 + $0x98] sm:$0xf] %v1055
      %v1057 = vld [vmem:[%s367] sm:$0x1]
      %v1059 = vshll.u32 %v1057, 16
      %v1061 = vrot.slane %v1059, 5
      %1062 = vrot.lane.b32.xlu0 %v1061, 4
      %v1063 = vpop.permute.xlu0 %1062
      %vm1065 = vcmask 60451
      %vm1066 = vsmask.f32 7950
      %vm1067 = vmand %vm1065, %vm1066
      %v1068 = vld [vmem:[#allocation2 + $0x98] sm:$0x8]
      %v1069 = vsel %vm1067, %v1063, %v1068
      %1070 = vst [vmem:[#allocation2 + $0x98] sm:$0x8] %v1069
      %v1071 = vld [vmem:[%s353] sm:$0xe]
      %v1072 = vld [vmem:[%s353 + $0x4] sm:$0xf]
      %v1073 = vld [vmem:[%s353 + $0x8] sm:$0xf]
      %v1074 = vld [vmem:[%s353 + $0xc] sm:$0xf]
      %v1075 = vld [vmem:[%s353 + $0x10] sm:$0xf]
      %v1076 = vld [vmem:[%s353 + $0x14] sm:$0xf]
      %v1077 = vld [vmem:[%s353 + $0x18] sm:$0xf]
      %v1078 = vld [vmem:[%s353 + $0x1c] sm:$0xf]
      %v1079 = vld [vmem:[%s353 + $0x20] sm:$0xf]
      %v1080 = vld [vmem:[%s353 + $0x24] sm:$0xf]
      %v1081 = vld [vmem:[%s353 + $0x28] sm:$0xf]
      %v1082 = vld [vmem:[%s353 + $0x2c] sm:$0xf]
      %v1083 = vld [vmem:[%s353 + $0x30] sm:$0xf]
      %v1084 = vld [vmem:[%s353 + $0x34] sm:$0xf]
      %v1085 = vld [vmem:[%s353 + $0x38] sm:$0xf]
      %v1086 = vld [vmem:[%s353 + $0x3c] sm:$0xf]
      %v1087 = vld [vmem:[%s353 + $0x40] sm:$0xf]
      %v1088 = vld [vmem:[%s353 + $0x44] sm:$0xf]
      %v1089 = vld [vmem:[%s353 + $0x48] sm:$0xf]
      %v1090 = vld [vmem:[%s353 + $0x4c] sm:$0xf]
      %v1091 = vld [vmem:[%s353 + $0x50] sm:$0xf]
      %v1092 = vld [vmem:[%s353 + $0x54] sm:$0xf]
      %v1093 = vld [vmem:[%s353 + $0x58] sm:$0xf]
      %v1094 = vld [vmem:[%s353 + $0x5c] sm:$0xf]
      %v1095 = vld [vmem:[%s353 + $0x60] sm:$0xf]
      %v1096 = vld [vmem:[%s353 + $0x64] sm:$0xf]
      %v1097 = vld [vmem:[%s353 + $0x68] sm:$0xf]
      %v1098 = vld [vmem:[%s353 + $0x6c] sm:$0xf]
      %v1099 = vld [vmem:[%s353 + $0x70] sm:$0xf]
      %v1100 = vld [vmem:[%s353 + $0x74] sm:$0xf]
      %v1101 = vld [vmem:[%s353 + $0x78] sm:$0xf]
      %v1102 = vld [vmem:[%s353 + $0x7c] sm:$0xf]
      %v1103 = vld [vmem:[%s353 + $0x80] sm:$0xf]
      %v1104 = vld [vmem:[%s353 + $0x84] sm:$0xf]
      %v1105 = vld [vmem:[%s353 + $0x88] sm:$0xf]
      %v1106 = vld [vmem:[%s353 + $0x8c] sm:$0xf]
      %v1107 = vld [vmem:[%s353 + $0x90] sm:$0xf]
      %v1108 = vld [vmem:[%s353 + $0x94] sm:$0xf]
      %v1109 = vld [vmem:[%s353 + $0x98] sm:$0xf]
      %vm1149 = vcmask 1042432
      %vm1150 = vcmask 1046532
      %vm1151 = vmor %vm1149, %vm1150
      %v1152 = vrot.slane %v1071, 5
      %v1153 = vrot.slane %v1152, 4
      %v1154 = vrot.slane %v1072, 5
      %v1155 = vsel %vm1151, %v1153, %v1154
      %v1156 = vrot.slane %v1154, 4
      %v1157 = vrot.slane %v1073, 5
      %v1158 = vsel %vm1151, %v1156, %v1157
      %v1159 = vrot.slane %v1157, 4
      %v1160 = vrot.slane %v1074, 5
      %v1161 = vsel %vm1151, %v1159, %v1160
      %v1162 = vrot.slane %v1160, 4
      %v1163 = vrot.slane %v1075, 5
      %v1164 = vsel %vm1151, %v1162, %v1163
      %v1165 = vrot.slane %v1163, 4
      %v1166 = vrot.slane %v1076, 5
      %v1167 = vsel %vm1151, %v1165, %v1166
      %v1168 = vrot.slane %v1166, 4
      %v1169 = vrot.slane %v1077, 5
      %v1170 = vsel %vm1151, %v1168, %v1169
      %v1171 = vrot.slane %v1169, 4
      %v1172 = vrot.slane %v1078, 5
      %v1173 = vsel %vm1151, %v1171, %v1172
      %v1174 = vrot.slane %v1172, 4
      %v1175 = vrot.slane %v1079, 5
      %v1176 = vsel %vm1151, %v1174, %v1175
      %v1177 = vrot.slane %v1175, 4
      %v1178 = vrot.slane %v1080, 5
      %v1179 = vsel %vm1151, %v1177, %v1178
      %v1180 = vrot.slane %v1178, 4
      %v1181 = vrot.slane %v1081, 5
      %v1182 = vsel %vm1151, %v1180, %v1181
      %v1183 = vrot.slane %v1181, 4
      %v1184 = vrot.slane %v1082, 5
      %v1185 = vsel %vm1151, %v1183, %v1184
      %v1186 = vrot.slane %v1184, 4
      %v1187 = vrot.slane %v1083, 5
      %v1188 = vsel %vm1151, %v1186, %v1187
      %v1189 = vrot.slane %v1187, 4
      %v1190 = vrot.slane %v1084, 5
      %v1191 = vsel %vm1151, %v1189, %v1190
      %v1192 = vrot.slane %v1190, 4
      %v1193 = vrot.slane %v1085, 5
      %v1194 = vsel %vm1151, %v1192, %v1193
      %v1195 = vrot.slane %v1193, 4
      %v1196 = vrot.slane %v1086, 5
      %v1197 = vsel %vm1151, %v1195, %v1196
      %v1198 = vrot.slane %v1196, 4
      %v1199 = vrot.slane %v1087, 5
      %v1200 = vsel %vm1151, %v1198, %v1199
      %v1201 = vrot.slane %v1199, 4
      %v1202 = vrot.slane %v1088, 5
      %v1203 = vsel %vm1151, %v1201, %v1202
      %v1204 = vrot.slane %v1202, 4
      %v1205 = vrot.slane %v1089, 5
      %v1206 = vsel %vm1151, %v1204, %v1205
      %v1207 = vrot.slane %v1205, 4
      %v1208 = vrot.slane %v1090, 5
      %v1209 = vsel %vm1151, %v1207, %v1208
      %v1210 = vrot.slane %v1208, 4
      %v1211 = vrot.slane %v1091, 5
      %v1212 = vsel %vm1151, %v1210, %v1211
      %v1213 = vrot.slane %v1211, 4
      %v1214 = vrot.slane %v1092, 5
      %v1215 = vsel %vm1151, %v1213, %v1214
      %v1216 = vrot.slane %v1214, 4
      %v1217 = vrot.slane %v1093, 5
      %v1218 = vsel %vm1151, %v1216, %v1217
      %v1219 = vrot.slane %v1217, 4
      %v1220 = vrot.slane %v1094, 5
      %v1221 = vsel %vm1151, %v1219, %v1220
      %v1222 = vrot.slane %v1220, 4
      %v1223 = vrot.slane %v1095, 5
      %v1224 = vsel %vm1151, %v1222, %v1223
      %v1225 = vrot.slane %v1223, 4
      %v1226 = vrot.slane %v1096, 5
      %v1227 = vsel %vm1151, %v1225, %v1226
      %v1228 = vrot.slane %v1226, 4
      %v1229 = vrot.slane %v1097, 5
      %v1230 = vsel %vm1151, %v1228, %v1229
      %v1231 = vrot.slane %v1229, 4
      %v1232 = vrot.slane %v1098, 5
      %v1233 = vsel %vm1151, %v1231, %v1232
      %v1234 = vrot.slane %v1232, 4
      %v1235 = vrot.slane %v1099, 5
      %v1236 = vsel %vm1151, %v1234, %v1235
      %v1237 = vrot.slane %v1235, 4
      %v1238 = vrot.slane %v1100, 5
      %v1239 = vsel %vm1151, %v1237, %v1238
      %v1240 = vrot.slane %v1238, 4
      %v1241 = vrot.slane %v1101, 5
      %v1242 = vsel %vm1151, %v1240, %v1241
      %v1243 = vrot.slane %v1241, 4
      %v1244 = vrot.slane %v1102, 5
      %v1245 = vsel %vm1151, %v1243, %v1244
      %v1246 = vrot.slane %v1244, 4
      %v1247 = vrot.slane %v1103, 5
      %v1248 = vsel %vm1151, %v1246, %v1247
      %v1249 = vrot.slane %v1247, 4
      %v1250 = vrot.slane %v1104, 5
      %v1251 = vsel %vm1151, %v1249, %v1250
      %v1252 = vrot.slane %v1250, 4
      %v1253 = vrot.slane %v1105, 5
      %v1254 = vsel %vm1151, %v1252, %v1253
      %v1255 = vrot.slane %v1253, 4
      %v1256 = vrot.slane %v1106, 5
      %v1257 = vsel %vm1151, %v1255, %v1256
      %v1258 = vrot.slane %v1256, 4
      %v1259 = vrot.slane %v1107, 5
      %v1260 = vsel %vm1151, %v1258, %v1259
      %v1261 = vrot.slane %v1259, 4
      %v1262 = vrot.slane %v1108, 5
      %v1263 = vsel %vm1151, %v1261, %v1262
      %v1264 = vrot.slane %v1262, 4
      %v1265 = vrot.slane %v1109, 5
      %v1266 = vsel %vm1151, %v1264, %v1265
      %v1267 = vrot.slane %v1265, 4
      %1268 = vrot.lane.b32.xlu0 %v1155, 8
      %v1269 = vpop.permute.xlu0 %1268
      %1270 = vrot.lane.b32.xlu0 %v1158, 8
      %v1271 = vpop.permute.xlu0 %1270
      %1272 = vrot.lane.b32.xlu0 %v1161, 8
      %v1273 = vpop.permute.xlu0 %1272
      %1274 = vrot.lane.b32.xlu0 %v1164, 8
      %v1275 = vpop.permute.xlu0 %1274
      %1276 = vrot.lane.b32.xlu0 %v1167, 8
      %v1277 = vpop.permute.xlu0 %1276
      %1278 = vrot.lane.b32.xlu0 %v1170, 8
      %v1279 = vpop.permute.xlu0 %1278
      %1280 = vrot.lane.b32.xlu0 %v1173, 8
      %v1281 = vpop.permute.xlu0 %1280
      %1282 = vrot.lane.b32.xlu0 %v1176, 8
      %v1283 = vpop.permute.xlu0 %1282
      %1284 = vrot.lane.b32.xlu0 %v1179, 8
      %v1285 = vpop.permute.xlu0 %1284
      %1286 = vrot.lane.b32.xlu0 %v1182, 8
      %v1287 = vpop.permute.xlu0 %1286
      %1288 = vrot.lane.b32.xlu0 %v1185, 8
      %v1289 = vpop.permute.xlu0 %1288
      %1290 = vrot.lane.b32.xlu0 %v1188, 8
      %v1291 = vpop.permute.xlu0 %1290
      %1292 = vrot.lane.b32.xlu0 %v1191, 8
      %v1293 = vpop.permute.xlu0 %1292
      %1294 = vrot.lane.b32.xlu0 %v1194, 8
      %v1295 = vpop.permute.xlu0 %1294
      %1296 = vrot.lane.b32.xlu0 %v1197, 8
      %v1297 = vpop.permute.xlu0 %1296
      %1298 = vrot.lane.b32.xlu0 %v1200, 8
      %v1299 = vpop.permute.xlu0 %1298
      %1300 = vrot.lane.b32.xlu0 %v1203, 8
      %v1301 = vpop.permute.xlu0 %1300
      %1302 = vrot.lane.b32.xlu0 %v1206, 8
      %v1303 = vpop.permute.xlu0 %1302
      %1304 = vrot.lane.b32.xlu0 %v1209, 8
      %v1305 = vpop.permute.xlu0 %1304
      %1306 = vrot.lane.b32.xlu0 %v1212, 8
      %v1307 = vpop.permute.xlu0 %1306
      %1308 = vrot.lane.b32.xlu0 %v1215, 8
      %v1309 = vpop.permute.xlu0 %1308
      %1310 = vrot.lane.b32.xlu0 %v1218, 8
      %v1311 = vpop.permute.xlu0 %1310
      %1312 = vrot.lane.b32.xlu0 %v1221, 8
      %v1313 = vpop.permute.xlu0 %1312
      %1314 = vrot.lane.b32.xlu0 %v1224, 8
      %v1315 = vpop.permute.xlu0 %1314
      %1316 = vrot.lane.b32.xlu0 %v1227, 8
      %v1317 = vpop.permute.xlu0 %1316
      %1318 = vrot.lane.b32.xlu0 %v1230, 8
      %v1319 = vpop.permute.xlu0 %1318
      %1320 = vrot.lane.b32.xlu0 %v1233, 8
      %v1321 = vpop.permute.xlu0 %1320
      %1322 = vrot.lane.b32.xlu0 %v1236, 8
      %v1323 = vpop.permute.xlu0 %1322
      %1324 = vrot.lane.b32.xlu0 %v1239, 8
      %v1325 = vpop.permute.xlu0 %1324
      %1326 = vrot.lane.b32.xlu0 %v1242, 8
      %v1327 = vpop.permute.xlu0 %1326
      %1328 = vrot.lane.b32.xlu0 %v1245, 8
      %v1329 = vpop.permute.xlu0 %1328
      %1330 = vrot.lane.b32.xlu0 %v1248, 8
      %v1331 = vpop.permute.xlu0 %1330
      %1332 = vrot.lane.b32.xlu0 %v1251, 8
      %v1333 = vpop.permute.xlu0 %1332
      %1334 = vrot.lane.b32.xlu0 %v1254, 8
      %v1335 = vpop.permute.xlu0 %1334
      %1336 = vrot.lane.b32.xlu0 %v1257, 8
      %v1337 = vpop.permute.xlu0 %1336
      %1338 = vrot.lane.b32.xlu0 %v1260, 8
      %v1339 = vpop.permute.xlu0 %1338
      %1340 = vrot.lane.b32.xlu0 %v1263, 8
      %v1341 = vpop.permute.xlu0 %1340
      %1342 = vrot.lane.b32.xlu0 %v1266, 8
      %v1343 = vpop.permute.xlu0 %1342
      %1344 = vrot.lane.b32.xlu0 %v1267, 8
      %v1345 = vpop.permute.xlu0 %1344
      %vm1385 = vcmask 93248
      %1386 = vst.msk [vmem:[#allocation2] sm:$0xf] %vm1385, %v1269
      %1387 = vst.msk [vmem:[#allocation2 + $0x4] sm:$0xf] %vm1385, %v1271
      %1388 = vst.msk [vmem:[#allocation2 + $0x8] sm:$0xf] %vm1385, %v1273
      %1389 = vst.msk [vmem:[#allocation2 + $0xc] sm:$0xf] %vm1385, %v1275
      %1390 = vst.msk [vmem:[#allocation2 + $0x10] sm:$0xf] %vm1385, %v1277
      %1391 = vst.msk [vmem:[#allocation2 + $0x14] sm:$0xf] %vm1385, %v1279
      %1392 = vst.msk [vmem:[#allocation2 + $0x18] sm:$0xf] %vm1385, %v1281
      %1393 = vst.msk [vmem:[#allocation2 + $0x1c] sm:$0xf] %vm1385, %v1283
      %1394 = vst.msk [vmem:[#allocation2 + $0x20] sm:$0xf] %vm1385, %v1285
      %1395 = vst.msk [vmem:[#allocation2 + $0x24] sm:$0xf] %vm1385, %v1287
      %1396 = vst.msk [vmem:[#allocation2 + $0x28] sm:$0xf] %vm1385, %v1289
      %1397 = vst.msk [vmem:[#allocation2 + $0x2c] sm:$0xf] %vm1385, %v1291
      %1398 = vst.msk [vmem:[#allocation2 + $0x30] sm:$0xf] %vm1385, %v1293
      %1399 = vst.msk [vmem:[#allocation2 + $0x34] sm:$0xf] %vm1385, %v1295
      %1400 = vst.msk [vmem:[#allocation2 + $0x38] sm:$0xf] %vm1385, %v1297
      %1401 = vst.msk [vmem:[#allocation2 + $0x3c] sm:$0xf] %vm1385, %v1299
      %1402 = vst.msk [vmem:[#allocation2 + $0x40] sm:$0xf] %vm1385, %v1301
      %1403 = vst.msk [vmem:[#allocation2 + $0x44] sm:$0xf] %vm1385, %v1303
      %1404 = vst.msk [vmem:[#allocation2 + $0x48] sm:$0xf] %vm1385, %v1305
      %1405 = vst.msk [vmem:[#allocation2 + $0x4c] sm:$0xf] %vm1385, %v1307
      %1406 = vst.msk [vmem:[#allocation2 + $0x50] sm:$0xf] %vm1385, %v1309
      %1407 = vst.msk [vmem:[#allocation2 + $0x54] sm:$0xf] %vm1385, %v1311
      %1408 = vst.msk [vmem:[#allocation2 + $0x58] sm:$0xf] %vm1385, %v1313
      %1409 = vst.msk [vmem:[#allocation2 + $0x5c] sm:$0xf] %vm1385, %v1315
      %1410 = vst.msk [vmem:[#allocation2 + $0x60] sm:$0xf] %vm1385, %v1317
      %1411 = vst.msk [vmem:[#allocation2 + $0x64] sm:$0xf] %vm1385, %v1319
      %1412 = vst.msk [vmem:[#allocation2 + $0x68] sm:$0xf] %vm1385, %v1321
      %1413 = vst.msk [vmem:[#allocation2 + $0x6c] sm:$0xf] %vm1385, %v1323
      %1414 = vst.msk [vmem:[#allocation2 + $0x70] sm:$0xf] %vm1385, %v1325
      %1415 = vst.msk [vmem:[#allocation2 + $0x74] sm:$0xf] %vm1385, %v1327
      %1416 = vst.msk [vmem:[#allocation2 + $0x78] sm:$0xf] %vm1385, %v1329
      %1417 = vst.msk [vmem:[#allocation2 + $0x7c] sm:$0xf] %vm1385, %v1331
      %1418 = vst.msk [vmem:[#allocation2 + $0x80] sm:$0xf] %vm1385, %v1333
      %1419 = vst.msk [vmem:[#allocation2 + $0x84] sm:$0xf] %vm1385, %v1335
      %1420 = vst.msk [vmem:[#allocation2 + $0x88] sm:$0xf] %vm1385, %v1337
      %1421 = vst.msk [vmem:[#allocation2 + $0x8c] sm:$0xf] %vm1385, %v1339
      %1422 = vst.msk [vmem:[#allocation2 + $0x90] sm:$0xf] %vm1385, %v1341
      %1423 = vst.msk [vmem:[#allocation2 + $0x94] sm:$0xf] %vm1385, %v1343
      %vm1424 = vcmask 92224
      %1425 = vst.msk [vmem:[#allocation2 + $0x98] sm:$0x7] %vm1424, %v1345
      %v1426 = vld [vmem:[%s367] sm:$0x1]
      %v1428 = vrot.slane %v1426, 5
      %1429 = vrot.lane.b32.xlu0 %v1428, 8
      %v1430 = vpop.permute.xlu0 %1429
      %vm1432 = vcmask 93251
      %1433 = vst.msk [vmem:[#allocation2 + $0x98] sm:$0x8] %vm1432, %v1430
      %v1434 = vld [vmem:[%s353 + $0x8] sm:$0xe]
      %v1435 = vld [vmem:[%s353 + $0xc] sm:$0xf]
      %v1436 = vld [vmem:[%s353 + $0x10] sm:$0xf]
      %v1437 = vld [vmem:[%s353 + $0x14] sm:$0xf]
      %v1438 = vld [vmem:[%s353 + $0x18] sm:$0xf]
      %v1439 = vld [vmem:[%s353 + $0x1c] sm:$0xf]
      %v1440 = vld [vmem:[%s353 + $0x20] sm:$0xf]
      %v1441 = vld [vmem:[%s353 + $0x24] sm:$0xf]
      %v1442 = vld [vmem:[%s353 + $0x28] sm:$0xf]
      %v1443 = vld [vmem:[%s353 + $0x2c] sm:$0xf]
      %v1444 = vld [vmem:[%s353 + $0x30] sm:$0xf]
      %v1445 = vld [vmem:[%s353 + $0x34] sm:$0xf]
      %v1446 = vld [vmem:[%s353 + $0x38] sm:$0xf]
      %v1447 = vld [vmem:[%s353 + $0x3c] sm:$0xf]
      %v1448 = vld [vmem:[%s353 + $0x40] sm:$0xf]
      %v1449 = vld [vmem:[%s353 + $0x44] sm:$0xf]
      %v1450 = vld [vmem:[%s353 + $0x48] sm:$0xf]
      %v1451 = vld [vmem:[%s353 + $0x4c] sm:$0xf]
      %v1452 = vld [vmem:[%s353 + $0x50] sm:$0xf]
      %v1453 = vld [vmem:[%s353 + $0x54] sm:$0xf]
      %v1454 = vld [vmem:[%s353 + $0x58] sm:$0xf]
      %v1455 = vld [vmem:[%s353 + $0x5c] sm:$0xf]
      %v1456 = vld [vmem:[%s353 + $0x60] sm:$0xf]
      %v1457 = vld [vmem:[%s353 + $0x64] sm:$0xf]
      %v1458 = vld [vmem:[%s353 + $0x68] sm:$0xf]
      %v1459 = vld [vmem:[%s353 + $0x6c] sm:$0xf]
      %v1460 = vld [vmem:[%s353 + $0x70] sm:$0xf]
      %v1461 = vld [vmem:[%s353 + $0x74] sm:$0xf]
      %v1462 = vld [vmem:[%s353 + $0x78] sm:$0xf]
      %v1463 = vld [vmem:[%s353 + $0x7c] sm:$0xf]
      %v1464 = vld [vmem:[%s353 + $0x80] sm:$0xf]
      %v1465 = vld [vmem:[%s353 + $0x84] sm:$0xf]
      %v1466 = vld [vmem:[%s353 + $0x88] sm:$0xf]
      %v1467 = vld [vmem:[%s353 + $0x8c] sm:$0xf]
      %v1468 = vld [vmem:[%s353 + $0x90] sm:$0xf]
      %v1469 = vld [vmem:[%s353 + $0x94] sm:$0xf]
      %v1470 = vld [vmem:[%s353 + $0x98] sm:$0xf]
      %v1508 = vrot.slane %v1434, 5
      %v1509 = vrot.slane %v1508, 4
      %v1510 = vrot.slane %v1435, 5
      %v1511 = vsel %vm1151, %v1509, %v1510
      %v1512 = vrot.slane %v1510, 4
      %v1513 = vrot.slane %v1436, 5
      %v1514 = vsel %vm1151, %v1512, %v1513
      %v1515 = vrot.slane %v1513, 4
      %v1516 = vrot.slane %v1437, 5
      %v1517 = vsel %vm1151, %v1515, %v1516
      %v1518 = vrot.slane %v1516, 4
      %v1519 = vrot.slane %v1438, 5
      %v1520 = vsel %vm1151, %v1518, %v1519
      %v1521 = vrot.slane %v1519, 4
      %v1522 = vrot.slane %v1439, 5
      %v1523 = vsel %vm1151, %v1521, %v1522
      %v1524 = vrot.slane %v1522, 4
      %v1525 = vrot.slane %v1440, 5
      %v1526 = vsel %vm1151, %v1524, %v1525
      %v1527 = vrot.slane %v1525, 4
      %v1528 = vrot.slane %v1441, 5
      %v1529 = vsel %vm1151, %v1527, %v1528
      %v1530 = vrot.slane %v1528, 4
      %v1531 = vrot.slane %v1442, 5
      %v1532 = vsel %vm1151, %v1530, %v1531
      %v1533 = vrot.slane %v1531, 4
      %v1534 = vrot.slane %v1443, 5
      %v1535 = vsel %vm1151, %v1533, %v1534
      %v1536 = vrot.slane %v1534, 4
      %v1537 = vrot.slane %v1444, 5
      %v1538 = vsel %vm1151, %v1536, %v1537
      %v1539 = vrot.slane %v1537, 4
      %v1540 = vrot.slane %v1445, 5
      %v1541 = vsel %vm1151, %v1539, %v1540
      %v1542 = vrot.slane %v1540, 4
      %v1543 = vrot.slane %v1446, 5
      %v1544 = vsel %vm1151, %v1542, %v1543
      %v1545 = vrot.slane %v1543, 4
      %v1546 = vrot.slane %v1447, 5
      %v1547 = vsel %vm1151, %v1545, %v1546
      %v1548 = vrot.slane %v1546, 4
      %v1549 = vrot.slane %v1448, 5
      %v1550 = vsel %vm1151, %v1548, %v1549
      %v1551 = vrot.slane %v1549, 4
      %v1552 = vrot.slane %v1449, 5
      %v1553 = vsel %vm1151, %v1551, %v1552
      %v1554 = vrot.slane %v1552, 4
      %v1555 = vrot.slane %v1450, 5
      %v1556 = vsel %vm1151, %v1554, %v1555
      %v1557 = vrot.slane %v1555, 4
      %v1558 = vrot.slane %v1451, 5
      %v1559 = vsel %vm1151, %v1557, %v1558
      %v1560 = vrot.slane %v1558, 4
      %v1561 = vrot.slane %v1452, 5
      %v1562 = vsel %vm1151, %v1560, %v1561
      %v1563 = vrot.slane %v1561, 4
      %v1564 = vrot.slane %v1453, 5
      %v1565 = vsel %vm1151, %v1563, %v1564
      %v1566 = vrot.slane %v1564, 4
      %v1567 = vrot.slane %v1454, 5
      %v1568 = vsel %vm1151, %v1566, %v1567
      %v1569 = vrot.slane %v1567, 4
      %v1570 = vrot.slane %v1455, 5
      %v1571 = vsel %vm1151, %v1569, %v1570
      %v1572 = vrot.slane %v1570, 4
      %v1573 = vrot.slane %v1456, 5
      %v1574 = vsel %vm1151, %v1572, %v1573
      %v1575 = vrot.slane %v1573, 4
      %v1576 = vrot.slane %v1457, 5
      %v1577 = vsel %vm1151, %v1575, %v1576
      %v1578 = vrot.slane %v1576, 4
      %v1579 = vrot.slane %v1458, 5
      %v1580 = vsel %vm1151, %v1578, %v1579
      %v1581 = vrot.slane %v1579, 4
      %v1582 = vrot.slane %v1459, 5
      %v1583 = vsel %vm1151, %v1581, %v1582
      %v1584 = vrot.slane %v1582, 4
      %v1585 = vrot.slane %v1460, 5
      %v1586 = vsel %vm1151, %v1584, %v1585
      %v1587 = vrot.slane %v1585, 4
      %v1588 = vrot.slane %v1461, 5
      %v1589 = vsel %vm1151, %v1587, %v1588
      %v1590 = vrot.slane %v1588, 4
      %v1591 = vrot.slane %v1462, 5
      %v1592 = vsel %vm1151, %v1590, %v1591
      %v1593 = vrot.slane %v1591, 4
      %v1594 = vrot.slane %v1463, 5
      %v1595 = vsel %vm1151, %v1593, %v1594
      %v1596 = vrot.slane %v1594, 4
      %v1597 = vrot.slane %v1464, 5
      %v1598 = vsel %vm1151, %v1596, %v1597
      %v1599 = vrot.slane %v1597, 4
      %v1600 = vrot.slane %v1465, 5
      %v1601 = vsel %vm1151, %v1599, %v1600
      %v1602 = vrot.slane %v1600, 4
      %v1603 = vrot.slane %v1466, 5
      %v1604 = vsel %vm1151, %v1602, %v1603
      %v1605 = vrot.slane %v1603, 4
      %v1606 = vrot.slane %v1467, 5
      %v1607 = vsel %vm1151, %v1605, %v1606
      %v1608 = vrot.slane %v1606, 4
      %v1609 = vrot.slane %v1468, 5
      %v1610 = vsel %vm1151, %v1608, %v1609
      %v1611 = vrot.slane %v1609, 4
      %v1612 = vrot.slane %v1469, 5
      %v1613 = vsel %vm1151, %v1611, %v1612
      %v1614 = vrot.slane %v1612, 4
      %v1615 = vrot.slane %v1470, 5
      %v1616 = vsel %vm1151, %v1614, %v1615
      %v1617 = vrot.slane %v1615, 4
      %1618 = vrot.lane.b32.xlu0 %v1511, 12
      %v1619 = vpop.permute.xlu0 %1618
      %1620 = vrot.lane.b32.xlu0 %v1514, 12
      %v1621 = vpop.permute.xlu0 %1620
      %1622 = vrot.lane.b32.xlu0 %v1517, 12
      %v1623 = vpop.permute.xlu0 %1622
      %1624 = vrot.lane.b32.xlu0 %v1520, 12
      %v1625 = vpop.permute.xlu0 %1624
      %1626 = vrot.lane.b32.xlu0 %v1523, 12
      %v1627 = vpop.permute.xlu0 %1626
      %1628 = vrot.lane.b32.xlu0 %v1526, 12
      %v1629 = vpop.permute.xlu0 %1628
      %1630 = vrot.lane.b32.xlu0 %v1529, 12
      %v1631 = vpop.permute.xlu0 %1630
      %1632 = vrot.lane.b32.xlu0 %v1532, 12
      %v1633 = vpop.permute.xlu0 %1632
      %1634 = vrot.lane.b32.xlu0 %v1535, 12
      %v1635 = vpop.permute.xlu0 %1634
      %1636 = vrot.lane.b32.xlu0 %v1538, 12
      %v1637 = vpop.permute.xlu0 %1636
      %1638 = vrot.lane.b32.xlu0 %v1541, 12
      %v1639 = vpop.permute.xlu0 %1638
      %1640 = vrot.lane.b32.xlu0 %v1544, 12
      %v1641 = vpop.permute.xlu0 %1640
      %1642 = vrot.lane.b32.xlu0 %v1547, 12
      %v1643 = vpop.permute.xlu0 %1642
      %1644 = vrot.lane.b32.xlu0 %v1550, 12
      %v1645 = vpop.permute.xlu0 %1644
      %1646 = vrot.lane.b32.xlu0 %v1553, 12
      %v1647 = vpop.permute.xlu0 %1646
      %1648 = vrot.lane.b32.xlu0 %v1556, 12
      %v1649 = vpop.permute.xlu0 %1648
      %1650 = vrot.lane.b32.xlu0 %v1559, 12
      %v1651 = vpop.permute.xlu0 %1650
      %1652 = vrot.lane.b32.xlu0 %v1562, 12
      %v1653 = vpop.permute.xlu0 %1652
      %1654 = vrot.lane.b32.xlu0 %v1565, 12
      %v1655 = vpop.permute.xlu0 %1654
      %1656 = vrot.lane.b32.xlu0 %v1568, 12
      %v1657 = vpop.permute.xlu0 %1656
      %1658 = vrot.lane.b32.xlu0 %v1571, 12
      %v1659 = vpop.permute.xlu0 %1658
      %1660 = vrot.lane.b32.xlu0 %v1574, 12
      %v1661 = vpop.permute.xlu0 %1660
      %1662 = vrot.lane.b32.xlu0 %v1577, 12
      %v1663 = vpop.permute.xlu0 %1662
      %1664 = vrot.lane.b32.xlu0 %v1580, 12
      %v1665 = vpop.permute.xlu0 %1664
      %1666 = vrot.lane.b32.xlu0 %v1583, 12
      %v1667 = vpop.permute.xlu0 %1666
      %1668 = vrot.lane.b32.xlu0 %v1586, 12
      %v1669 = vpop.permute.xlu0 %1668
      %1670 = vrot.lane.b32.xlu0 %v1589, 12
      %v1671 = vpop.permute.xlu0 %1670
      %1672 = vrot.lane.b32.xlu0 %v1592, 12
      %v1673 = vpop.permute.xlu0 %1672
      %1674 = vrot.lane.b32.xlu0 %v1595, 12
      %v1675 = vpop.permute.xlu0 %1674
      %1676 = vrot.lane.b32.xlu0 %v1598, 12
      %v1677 = vpop.permute.xlu0 %1676
      %1678 = vrot.lane.b32.xlu0 %v1601, 12
      %v1679 = vpop.permute.xlu0 %1678
      %1680 = vrot.lane.b32.xlu0 %v1604, 12
      %v1681 = vpop.permute.xlu0 %1680
      %1682 = vrot.lane.b32.xlu0 %v1607, 12
      %v1683 = vpop.permute.xlu0 %1682
      %1684 = vrot.lane.b32.xlu0 %v1610, 12
      %v1685 = vpop.permute.xlu0 %1684
      %1686 = vrot.lane.b32.xlu0 %v1613, 12
      %v1687 = vpop.permute.xlu0 %1686
      %1688 = vrot.lane.b32.xlu0 %v1616, 12
      %v1689 = vpop.permute.xlu0 %1688
      %1690 = vrot.lane.b32.xlu0 %v1617, 12
      %v1691 = vpop.permute.xlu0 %1690
      %vm1729 = vcmask 126048
      %1730 = vst.msk [vmem:[#allocation2] sm:$0xf] %vm1729, %v1619
      %1731 = vst.msk [vmem:[#allocation2 + $0x4] sm:$0xf] %vm1729, %v1621
      %1732 = vst.msk [vmem:[#allocation2 + $0x8] sm:$0xf] %vm1729, %v1623
      %1733 = vst.msk [vmem:[#allocation2 + $0xc] sm:$0xf] %vm1729, %v1625
      %1734 = vst.msk [vmem:[#allocation2 + $0x10] sm:$0xf] %vm1729, %v1627
      %1735 = vst.msk [vmem:[#allocation2 + $0x14] sm:$0xf] %vm1729, %v1629
      %1736 = vst.msk [vmem:[#allocation2 + $0x18] sm:$0xf] %vm1729, %v1631
      %1737 = vst.msk [vmem:[#allocation2 + $0x1c] sm:$0xf] %vm1729, %v1633
      %1738 = vst.msk [vmem:[#allocation2 + $0x20] sm:$0xf] %vm1729, %v1635
      %1739 = vst.msk [vmem:[#allocation2 + $0x24] sm:$0xf] %vm1729, %v1637
      %1740 = vst.msk [vmem:[#allocation2 + $0x28] sm:$0xf] %vm1729, %v1639
      %1741 = vst.msk [vmem:[#allocation2 + $0x2c] sm:$0xf] %vm1729, %v1641
      %1742 = vst.msk [vmem:[#allocation2 + $0x30] sm:$0xf] %vm1729, %v1643
      %1743 = vst.msk [vmem:[#allocation2 + $0x34] sm:$0xf] %vm1729, %v1645
      %1744 = vst.msk [vmem:[#allocation2 + $0x38] sm:$0xf] %vm1729, %v1647
      %1745 = vst.msk [vmem:[#allocation2 + $0x3c] sm:$0xf] %vm1729, %v1649
      %1746 = vst.msk [vmem:[#allocation2 + $0x40] sm:$0xf] %vm1729, %v1651
      %1747 = vst.msk [vmem:[#allocation2 + $0x44] sm:$0xf] %vm1729, %v1653
      %1748 = vst.msk [vmem:[#allocation2 + $0x48] sm:$0xf] %vm1729, %v1655
      %1749 = vst.msk [vmem:[#allocation2 + $0x4c] sm:$0xf] %vm1729, %v1657
      %1750 = vst.msk [vmem:[#allocation2 + $0x50] sm:$0xf] %vm1729, %v1659
      %1751 = vst.msk [vmem:[#allocation2 + $0x54] sm:$0xf] %vm1729, %v1661
      %1752 = vst.msk [vmem:[#allocation2 + $0x58] sm:$0xf] %vm1729, %v1663
      %1753 = vst.msk [vmem:[#allocation2 + $0x5c] sm:$0xf] %vm1729, %v1665
      %1754 = vst.msk [vmem:[#allocation2 + $0x60] sm:$0xf] %vm1729, %v1667
      %1755 = vst.msk [vmem:[#allocation2 + $0x64] sm:$0xf] %vm1729, %v1669
      %1756 = vst.msk [vmem:[#allocation2 + $0x68] sm:$0xf] %vm1729, %v1671
      %1757 = vst.msk [vmem:[#allocation2 + $0x6c] sm:$0xf] %vm1729, %v1673
      %1758 = vst.msk [vmem:[#allocation2 + $0x70] sm:$0xf] %vm1729, %v1675
      %1759 = vst.msk [vmem:[#allocation2 + $0x74] sm:$0xf] %vm1729, %v1677
      %1760 = vst.msk [vmem:[#allocation2 + $0x78] sm:$0xf] %vm1729, %v1679
      %1761 = vst.msk [vmem:[#allocation2 + $0x7c] sm:$0xf] %vm1729, %v1681
      %1762 = vst.msk [vmem:[#allocation2 + $0x80] sm:$0xf] %vm1729, %v1683
      %1763 = vst.msk [vmem:[#allocation2 + $0x84] sm:$0xf] %vm1729, %v1685
      %1764 = vst.msk [vmem:[#allocation2 + $0x88] sm:$0xf] %vm1729, %v1687
      %1765 = vst.msk [vmem:[#allocation2 + $0x8c] sm:$0xf] %vm1729, %v1689
      %vm1766 = vcmask 125024
      %1767 = vst.msk [vmem:[#allocation2 + $0x90] sm:$0x7] %vm1766, %v1691
      %v1768 = vld [vmem:[%s367] sm:$0xf]
      %v1769 = vld [vmem:[%s367 + $0x4] sm:$0xf]
      %v1770 = vld [vmem:[%s367 + $0x8] sm:$0x1]
      %v1774 = vrot.slane %v1768, 5
      %v1775 = vrot.slane %v1774, 4
      %v1776 = vrot.slane %v1769, 5
      %v1777 = vsel %vm1151, %v1775, %v1776
      %v1778 = vrot.slane %v1776, 4
      %v1779 = vrot.slane %v1770, 5
      %v1780 = vsel %vm1151, %v1778, %v1779
      %1781 = vrot.lane.b32.xlu0 %v1774, 12
      %v1782 = vpop.permute.xlu0 %1781
      %1783 = vrot.lane.b32.xlu0 %v1777, 12
      %v1784 = vpop.permute.xlu0 %1783
      %1785 = vrot.lane.b32.xlu0 %v1780, 12
      %v1786 = vpop.permute.xlu0 %1785
      %vm1790 = vcmask 126051
      %1791 = vst.msk [vmem:[#allocation2 + $0x90] sm:$0x8] %vm1790, %v1782
      %1792 = vst.msk [vmem:[#allocation2 + $0x94] sm:$0xf] %vm1729, %v1784
      %1793 = vst.msk [vmem:[#allocation2 + $0x98] sm:$0xf] %vm1729, %v1786
      %v1794 = vld [vmem:[%s353 + $0x8] sm:$0xe]
      %v1795 = vld [vmem:[%s353 + $0xc] sm:$0xf]
      %v1796 = vld [vmem:[%s353 + $0x10] sm:$0xf]
      %v1797 = vld [vmem:[%s353 + $0x14] sm:$0xf]
      %v1798 = vld [vmem:[%s353 + $0x18] sm:$0xf]
      %v1799 = vld [vmem:[%s353 + $0x1c] sm:$0xf]
      %v1800 = vld [vmem:[%s353 + $0x20] sm:$0xf]
      %v1801 = vld [vmem:[%s353 + $0x24] sm:$0xf]
      %v1802 = vld [vmem:[%s353 + $0x28] sm:$0xf]
      %v1803 = vld [vmem:[%s353 + $0x2c] sm:$0xf]
      %v1804 = vld [vmem:[%s353 + $0x30] sm:$0xf]
      %v1805 = vld [vmem:[%s353 + $0x34] sm:$0xf]
      %v1806 = vld [vmem:[%s353 + $0x38] sm:$0xf]
      %v1807 = vld [vmem:[%s353 + $0x3c] sm:$0xf]
      %v1808 = vld [vmem:[%s353 + $0x40] sm:$0xf]
      %v1809 = vld [vmem:[%s353 + $0x44] sm:$0xf]
      %v1810 = vld [vmem:[%s353 + $0x48] sm:$0xf]
      %v1811 = vld [vmem:[%s353 + $0x4c] sm:$0xf]
      %v1812 = vld [vmem:[%s353 + $0x50] sm:$0xf]
      %v1813 = vld [vmem:[%s353 + $0x54] sm:$0xf]
      %v1814 = vld [vmem:[%s353 + $0x58] sm:$0xf]
      %v1815 = vld [vmem:[%s353 + $0x5c] sm:$0xf]
      %v1816 = vld [vmem:[%s353 + $0x60] sm:$0xf]
      %v1817 = vld [vmem:[%s353 + $0x64] sm:$0xf]
      %v1818 = vld [vmem:[%s353 + $0x68] sm:$0xf]
      %v1819 = vld [vmem:[%s353 + $0x6c] sm:$0xf]
      %v1820 = vld [vmem:[%s353 + $0x70] sm:$0xf]
      %v1821 = vld [vmem:[%s353 + $0x74] sm:$0xf]
      %v1822 = vld [vmem:[%s353 + $0x78] sm:$0xf]
      %v1823 = vld [vmem:[%s353 + $0x7c] sm:$0xf]
      %v1824 = vld [vmem:[%s353 + $0x80] sm:$0xf]
      %v1825 = vld [vmem:[%s353 + $0x84] sm:$0xf]
      %v1826 = vld [vmem:[%s353 + $0x88] sm:$0xf]
      %v1827 = vld [vmem:[%s353 + $0x8c] sm:$0xf]
      %v1828 = vld [vmem:[%s353 + $0x90] sm:$0xf]
      %v1829 = vld [vmem:[%s353 + $0x94] sm:$0xf]
      %v1830 = vld [vmem:[%s353 + $0x98] sm:$0xf]
      %vm1831 = vsmask.f32 2304
      %vm1832 = vsmask.f32 6416
      %vm1833 = vmor %vm1831, %vm1832
      %v1835 = vshrl.u32 %v1794, 16
      %v1837 = vrot.slane %v1835, 5
      %v1838 = vshll.u32 %v1794, 16
      %v1840 = vrot.slane %v1838, 6
      %v1841 = vor.u32 %v1837, %v1840
      %v1842 = vrot.slane %v1841, 4
      %v1844 = vshrl.u32 %v1795, 16
      %v1846 = vrot.slane %v1844, 5
      %v1847 = vshll.u32 %v1795, 16
      %v1849 = vrot.slane %v1847, 6
      %v1850 = vor.u32 %v1846, %v1849
      %v1851 = vsel %vm1833, %v1842, %v1850
      %v1852 = vrot.slane %v1850, 4
      %v1854 = vshrl.u32 %v1796, 16
      %v1856 = vrot.slane %v1854, 5
      %v1857 = vshll.u32 %v1796, 16
      %v1859 = vrot.slane %v1857, 6
      %v1860 = vor.u32 %v1856, %v1859
      %v1861 = vsel %vm1833, %v1852, %v1860
      %v1862 = vrot.slane %v1860, 4
      %v1864 = vshrl.u32 %v1797, 16
      %v1866 = vrot.slane %v1864, 5
      %v1867 = vshll.u32 %v1797, 16
      %v1869 = vrot.slane %v1867, 6
      %v1870 = vor.u32 %v1866, %v1869
      %v1871 = vsel %vm1833, %v1862, %v1870
      %v1872 = vrot.slane %v1870, 4
      %v1874 = vshrl.u32 %v1798, 16
      %v1876 = vrot.slane %v1874, 5
      %v1877 = vshll.u32 %v1798, 16
      %v1879 = vrot.slane %v1877, 6
      %v1880 = vor.u32 %v1876, %v1879
      %v1881 = vsel %vm1833, %v1872, %v1880
      %v1882 = vrot.slane %v1880, 4
      %v1884 = vshrl.u32 %v1799, 16
      %v1886 = vrot.slane %v1884, 5
      %v1887 = vshll.u32 %v1799, 16
      %v1889 = vrot.slane %v1887, 6
      %v1890 = vor.u32 %v1886, %v1889
      %v1891 = vsel %vm1833, %v1882, %v1890
      %v1892 = vrot.slane %v1890, 4
      %v1894 = vshrl.u32 %v1800, 16
      %v1896 = vrot.slane %v1894, 5
      %v1897 = vshll.u32 %v1800, 16
      %v1899 = vrot.slane %v1897, 6
      %v1900 = vor.u32 %v1896, %v1899
      %v1901 = vsel %vm1833, %v1892, %v1900
      %v1902 = vrot.slane %v1900, 4
      %v1904 = vshrl.u32 %v1801, 16
      %v1906 = vrot.slane %v1904, 5
      %v1907 = vshll.u32 %v1801, 16
      %v1909 = vrot.slane %v1907, 6
      %v1910 = vor.u32 %v1906, %v1909
      %v1911 = vsel %vm1833, %v1902, %v1910
      %v1912 = vrot.slane %v1910, 4
      %v1914 = vshrl.u32 %v1802, 16
      %v1916 = vrot.slane %v1914, 5
      %v1917 = vshll.u32 %v1802, 16
      %v1919 = vrot.slane %v1917, 6
      %v1920 = vor.u32 %v1916, %v1919
      %v1921 = vsel %vm1833, %v1912, %v1920
      %v1922 = vrot.slane %v1920, 4
      %v1924 = vshrl.u32 %v1803, 16
      %v1926 = vrot.slane %v1924, 5
      %v1927 = vshll.u32 %v1803, 16
      %v1929 = vrot.slane %v1927, 6
      %v1930 = vor.u32 %v1926, %v1929
      %v1931 = vsel %vm1833, %v1922, %v1930
      %v1932 = vrot.slane %v1930, 4
      %v1934 = vshrl.u32 %v1804, 16
      %v1936 = vrot.slane %v1934, 5
      %v1937 = vshll.u32 %v1804, 16
      %v1939 = vrot.slane %v1937, 6
      %v1940 = vor.u32 %v1936, %v1939
      %v1941 = vsel %vm1833, %v1932, %v1940
      %v1942 = vrot.slane %v1940, 4
      %v1944 = vshrl.u32 %v1805, 16
      %v1946 = vrot.slane %v1944, 5
      %v1947 = vshll.u32 %v1805, 16
      %v1949 = vrot.slane %v1947, 6
      %v1950 = vor.u32 %v1946, %v1949
      %v1951 = vsel %vm1833, %v1942, %v1950
      %v1952 = vrot.slane %v1950, 4
      %v1954 = vshrl.u32 %v1806, 16
      %v1956 = vrot.slane %v1954, 5
      %v1957 = vshll.u32 %v1806, 16
      %v1959 = vrot.slane %v1957, 6
      %v1960 = vor.u32 %v1956, %v1959
      %v1961 = vsel %vm1833, %v1952, %v1960
      %v1962 = vrot.slane %v1960, 4
      %v1964 = vshrl.u32 %v1807, 16
      %v1966 = vrot.slane %v1964, 5
      %v1967 = vshll.u32 %v1807, 16
      %v1969 = vrot.slane %v1967, 6
      %v1970 = vor.u32 %v1966, %v1969
      %v1971 = vsel %vm1833, %v1962, %v1970
      %v1972 = vrot.slane %v1970, 4
      %v1974 = vshrl.u32 %v1808, 16
      %v1976 = vrot.slane %v1974, 5
      %v1977 = vshll.u32 %v1808, 16
      %v1979 = vrot.slane %v1977, 6
      %v1980 = vor.u32 %v1976, %v1979
      %v1981 = vsel %vm1833, %v1972, %v1980
      %v1982 = vrot.slane %v1980, 4
      %v1984 = vshrl.u32 %v1809, 16
      %v1986 = vrot.slane %v1984, 5
      %v1987 = vshll.u32 %v1809, 16
      %v1989 = vrot.slane %v1987, 6
      %v1990 = vor.u32 %v1986, %v1989
      %v1991 = vsel %vm1833, %v1982, %v1990
      %v1992 = vrot.slane %v1990, 4
      %v1994 = vshrl.u32 %v1810, 16
      %v1996 = vrot.slane %v1994, 5
      %v1997 = vshll.u32 %v1810, 16
      %v1999 = vrot.slane %v1997, 6
      %v2000 = vor.u32 %v1996, %v1999
      %v2001 = vsel %vm1833, %v1992, %v2000
      %v2002 = vrot.slane %v2000, 4
      %v2004 = vshrl.u32 %v1811, 16
      %v2006 = vrot.slane %v2004, 5
      %v2007 = vshll.u32 %v1811, 16
      %v2009 = vrot.slane %v2007, 6
      %v2010 = vor.u32 %v2006, %v2009
      %v2011 = vsel %vm1833, %v2002, %v2010
      %v2012 = vrot.slane %v2010, 4
      %v2014 = vshrl.u32 %v1812, 16
      %v2016 = vrot.slane %v2014, 5
      %v2017 = vshll.u32 %v1812, 16
      %v2019 = vrot.slane %v2017, 6
      %v2020 = vor.u32 %v2016, %v2019
      %v2021 = vsel %vm1833, %v2012, %v2020
      %v2022 = vrot.slane %v2020, 4
      %v2024 = vshrl.u32 %v1813, 16
      %v2026 = vrot.slane %v2024, 5
      %v2027 = vshll.u32 %v1813, 16
      %v2029 = vrot.slane %v2027, 6
      %v2030 = vor.u32 %v2026, %v2029
      %v2031 = vsel %vm1833, %v2022, %v2030
      %v2032 = vrot.slane %v2030, 4
      %v2034 = vshrl.u32 %v1814, 16
      %v2036 = vrot.slane %v2034, 5
      %v2037 = vshll.u32 %v1814, 16
      %v2039 = vrot.slane %v2037, 6
      %v2040 = vor.u32 %v2036, %v2039
      %v2041 = vsel %vm1833, %v2032, %v2040
      %v2042 = vrot.slane %v2040, 4
      %v2044 = vshrl.u32 %v1815, 16
      %v2046 = vrot.slane %v2044, 5
      %v2047 = vshll.u32 %v1815, 16
      %v2049 = vrot.slane %v2047, 6
      %v2050 = vor.u32 %v2046, %v2049
      %v2051 = vsel %vm1833, %v2042, %v2050
      %v2052 = vrot.slane %v2050, 4
      %v2054 = vshrl.u32 %v1816, 16
      %v2056 = vrot.slane %v2054, 5
      %v2057 = vshll.u32 %v1816, 16
      %v2059 = vrot.slane %v2057, 6
      %v2060 = vor.u32 %v2056, %v2059
      %v2061 = vsel %vm1833, %v2052, %v2060
      %v2062 = vrot.slane %v2060, 4
      %v2064 = vshrl.u32 %v1817, 16
      %v2066 = vrot.slane %v2064, 5
      %v2067 = vshll.u32 %v1817, 16
      %v2069 = vrot.slane %v2067, 6
      %v2070 = vor.u32 %v2066, %v2069
      %v2071 = vsel %vm1833, %v2062, %v2070
      %v2072 = vrot.slane %v2070, 4
      %v2074 = vshrl.u32 %v1818, 16
      %v2076 = vrot.slane %v2074, 5
      %v2077 = vshll.u32 %v1818, 16
      %v2079 = vrot.slane %v2077, 6
      %v2080 = vor.u32 %v2076, %v2079
      %v2081 = vsel %vm1833, %v2072, %v2080
      %v2082 = vrot.slane %v2080, 4
      %v2084 = vshrl.u32 %v1819, 16
      %v2086 = vrot.slane %v2084, 5
      %v2087 = vshll.u32 %v1819, 16
      %v2089 = vrot.slane %v2087, 6
      %v2090 = vor.u32 %v2086, %v2089
      %v2091 = vsel %vm1833, %v2082, %v2090
      %v2092 = vrot.slane %v2090, 4
      %v2094 = vshrl.u32 %v1820, 16
      %v2096 = vrot.slane %v2094, 5
      %v2097 = vshll.u32 %v1820, 16
      %v2099 = vrot.slane %v2097, 6
      %v2100 = vor.u32 %v2096, %v2099
      %v2101 = vsel %vm1833, %v2092, %v2100
      %v2102 = vrot.slane %v2100, 4
      %v2104 = vshrl.u32 %v1821, 16
      %v2106 = vrot.slane %v2104, 5
      %v2107 = vshll.u32 %v1821, 16
      %v2109 = vrot.slane %v2107, 6
      %v2110 = vor.u32 %v2106, %v2109
      %v2111 = vsel %vm1833, %v2102, %v2110
      %v2112 = vrot.slane %v2110, 4
      %v2114 = vshrl.u32 %v1822, 16
      %v2116 = vrot.slane %v2114, 5
      %v2117 = vshll.u32 %v1822, 16
      %v2119 = vrot.slane %v2117, 6
      %v2120 = vor.u32 %v2116, %v2119
      %v2121 = vsel %vm1833, %v2112, %v2120
      %v2122 = vrot.slane %v2120, 4
      %v2124 = vshrl.u32 %v1823, 16
      %v2126 = vrot.slane %v2124, 5
      %v2127 = vshll.u32 %v1823, 16
      %v2129 = vrot.slane %v2127, 6
      %v2130 = vor.u32 %v2126, %v2129
      %v2131 = vsel %vm1833, %v2122, %v2130
      %v2132 = vrot.slane %v2130, 4
      %v2134 = vshrl.u32 %v1824, 16
      %v2136 = vrot.slane %v2134, 5
      %v2137 = vshll.u32 %v1824, 16
      %v2139 = vrot.slane %v2137, 6
      %v2140 = vor.u32 %v2136, %v2139
      %v2141 = vsel %vm1833, %v2132, %v2140
      %v2142 = vrot.slane %v2140, 4
      %v2144 = vshrl.u32 %v1825, 16
      %v2146 = vrot.slane %v2144, 5
      %v2147 = vshll.u32 %v1825, 16
      %v2149 = vrot.slane %v2147, 6
      %v2150 = vor.u32 %v2146, %v2149
      %v2151 = vsel %vm1833, %v2142, %v2150
      %v2152 = vrot.slane %v2150, 4
      %v2154 = vshrl.u32 %v1826, 16
      %v2156 = vrot.slane %v2154, 5
      %v2157 = vshll.u32 %v1826, 16
      %v2159 = vrot.slane %v2157, 6
      %v2160 = vor.u32 %v2156, %v2159
      %v2161 = vsel %vm1833, %v2152, %v2160
      %v2162 = vrot.slane %v2160, 4
      %v2164 = vshrl.u32 %v1827, 16
      %v2166 = vrot.slane %v2164, 5
      %v2167 = vshll.u32 %v1827, 16
      %v2169 = vrot.slane %v2167, 6
      %v2170 = vor.u32 %v2166, %v2169
      %v2171 = vsel %vm1833, %v2162, %v2170
      %v2172 = vrot.slane %v2170, 4
      %v2174 = vshrl.u32 %v1828, 16
      %v2176 = vrot.slane %v2174, 5
      %v2177 = vshll.u32 %v1828, 16
      %v2179 = vrot.slane %v2177, 6
      %v2180 = vor.u32 %v2176, %v2179
      %v2181 = vsel %vm1833, %v2172, %v2180
      %v2182 = vrot.slane %v2180, 4
      %v2184 = vshrl.u32 %v1829, 16
      %v2186 = vrot.slane %v2184, 5
      %v2187 = vshll.u32 %v1829, 16
      %v2189 = vrot.slane %v2187, 6
      %v2190 = vor.u32 %v2186, %v2189
      %v2191 = vsel %vm1833, %v2182, %v2190
      %v2192 = vrot.slane %v2190, 4
      %v2194 = vshrl.u32 %v1830, 16
      %v2196 = vrot.slane %v2194, 5
      %v2197 = vshll.u32 %v1830, 16
      %v2199 = vrot.slane %v2197, 6
      %v2200 = vor.u32 %v2196, %v2199
      %v2201 = vsel %vm1833, %v2192, %v2200
      %v2202 = vrot.slane %v2200, 4
      %2203 = vrot.lane.b32.xlu0 %v1851, 16
      %v2204 = vpop.permute.xlu0 %2203
      %2205 = vrot.lane.b32.xlu0 %v1861, 16
      %v2206 = vpop.permute.xlu0 %2205
      %2207 = vrot.lane.b32.xlu0 %v1871, 16
      %v2208 = vpop.permute.xlu0 %2207
      %2209 = vrot.lane.b32.xlu0 %v1881, 16
      %v2210 = vpop.permute.xlu0 %2209
      %2211 = vrot.lane.b32.xlu0 %v1891, 16
      %v2212 = vpop.permute.xlu0 %2211
      %2213 = vrot.lane.b32.xlu0 %v1901, 16
      %v2214 = vpop.permute.xlu0 %2213
      %2215 = vrot.lane.b32.xlu0 %v1911, 16
      %v2216 = vpop.permute.xlu0 %2215
      %2217 = vrot.lane.b32.xlu0 %v1921, 16
      %v2218 = vpop.permute.xlu0 %2217
      %2219 = vrot.lane.b32.xlu0 %v1931, 16
      %v2220 = vpop.permute.xlu0 %2219
      %2221 = vrot.lane.b32.xlu0 %v1941, 16
      %v2222 = vpop.permute.xlu0 %2221
      %2223 = vrot.lane.b32.xlu0 %v1951, 16
      %v2224 = vpop.permute.xlu0 %2223
      %2225 = vrot.lane.b32.xlu0 %v1961, 16
      %v2226 = vpop.permute.xlu0 %2225
      %2227 = vrot.lane.b32.xlu0 %v1971, 16
      %v2228 = vpop.permute.xlu0 %2227
      %2229 = vrot.lane.b32.xlu0 %v1981, 16
      %v2230 = vpop.permute.xlu0 %2229
      %2231 = vrot.lane.b32.xlu0 %v1991, 16
      %v2232 = vpop.permute.xlu0 %2231
      %2233 = vrot.lane.b32.xlu0 %v2001, 16
      %v2234 = vpop.permute.xlu0 %2233
      %2235 = vrot.lane.b32.xlu0 %v2011, 16
      %v2236 = vpop.permute.xlu0 %2235
      %2237 = vrot.lane.b32.xlu0 %v2021, 16
      %v2238 = vpop.permute.xlu0 %2237
      %2239 = vrot.lane.b32.xlu0 %v2031, 16
      %v2240 = vpop.permute.xlu0 %2239
      %2241 = vrot.lane.b32.xlu0 %v2041, 16
      %v2242 = vpop.permute.xlu0 %2241
      %2243 = vrot.lane.b32.xlu0 %v2051, 16
      %v2244 = vpop.permute.xlu0 %2243
      %2245 = vrot.lane.b32.xlu0 %v2061, 16
      %v2246 = vpop.permute.xlu0 %2245
      %2247 = vrot.lane.b32.xlu0 %v2071, 16
      %v2248 = vpop.permute.xlu0 %2247
      %2249 = vrot.lane.b32.xlu0 %v2081, 16
      %v2250 = vpop.permute.xlu0 %2249
      %2251 = vrot.lane.b32.xlu0 %v2091, 16
      %v2252 = vpop.permute.xlu0 %2251
      %2253 = vrot.lane.b32.xlu0 %v2101, 16
      %v2254 = vpop.permute.xlu0 %2253
      %2255 = vrot.lane.b32.xlu0 %v2111, 16
      %v2256 = vpop.permute.xlu0 %2255
      %2257 = vrot.lane.b32.xlu0 %v2121, 16
      %v2258 = vpop.permute.xlu0 %2257
      %2259 = vrot.lane.b32.xlu0 %v2131, 16
      %v2260 = vpop.permute.xlu0 %2259
      %2261 = vrot.lane.b32.xlu0 %v2141, 16
      %v2262 = vpop.permute.xlu0 %2261
      %2263 = vrot.lane.b32.xlu0 %v2151, 16
      %v2264 = vpop.permute.xlu0 %2263
      %2265 = vrot.lane.b32.xlu0 %v2161, 16
      %v2266 = vpop.permute.xlu0 %2265
      %2267 = vrot.lane.b32.xlu0 %v2171, 16
      %v2268 = vpop.permute.xlu0 %2267
      %2269 = vrot.lane.b32.xlu0 %v2181, 16
      %v2270 = vpop.permute.xlu0 %2269
      %2271 = vrot.lane.b32.xlu0 %v2191, 16
      %v2272 = vpop.permute.xlu0 %2271
      %2273 = vrot.lane.b32.xlu0 %v2201, 16
      %v2274 = vpop.permute.xlu0 %2273
      %2275 = vrot.lane.b32.xlu0 %v2202, 16
      %v2276 = vpop.permute.xlu0 %2275
      %vm2314 = vcmask 158848
      %2315 = vst.msk [vmem:[#allocation2] sm:$0xf] %vm2314, %v2204
      %2316 = vst.msk [vmem:[#allocation2 + $0x4] sm:$0xf] %vm2314, %v2206
      %2317 = vst.msk [vmem:[#allocation2 + $0x8] sm:$0xf] %vm2314, %v2208
      %2318 = vst.msk [vmem:[#allocation2 + $0xc] sm:$0xf] %vm2314, %v2210
      %2319 = vst.msk [vmem:[#allocation2 + $0x10] sm:$0xf] %vm2314, %v2212
      %2320 = vst.msk [vmem:[#allocation2 + $0x14] sm:$0xf] %vm2314, %v2214
      %2321 = vst.msk [vmem:[#allocation2 + $0x18] sm:$0xf] %vm2314, %v2216
      %2322 = vst.msk [vmem:[#allocation2 + $0x1c] sm:$0xf] %vm2314, %v2218
      %2323 = vst.msk [vmem:[#allocation2 + $0x20] sm:$0xf] %vm2314, %v2220
      %2324 = vst.msk [vmem:[#allocation2 + $0x24] sm:$0xf] %vm2314, %v2222
      %2325 = vst.msk [vmem:[#allocation2 + $0x28] sm:$0xf] %vm2314, %v2224
      %2326 = vst.msk [vmem:[#allocation2 + $0x2c] sm:$0xf] %vm2314, %v2226
      %2327 = vst.msk [vmem:[#allocation2 + $0x30] sm:$0xf] %vm2314, %v2228
      %2328 = vst.msk [vmem:[#allocation2 + $0x34] sm:$0xf] %vm2314, %v2230
      %2329 = vst.msk [vmem:[#allocation2 + $0x38] sm:$0xf] %vm2314, %v2232
      %2330 = vst.msk [vmem:[#allocation2 + $0x3c] sm:$0xf] %vm2314, %v2234
      %2331 = vst.msk [vmem:[#allocation2 + $0x40] sm:$0xf] %vm2314, %v2236
      %2332 = vst.msk [vmem:[#allocation2 + $0x44] sm:$0xf] %vm2314, %v2238
      %2333 = vst.msk [vmem:[#allocation2 + $0x48] sm:$0xf] %vm2314, %v2240
      %2334 = vst.msk [vmem:[#allocation2 + $0x4c] sm:$0xf] %vm2314, %v2242
      %2335 = vst.msk [vmem:[#allocation2 + $0x50] sm:$0xf] %vm2314, %v2244
      %2336 = vst.msk [vmem:[#allocation2 + $0x54] sm:$0xf] %vm2314, %v2246
      %2337 = vst.msk [vmem:[#allocation2 + $0x58] sm:$0xf] %vm2314, %v2248
      %2338 = vst.msk [vmem:[#allocation2 + $0x5c] sm:$0xf] %vm2314, %v2250
      %2339 = vst.msk [vmem:[#allocation2 + $0x60] sm:$0xf] %vm2314, %v2252
      %2340 = vst.msk [vmem:[#allocation2 + $0x64] sm:$0xf] %vm2314, %v2254
      %2341 = vst.msk [vmem:[#allocation2 + $0x68] sm:$0xf] %vm2314, %v2256
      %2342 = vst.msk [vmem:[#allocation2 + $0x6c] sm:$0xf] %vm2314, %v2258
      %2343 = vst.msk [vmem:[#allocation2 + $0x70] sm:$0xf] %vm2314, %v2260
      %2344 = vst.msk [vmem:[#allocation2 + $0x74] sm:$0xf] %vm2314, %v2262
      %2345 = vst.msk [vmem:[#allocation2 + $0x78] sm:$0xf] %vm2314, %v2264
      %2346 = vst.msk [vmem:[#allocation2 + $0x7c] sm:$0xf] %vm2314, %v2266
      %2347 = vst.msk [vmem:[#allocation2 + $0x80] sm:$0xf] %vm2314, %v2268
      %2348 = vst.msk [vmem:[#allocation2 + $0x84] sm:$0xf] %vm2314, %v2270
      %2349 = vst.msk [vmem:[#allocation2 + $0x88] sm:$0xf] %vm2314, %v2272
      %2350 = vst.msk [vmem:[#allocation2 + $0x8c] sm:$0xf] %vm2314, %v2274
      %vm2351 = vcmask 157824
      %vm2352 = vmand %vm2351, %vm1831
      %v2353 = vld [vmem:[#allocation2 + $0x90] sm:$0x7]
      %v2354 = vsel %vm2352, %v2276, %v2353
      %2355 = vst [vmem:[#allocation2 + $0x90] sm:$0x7] %v2354
      %v2356 = vld [vmem:[%s367] sm:$0xf]
      %v2357 = vld [vmem:[%s367 + $0x4] sm:$0xf]
      %v2358 = vld [vmem:[%s367 + $0x8] sm:$0x3]
      %v2360 = vshrl.u32 %v2356, 16
      %v2362 = vrot.slane %v2360, 5
      %v2363 = vshll.u32 %v2356, 16
      %v2365 = vrot.slane %v2363, 6
      %v2366 = vor.u32 %v2362, %v2365
      %v2367 = vrot.slane %v2366, 4
      %v2369 = vshrl.u32 %v2357, 16
      %v2371 = vrot.slane %v2369, 5
      %v2372 = vshll.u32 %v2357, 16
      %v2374 = vrot.slane %v2372, 6
      %v2375 = vor.u32 %v2371, %v2374
      %v2376 = vsel %vm1833, %v2367, %v2375
      %v2377 = vrot.slane %v2375, 4
      %v2379 = vshrl.u32 %v2358, 16
      %v2381 = vrot.slane %v2379, 5
      %v2382 = vshll.u32 %v2358, 16
      %v2384 = vrot.slane %v2382, 6
      %v2385 = vor.u32 %v2381, %v2384
      %v2386 = vsel %vm1833, %v2377, %v2385
      %2387 = vrot.lane.b32.xlu0 %v2366, 16
      %v2388 = vpop.permute.xlu0 %2387
      %2389 = vrot.lane.b32.xlu0 %v2376, 16
      %v2390 = vpop.permute.xlu0 %2389
      %2391 = vrot.lane.b32.xlu0 %v2386, 16
      %v2392 = vpop.permute.xlu0 %2391
      %vm2396 = vcmask 158850
      %vm2397 = vsmask.f32 7946
      %vm2398 = vmand %vm2396, %vm2397
      %v2399 = vld [vmem:[#allocation2 + $0x90] sm:$0xc]
      %v2400 = vsel %vm2398, %v2388, %v2399
      %2401 = vst [vmem:[#allocation2 + $0x90] sm:$0xc] %v2400
      %2402 = vst.msk [vmem:[#allocation2 + $0x94] sm:$0xf] %vm2314, %v2390
      %2403 = vst.msk [vmem:[#allocation2 + $0x98] sm:$0xf] %vm2314, %v2392
      %v2404 = vld [vmem:[%s353 + $0x8] sm:$0xc]
      %v2405 = vld [vmem:[%s353 + $0xc] sm:$0xf]
      %v2406 = vld [vmem:[%s353 + $0x10] sm:$0xf]
      %v2407 = vld [vmem:[%s353 + $0x14] sm:$0xf]
      %v2408 = vld [vmem:[%s353 + $0x18] sm:$0xf]
      %v2409 = vld [vmem:[%s353 + $0x1c] sm:$0xf]
      %v2410 = vld [vmem:[%s353 + $0x20] sm:$0xf]
      %v2411 = vld [vmem:[%s353 + $0x24] sm:$0xf]
      %v2412 = vld [vmem:[%s353 + $0x28] sm:$0xf]
      %v2413 = vld [vmem:[%s353 + $0x2c] sm:$0xf]
      %v2414 = vld [vmem:[%s353 + $0x30] sm:$0xf]
      %v2415 = vld [vmem:[%s353 + $0x34] sm:$0xf]
      %v2416 = vld [vmem:[%s353 + $0x38] sm:$0xf]
      %v2417 = vld [vmem:[%s353 + $0x3c] sm:$0xf]
      %v2418 = vld [vmem:[%s353 + $0x40] sm:$0xf]
      %v2419 = vld [vmem:[%s353 + $0x44] sm:$0xf]
      %v2420 = vld [vmem:[%s353 + $0x48] sm:$0xf]
      %v2421 = vld [vmem:[%s353 + $0x4c] sm:$0xf]
      %v2422 = vld [vmem:[%s353 + $0x50] sm:$0xf]
      %v2423 = vld [vmem:[%s353 + $0x54] sm:$0xf]
      %v2424 = vld [vmem:[%s353 + $0x58] sm:$0xf]
      %v2425 = vld [vmem:[%s353 + $0x5c] sm:$0xf]
      %v2426 = vld [vmem:[%s353 + $0x60] sm:$0xf]
      %v2427 = vld [vmem:[%s353 + $0x64] sm:$0xf]
      %v2428 = vld [vmem:[%s353 + $0x68] sm:$0xf]
      %v2429 = vld [vmem:[%s353 + $0x6c] sm:$0xf]
      %v2430 = vld [vmem:[%s353 + $0x70] sm:$0xf]
      %v2431 = vld [vmem:[%s353 + $0x74] sm:$0xf]
      %v2432 = vld [vmem:[%s353 + $0x78] sm:$0xf]
      %v2433 = vld [vmem:[%s353 + $0x7c] sm:$0xf]
      %v2434 = vld [vmem:[%s353 + $0x80] sm:$0xf]
      %v2435 = vld [vmem:[%s353 + $0x84] sm:$0xf]
      %v2436 = vld [vmem:[%s353 + $0x88] sm:$0xf]
      %v2437 = vld [vmem:[%s353 + $0x8c] sm:$0xf]
      %v2438 = vld [vmem:[%s353 + $0x90] sm:$0xf]
      %v2439 = vld [vmem:[%s353 + $0x94] sm:$0xf]
      %v2440 = vld [vmem:[%s353 + $0x98] sm:$0xf]
      %vm2478 = vcmask 1041408
      %vm2479 = vcmask 1045508
      %vm2480 = vmor %vm2478, %vm2479
      %v2481 = vrot.slane %v2404, 6
      %v2482 = vrot.slane %v2481, 4
      %v2483 = vrot.slane %v2405, 6
      %v2484 = vsel %vm2480, %v2482, %v2483
      %v2485 = vrot.slane %v2483, 4
      %v2486 = vrot.slane %v2406, 6
      %v2487 = vsel %vm2480, %v2485, %v2486
      %v2488 = vrot.slane %v2486, 4
      %v2489 = vrot.slane %v2407, 6
      %v2490 = vsel %vm2480, %v2488, %v2489
      %v2491 = vrot.slane %v2489, 4
      %v2492 = vrot.slane %v2408, 6
      %v2493 = vsel %vm2480, %v2491, %v2492
      %v2494 = vrot.slane %v2492, 4
      %v2495 = vrot.slane %v2409, 6
      %v2496 = vsel %vm2480, %v2494, %v2495
      %v2497 = vrot.slane %v2495, 4
      %v2498 = vrot.slane %v2410, 6
      %v2499 = vsel %vm2480, %v2497, %v2498
      %v2500 = vrot.slane %v2498, 4
      %v2501 = vrot.slane %v2411, 6
      %v2502 = vsel %vm2480, %v2500, %v2501
      %v2503 = vrot.slane %v2501, 4
      %v2504 = vrot.slane %v2412, 6
      %v2505 = vsel %vm2480, %v2503, %v2504
      %v2506 = vrot.slane %v2504, 4
      %v2507 = vrot.slane %v2413, 6
      %v2508 = vsel %vm2480, %v2506, %v2507
      %v2509 = vrot.slane %v2507, 4
      %v2510 = vrot.slane %v2414, 6
      %v2511 = vsel %vm2480, %v2509, %v2510
      %v2512 = vrot.slane %v2510, 4
      %v2513 = vrot.slane %v2415, 6
      %v2514 = vsel %vm2480, %v2512, %v2513
      %v2515 = vrot.slane %v2513, 4
      %v2516 = vrot.slane %v2416, 6
      %v2517 = vsel %vm2480, %v2515, %v2516
      %v2518 = vrot.slane %v2516, 4
      %v2519 = vrot.slane %v2417, 6
      %v2520 = vsel %vm2480, %v2518, %v2519
      %v2521 = vrot.slane %v2519, 4
      %v2522 = vrot.slane %v2418, 6
      %v2523 = vsel %vm2480, %v2521, %v2522
      %v2524 = vrot.slane %v2522, 4
      %v2525 = vrot.slane %v2419, 6
      %v2526 = vsel %vm2480, %v2524, %v2525
      %v2527 = vrot.slane %v2525, 4
      %v2528 = vrot.slane %v2420, 6
      %v2529 = vsel %vm2480, %v2527, %v2528
      %v2530 = vrot.slane %v2528, 4
      %v2531 = vrot.slane %v2421, 6
      %v2532 = vsel %vm2480, %v2530, %v2531
      %v2533 = vrot.slane %v2531, 4
      %v2534 = vrot.slane %v2422, 6
      %v2535 = vsel %vm2480, %v2533, %v2534
      %v2536 = vrot.slane %v2534, 4
      %v2537 = vrot.slane %v2423, 6
      %v2538 = vsel %vm2480, %v2536, %v2537
      %v2539 = vrot.slane %v2537, 4
      %v2540 = vrot.slane %v2424, 6
      %v2541 = vsel %vm2480, %v2539, %v2540
      %v2542 = vrot.slane %v2540, 4
      %v2543 = vrot.slane %v2425, 6
      %v2544 = vsel %vm2480, %v2542, %v2543
      %v2545 = vrot.slane %v2543, 4
      %v2546 = vrot.slane %v2426, 6
      %v2547 = vsel %vm2480, %v2545, %v2546
      %v2548 = vrot.slane %v2546, 4
      %v2549 = vrot.slane %v2427, 6
      %v2550 = vsel %vm2480, %v2548, %v2549
      %v2551 = vrot.slane %v2549, 4
      %v2552 = vrot.slane %v2428, 6
      %v2553 = vsel %vm2480, %v2551, %v2552
      %v2554 = vrot.slane %v2552, 4
      %v2555 = vrot.slane %v2429, 6
      %v2556 = vsel %vm2480, %v2554, %v2555
      %v2557 = vrot.slane %v2555, 4
      %v2558 = vrot.slane %v2430, 6
      %v2559 = vsel %vm2480, %v2557, %v2558
      %v2560 = vrot.slane %v2558, 4
      %v2561 = vrot.slane %v2431, 6
      %v2562 = vsel %vm2480, %v2560, %v2561
      %v2563 = vrot.slane %v2561, 4
      %v2564 = vrot.slane %v2432, 6
      %v2565 = vsel %vm2480, %v2563, %v2564
      %v2566 = vrot.slane %v2564, 4
      %v2567 = vrot.slane %v2433, 6
      %v2568 = vsel %vm2480, %v2566, %v2567
      %v2569 = vrot.slane %v2567, 4
      %v2570 = vrot.slane %v2434, 6
      %v2571 = vsel %vm2480, %v2569, %v2570
      %v2572 = vrot.slane %v2570, 4
      %v2573 = vrot.slane %v2435, 6
      %v2574 = vsel %vm2480, %v2572, %v2573
      %v2575 = vrot.slane %v2573, 4
      %v2576 = vrot.slane %v2436, 6
      %v2577 = vsel %vm2480, %v2575, %v2576
      %v2578 = vrot.slane %v2576, 4
      %v2579 = vrot.slane %v2437, 6
      %v2580 = vsel %vm2480, %v2578, %v2579
      %v2581 = vrot.slane %v2579, 4
      %v2582 = vrot.slane %v2438, 6
      %v2583 = vsel %vm2480, %v2581, %v2582
      %v2584 = vrot.slane %v2582, 4
      %v2585 = vrot.slane %v2439, 6
      %v2586 = vsel %vm2480, %v2584, %v2585
      %v2587 = vrot.slane %v2585, 4
      %v2588 = vrot.slane %v2440, 6
      %v2589 = vsel %vm2480, %v2587, %v2588
      %v2590 = vrot.slane %v2588, 4
      %2591 = vrot.lane.b32.xlu0 %v2484, 20
      %v2592 = vpop.permute.xlu0 %2591
      %2593 = vrot.lane.b32.xlu0 %v2487, 20
      %v2594 = vpop.permute.xlu0 %2593
      %2595 = vrot.lane.b32.xlu0 %v2490, 20
      %v2596 = vpop.permute.xlu0 %2595
      %2597 = vrot.lane.b32.xlu0 %v2493, 20
      %v2598 = vpop.permute.xlu0 %2597
      %2599 = vrot.lane.b32.xlu0 %v2496, 20
      %v2600 = vpop.permute.xlu0 %2599
      %2601 = vrot.lane.b32.xlu0 %v2499, 20
      %v2602 = vpop.permute.xlu0 %2601
      %2603 = vrot.lane.b32.xlu0 %v2502, 20
      %v2604 = vpop.permute.xlu0 %2603
      %2605 = vrot.lane.b32.xlu0 %v2505, 20
      %v2606 = vpop.permute.xlu0 %2605
      %2607 = vrot.lane.b32.xlu0 %v2508, 20
      %v2608 = vpop.permute.xlu0 %2607
      %2609 = vrot.lane.b32.xlu0 %v2511, 20
      %v2610 = vpop.permute.xlu0 %2609
      %2611 = vrot.lane.b32.xlu0 %v2514, 20
      %v2612 = vpop.permute.xlu0 %2611
      %2613 = vrot.lane.b32.xlu0 %v2517, 20
      %v2614 = vpop.permute.xlu0 %2613
      %2615 = vrot.lane.b32.xlu0 %v2520, 20
      %v2616 = vpop.permute.xlu0 %2615
      %2617 = vrot.lane.b32.xlu0 %v2523, 20
      %v2618 = vpop.permute.xlu0 %2617
      %2619 = vrot.lane.b32.xlu0 %v2526, 20
      %v2620 = vpop.permute.xlu0 %2619
      %2621 = vrot.lane.b32.xlu0 %v2529, 20
      %v2622 = vpop.permute.xlu0 %2621
      %2623 = vrot.lane.b32.xlu0 %v2532, 20
      %v2624 = vpop.permute.xlu0 %2623
      %2625 = vrot.lane.b32.xlu0 %v2535, 20
      %v2626 = vpop.permute.xlu0 %2625
      %2627 = vrot.lane.b32.xlu0 %v2538, 20
      %v2628 = vpop.permute.xlu0 %2627
      %2629 = vrot.lane.b32.xlu0 %v2541, 20
      %v2630 = vpop.permute.xlu0 %2629
      %2631 = vrot.lane.b32.xlu0 %v2544, 20
      %v2632 = vpop.permute.xlu0 %2631
      %2633 = vrot.lane.b32.xlu0 %v2547, 20
      %v2634 = vpop.permute.xlu0 %2633
      %2635 = vrot.lane.b32.xlu0 %v2550, 20
      %v2636 = vpop.permute.xlu0 %2635
      %2637 = vrot.lane.b32.xlu0 %v2553, 20
      %v2638 = vpop.permute.xlu0 %2637
      %2639 = vrot.lane.b32.xlu0 %v2556, 20
      %v2640 = vpop.permute.xlu0 %2639
      %2641 = vrot.lane.b32.xlu0 %v2559, 20
      %v2642 = vpop.permute.xlu0 %2641
      %2643 = vrot.lane.b32.xlu0 %v2562, 20
      %v2644 = vpop.permute.xlu0 %2643
      %2645 = vrot.lane.b32.xlu0 %v2565, 20
      %v2646 = vpop.permute.xlu0 %2645
      %2647 = vrot.lane.b32.xlu0 %v2568, 20
      %v2648 = vpop.permute.xlu0 %2647
      %2649 = vrot.lane.b32.xlu0 %v2571, 20
      %v2650 = vpop.permute.xlu0 %2649
      %2651 = vrot.lane.b32.xlu0 %v2574, 20
      %v2652 = vpop.permute.xlu0 %2651
      %2653 = vrot.lane.b32.xlu0 %v2577, 20
      %v2654 = vpop.permute.xlu0 %2653
      %2655 = vrot.lane.b32.xlu0 %v2580, 20
      %v2656 = vpop.permute.xlu0 %2655
      %2657 = vrot.lane.b32.xlu0 %v2583, 20
      %v2658 = vpop.permute.xlu0 %2657
      %2659 = vrot.lane.b32.xlu0 %v2586, 20
      %v2660 = vpop.permute.xlu0 %2659
      %2661 = vrot.lane.b32.xlu0 %v2589, 20
      %v2662 = vpop.permute.xlu0 %2661
      %2663 = vrot.lane.b32.xlu0 %v2590, 20
      %v2664 = vpop.permute.xlu0 %2663
      %vm2702 = vcmask 191648
      %2703 = vst.msk [vmem:[#allocation2] sm:$0xf] %vm2702, %v2592
      %2704 = vst.msk [vmem:[#allocation2 + $0x4] sm:$0xf] %vm2702, %v2594
      %2705 = vst.msk [vmem:[#allocation2 + $0x8] sm:$0xf] %vm2702, %v2596
      %2706 = vst.msk [vmem:[#allocation2 + $0xc] sm:$0xf] %vm2702, %v2598
      %2707 = vst.msk [vmem:[#allocation2 + $0x10] sm:$0xf] %vm2702, %v2600
      %2708 = vst.msk [vmem:[#allocation2 + $0x14] sm:$0xf] %vm2702, %v2602
      %2709 = vst.msk [vmem:[#allocation2 + $0x18] sm:$0xf] %vm2702, %v2604
      %2710 = vst.msk [vmem:[#allocation2 + $0x1c] sm:$0xf] %vm2702, %v2606
      %2711 = vst.msk [vmem:[#allocation2 + $0x20] sm:$0xf] %vm2702, %v2608
      %2712 = vst.msk [vmem:[#allocation2 + $0x24] sm:$0xf] %vm2702, %v2610
      %2713 = vst.msk [vmem:[#allocation2 + $0x28] sm:$0xf] %vm2702, %v2612
      %2714 = vst.msk [vmem:[#allocation2 + $0x2c] sm:$0xf] %vm2702, %v2614
      %2715 = vst.msk [vmem:[#allocation2 + $0x30] sm:$0xf] %vm2702, %v2616
      %2716 = vst.msk [vmem:[#allocation2 + $0x34] sm:$0xf] %vm2702, %v2618
      %2717 = vst.msk [vmem:[#allocation2 + $0x38] sm:$0xf] %vm2702, %v2620
      %2718 = vst.msk [vmem:[#allocation2 + $0x3c] sm:$0xf] %vm2702, %v2622
      %2719 = vst.msk [vmem:[#allocation2 + $0x40] sm:$0xf] %vm2702, %v2624
      %2720 = vst.msk [vmem:[#allocation2 + $0x44] sm:$0xf] %vm2702, %v2626
      %2721 = vst.msk [vmem:[#allocation2 + $0x48] sm:$0xf] %vm2702, %v2628
      %2722 = vst.msk [vmem:[#allocation2 + $0x4c] sm:$0xf] %vm2702, %v2630
      %2723 = vst.msk [vmem:[#allocation2 + $0x50] sm:$0xf] %vm2702, %v2632
      %2724 = vst.msk [vmem:[#allocation2 + $0x54] sm:$0xf] %vm2702, %v2634
      %2725 = vst.msk [vmem:[#allocation2 + $0x58] sm:$0xf] %vm2702, %v2636
      %2726 = vst.msk [vmem:[#allocation2 + $0x5c] sm:$0xf] %vm2702, %v2638
      %2727 = vst.msk [vmem:[#allocation2 + $0x60] sm:$0xf] %vm2702, %v2640
      %2728 = vst.msk [vmem:[#allocation2 + $0x64] sm:$0xf] %vm2702, %v2642
      %2729 = vst.msk [vmem:[#allocation2 + $0x68] sm:$0xf] %vm2702, %v2644
      %2730 = vst.msk [vmem:[#allocation2 + $0x6c] sm:$0xf] %vm2702, %v2646
      %2731 = vst.msk [vmem:[#allocation2 + $0x70] sm:$0xf] %vm2702, %v2648
      %2732 = vst.msk [vmem:[#allocation2 + $0x74] sm:$0xf] %vm2702, %v2650
      %2733 = vst.msk [vmem:[#allocation2 + $0x78] sm:$0xf] %vm2702, %v2652
      %2734 = vst.msk [vmem:[#allocation2 + $0x7c] sm:$0xf] %vm2702, %v2654
      %2735 = vst.msk [vmem:[#allocation2 + $0x80] sm:$0xf] %vm2702, %v2656
      %2736 = vst.msk [vmem:[#allocation2 + $0x84] sm:$0xf] %vm2702, %v2658
      %2737 = vst.msk [vmem:[#allocation2 + $0x88] sm:$0xf] %vm2702, %v2660
      %2738 = vst.msk [vmem:[#allocation2 + $0x8c] sm:$0xf] %vm2702, %v2662
      %vm2739 = vcmask 189600
      %2740 = vst.msk [vmem:[#allocation2 + $0x90] sm:$0x3] %vm2739, %v2664
      %v2741 = vld [vmem:[%s367] sm:$0xf]
      %v2742 = vld [vmem:[%s367 + $0x4] sm:$0xf]
      %v2743 = vld [vmem:[%s367 + $0x8] sm:$0x3]
      %v2747 = vrot.slane %v2741, 6
      %v2748 = vrot.slane %v2747, 4
      %v2749 = vrot.slane %v2742, 6
      %v2750 = vsel %vm2480, %v2748, %v2749
      %v2751 = vrot.slane %v2749, 4
      %v2752 = vrot.slane %v2743, 6
      %v2753 = vsel %vm2480, %v2751, %v2752
      %2754 = vrot.lane.b32.xlu0 %v2747, 20
      %v2755 = vpop.permute.xlu0 %2754
      %2756 = vrot.lane.b32.xlu0 %v2750, 20
      %v2757 = vpop.permute.xlu0 %2756
      %2758 = vrot.lane.b32.xlu0 %v2753, 20
      %v2759 = vpop.permute.xlu0 %2758
      %vm2763 = vcmask 191650
      %2764 = vst.msk [vmem:[#allocation2 + $0x90] sm:$0xc] %vm2763, %v2755
      %2765 = vst.msk [vmem:[#allocation2 + $0x94] sm:$0xf] %vm2702, %v2757
      %2766 = vst.msk [vmem:[#allocation2 + $0x98] sm:$0xf] %vm2702, %v2759
      %v2767 = vld [vmem:[%s353 + $0x10] sm:$0xc]
      %v2768 = vld [vmem:[%s353 + $0x14] sm:$0xf]
      %v2769 = vld [vmem:[%s353 + $0x18] sm:$0xf]
      %v2770 = vld [vmem:[%s353 + $0x1c] sm:$0xf]
      %v2771 = vld [vmem:[%s353 + $0x20] sm:$0xf]
      %v2772 = vld [vmem:[%s353 + $0x24] sm:$0xf]
      %v2773 = vld [vmem:[%s353 + $0x28] sm:$0xf]
      %v2774 = vld [vmem:[%s353 + $0x2c] sm:$0xf]
      %v2775 = vld [vmem:[%s353 + $0x30] sm:$0xf]
      %v2776 = vld [vmem:[%s353 + $0x34] sm:$0xf]
      %v2777 = vld [vmem:[%s353 + $0x38] sm:$0xf]
      %v2778 = vld [vmem:[%s353 + $0x3c] sm:$0xf]
      %v2779 = vld [vmem:[%s353 + $0x40] sm:$0xf]
      %v2780 = vld [vmem:[%s353 + $0x44] sm:$0xf]
      %v2781 = vld [vmem:[%s353 + $0x48] sm:$0xf]
      %v2782 = vld [vmem:[%s353 + $0x4c] sm:$0xf]
      %v2783 = vld [vmem:[%s353 + $0x50] sm:$0xf]
      %v2784 = vld [vmem:[%s353 + $0x54] sm:$0xf]
      %v2785 = vld [vmem:[%s353 + $0x58] sm:$0xf]
      %v2786 = vld [vmem:[%s353 + $0x5c] sm:$0xf]
      %v2787 = vld [vmem:[%s353 + $0x60] sm:$0xf]
      %v2788 = vld [vmem:[%s353 + $0x64] sm:$0xf]
      %v2789 = vld [vmem:[%s353 + $0x68] sm:$0xf]
      %v2790 = vld [vmem:[%s353 + $0x6c] sm:$0xf]
      %v2791 = vld [vmem:[%s353 + $0x70] sm:$0xf]
      %v2792 = vld [vmem:[%s353 + $0x74] sm:$0xf]
      %v2793 = vld [vmem:[%s353 + $0x78] sm:$0xf]
      %v2794 = vld [vmem:[%s353 + $0x7c] sm:$0xf]
      %v2795 = vld [vmem:[%s353 + $0x80] sm:$0xf]
      %v2796 = vld [vmem:[%s353 + $0x84] sm:$0xf]
      %v2797 = vld [vmem:[%s353 + $0x88] sm:$0xf]
      %v2798 = vld [vmem:[%s353 + $0x8c] sm:$0xf]
      %v2799 = vld [vmem:[%s353 + $0x90] sm:$0xf]
      %v2800 = vld [vmem:[%s353 + $0x94] sm:$0xf]
      %v2801 = vld [vmem:[%s353 + $0x98] sm:$0xf]
      %v2837 = vrot.slane %v2767, 6
      %v2838 = vrot.slane %v2837, 4
      %v2839 = vrot.slane %v2768, 6
      %v2840 = vsel %vm2480, %v2838, %v2839
      %v2841 = vrot.slane %v2839, 4
      %v2842 = vrot.slane %v2769, 6
      %v2843 = vsel %vm2480, %v2841, %v2842
      %v2844 = vrot.slane %v2842, 4
      %v2845 = vrot.slane %v2770, 6
      %v2846 = vsel %vm2480, %v2844, %v2845
      %v2847 = vrot.slane %v2845, 4
      %v2848 = vrot.slane %v2771, 6
      %v2849 = vsel %vm2480, %v2847, %v2848
      %v2850 = vrot.slane %v2848, 4
      %v2851 = vrot.slane %v2772, 6
      %v2852 = vsel %vm2480, %v2850, %v2851
      %v2853 = vrot.slane %v2851, 4
      %v2854 = vrot.slane %v2773, 6
      %v2855 = vsel %vm2480, %v2853, %v2854
      %v2856 = vrot.slane %v2854, 4
      %v2857 = vrot.slane %v2774, 6
      %v2858 = vsel %vm2480, %v2856, %v2857
      %v2859 = vrot.slane %v2857, 4
      %v2860 = vrot.slane %v2775, 6
      %v2861 = vsel %vm2480, %v2859, %v2860
      %v2862 = vrot.slane %v2860, 4
      %v2863 = vrot.slane %v2776, 6
      %v2864 = vsel %vm2480, %v2862, %v2863
      %v2865 = vrot.slane %v2863, 4
      %v2866 = vrot.slane %v2777, 6
      %v2867 = vsel %vm2480, %v2865, %v2866
      %v2868 = vrot.slane %v2866, 4
      %v2869 = vrot.slane %v2778, 6
      %v2870 = vsel %vm2480, %v2868, %v2869
      %v2871 = vrot.slane %v2869, 4
      %v2872 = vrot.slane %v2779, 6
      %v2873 = vsel %vm2480, %v2871, %v2872
      %v2874 = vrot.slane %v2872, 4
      %v2875 = vrot.slane %v2780, 6
      %v2876 = vsel %vm2480, %v2874, %v2875
      %v2877 = vrot.slane %v2875, 4
      %v2878 = vrot.slane %v2781, 6
      %v2879 = vsel %vm2480, %v2877, %v2878
      %v2880 = vrot.slane %v2878, 4
      %v2881 = vrot.slane %v2782, 6
      %v2882 = vsel %vm2480, %v2880, %v2881
      %v2883 = vrot.slane %v2881, 4
      %v2884 = vrot.slane %v2783, 6
      %v2885 = vsel %vm2480, %v2883, %v2884
      %v2886 = vrot.slane %v2884, 4
      %v2887 = vrot.slane %v2784, 6
      %v2888 = vsel %vm2480, %v2886, %v2887
      %v2889 = vrot.slane %v2887, 4
      %v2890 = vrot.slane %v2785, 6
      %v2891 = vsel %vm2480, %v2889, %v2890
      %v2892 = vrot.slane %v2890, 4
      %v2893 = vrot.slane %v2786, 6
      %v2894 = vsel %vm2480, %v2892, %v2893
      %v2895 = vrot.slane %v2893, 4
      %v2896 = vrot.slane %v2787, 6
      %v2897 = vsel %vm2480, %v2895, %v2896
      %v2898 = vrot.slane %v2896, 4
      %v2899 = vrot.slane %v2788, 6
      %v2900 = vsel %vm2480, %v2898, %v2899
      %v2901 = vrot.slane %v2899, 4
      %v2902 = vrot.slane %v2789, 6
      %v2903 = vsel %vm2480, %v2901, %v2902
      %v2904 = vrot.slane %v2902, 4
      %v2905 = vrot.slane %v2790, 6
      %v2906 = vsel %vm2480, %v2904, %v2905
      %v2907 = vrot.slane %v2905, 4
      %v2908 = vrot.slane %v2791, 6
      %v2909 = vsel %vm2480, %v2907, %v2908
      %v2910 = vrot.slane %v2908, 4
      %v2911 = vrot.slane %v2792, 6
      %v2912 = vsel %vm2480, %v2910, %v2911
      %v2913 = vrot.slane %v2911, 4
      %v2914 = vrot.slane %v2793, 6
      %v2915 = vsel %vm2480, %v2913, %v2914
      %v2916 = vrot.slane %v2914, 4
      %v2917 = vrot.slane %v2794, 6
      %v2918 = vsel %vm2480, %v2916, %v2917
      %v2919 = vrot.slane %v2917, 4
      %v2920 = vrot.slane %v2795, 6
      %v2921 = vsel %vm2480, %v2919, %v2920
      %v2922 = vrot.slane %v2920, 4
      %v2923 = vrot.slane %v2796, 6
      %v2924 = vsel %vm2480, %v2922, %v2923
      %v2925 = vrot.slane %v2923, 4
      %v2926 = vrot.slane %v2797, 6
      %v2927 = vsel %vm2480, %v2925, %v2926
      %v2928 = vrot.slane %v2926, 4
      %v2929 = vrot.slane %v2798, 6
      %v2930 = vsel %vm2480, %v2928, %v2929
      %v2931 = vrot.slane %v2929, 4
      %v2932 = vrot.slane %v2799, 6
      %v2933 = vsel %vm2480, %v2931, %v2932
      %v2934 = vrot.slane %v2932, 4
      %v2935 = vrot.slane %v2800, 6
      %v2936 = vsel %vm2480, %v2934, %v2935
      %v2937 = vrot.slane %v2935, 4
      %v2938 = vrot.slane %v2801, 6
      %v2939 = vsel %vm2480, %v2937, %v2938
      %v2940 = vrot.slane %v2938, 4
      %2941 = vrot.lane.b32.xlu0 %v2840, 24
      %v2942 = vpop.permute.xlu0 %2941
      %2943 = vrot.lane.b32.xlu0 %v2843, 24
      %v2944 = vpop.permute.xlu0 %2943
      %2945 = vrot.lane.b32.xlu0 %v2846, 24
      %v2946 = vpop.permute.xlu0 %2945
      %2947 = vrot.lane.b32.xlu0 %v2849, 24
      %v2948 = vpop.permute.xlu0 %2947
      %2949 = vrot.lane.b32.xlu0 %v2852, 24
      %v2950 = vpop.permute.xlu0 %2949
      %2951 = vrot.lane.b32.xlu0 %v2855, 24
      %v2952 = vpop.permute.xlu0 %2951
      %2953 = vrot.lane.b32.xlu0 %v2858, 24
      %v2954 = vpop.permute.xlu0 %2953
      %2955 = vrot.lane.b32.xlu0 %v2861, 24
      %v2956 = vpop.permute.xlu0 %2955
      %2957 = vrot.lane.b32.xlu0 %v2864, 24
      %v2958 = vpop.permute.xlu0 %2957
      %2959 = vrot.lane.b32.xlu0 %v2867, 24
      %v2960 = vpop.permute.xlu0 %2959
      %2961 = vrot.lane.b32.xlu0 %v2870, 24
      %v2962 = vpop.permute.xlu0 %2961
      %2963 = vrot.lane.b32.xlu0 %v2873, 24
      %v2964 = vpop.permute.xlu0 %2963
      %2965 = vrot.lane.b32.xlu0 %v2876, 24
      %v2966 = vpop.permute.xlu0 %2965
      %2967 = vrot.lane.b32.xlu0 %v2879, 24
      %v2968 = vpop.permute.xlu0 %2967
      %2969 = vrot.lane.b32.xlu0 %v2882, 24
      %v2970 = vpop.permute.xlu0 %2969
      %2971 = vrot.lane.b32.xlu0 %v2885, 24
      %v2972 = vpop.permute.xlu0 %2971
      %2973 = vrot.lane.b32.xlu0 %v2888, 24
      %v2974 = vpop.permute.xlu0 %2973
      %2975 = vrot.lane.b32.xlu0 %v2891, 24
      %v2976 = vpop.permute.xlu0 %2975
      %2977 = vrot.lane.b32.xlu0 %v2894, 24
      %v2978 = vpop.permute.xlu0 %2977
      %2979 = vrot.lane.b32.xlu0 %v2897, 24
      %v2980 = vpop.permute.xlu0 %2979
      %2981 = vrot.lane.b32.xlu0 %v2900, 24
      %v2982 = vpop.permute.xlu0 %2981
      %2983 = vrot.lane.b32.xlu0 %v2903, 24
      %v2984 = vpop.permute.xlu0 %2983
      %2985 = vrot.lane.b32.xlu0 %v2906, 24
      %v2986 = vpop.permute.xlu0 %2985
      %2987 = vrot.lane.b32.xlu0 %v2909, 24
      %v2988 = vpop.permute.xlu0 %2987
      %2989 = vrot.lane.b32.xlu0 %v2912, 24
      %v2990 = vpop.permute.xlu0 %2989
      %2991 = vrot.lane.b32.xlu0 %v2915, 24
      %v2992 = vpop.permute.xlu0 %2991
      %2993 = vrot.lane.b32.xlu0 %v2918, 24
      %v2994 = vpop.permute.xlu0 %2993
      %2995 = vrot.lane.b32.xlu0 %v2921, 24
      %v2996 = vpop.permute.xlu0 %2995
      %2997 = vrot.lane.b32.xlu0 %v2924, 24
      %v2998 = vpop.permute.xlu0 %2997
      %2999 = vrot.lane.b32.xlu0 %v2927, 24
      %v3000 = vpop.permute.xlu0 %2999
      %3001 = vrot.lane.b32.xlu0 %v2930, 24
      %v3002 = vpop.permute.xlu0 %3001
      %3003 = vrot.lane.b32.xlu0 %v2933, 24
      %v3004 = vpop.permute.xlu0 %3003
      %3005 = vrot.lane.b32.xlu0 %v2936, 24
      %v3006 = vpop.permute.xlu0 %3005
      %3007 = vrot.lane.b32.xlu0 %v2939, 24
      %v3008 = vpop.permute.xlu0 %3007
      %3009 = vrot.lane.b32.xlu0 %v2940, 24
      %v3010 = vpop.permute.xlu0 %3009
      %vm3046 = vcmask 224448
      %3047 = vst.msk [vmem:[#allocation2] sm:$0xf] %vm3046, %v2942
      %3048 = vst.msk [vmem:[#allocation2 + $0x4] sm:$0xf] %vm3046, %v2944
      %3049 = vst.msk [vmem:[#allocation2 + $0x8] sm:$0xf] %vm3046, %v2946
      %3050 = vst.msk [vmem:[#allocation2 + $0xc] sm:$0xf] %vm3046, %v2948
      %3051 = vst.msk [vmem:[#allocation2 + $0x10] sm:$0xf] %vm3046, %v2950
      %3052 = vst.msk [vmem:[#allocation2 + $0x14] sm:$0xf] %vm3046, %v2952
      %3053 = vst.msk [vmem:[#allocation2 + $0x18] sm:$0xf] %vm3046, %v2954
      %3054 = vst.msk [vmem:[#allocation2 + $0x1c] sm:$0xf] %vm3046, %v2956
      %3055 = vst.msk [vmem:[#allocation2 + $0x20] sm:$0xf] %vm3046, %v2958
      %3056 = vst.msk [vmem:[#allocation2 + $0x24] sm:$0xf] %vm3046, %v2960
      %3057 = vst.msk [vmem:[#allocation2 + $0x28] sm:$0xf] %vm3046, %v2962
      %3058 = vst.msk [vmem:[#allocation2 + $0x2c] sm:$0xf] %vm3046, %v2964
      %3059 = vst.msk [vmem:[#allocation2 + $0x30] sm:$0xf] %vm3046, %v2966
      %3060 = vst.msk [vmem:[#allocation2 + $0x34] sm:$0xf] %vm3046, %v2968
      %3061 = vst.msk [vmem:[#allocation2 + $0x38] sm:$0xf] %vm3046, %v2970
      %3062 = vst.msk [vmem:[#allocation2 + $0x3c] sm:$0xf] %vm3046, %v2972
      %3063 = vst.msk [vmem:[#allocation2 + $0x40] sm:$0xf] %vm3046, %v2974
      %3064 = vst.msk [vmem:[#allocation2 + $0x44] sm:$0xf] %vm3046, %v2976
      %3065 = vst.msk [vmem:[#allocation2 + $0x48] sm:$0xf] %vm3046, %v2978
      %3066 = vst.msk [vmem:[#allocation2 + $0x4c] sm:$0xf] %vm3046, %v2980
      %3067 = vst.msk [vmem:[#allocation2 + $0x50] sm:$0xf] %vm3046, %v2982
      %3068 = vst.msk [vmem:[#allocation2 + $0x54] sm:$0xf] %vm3046, %v2984
      %3069 = vst.msk [vmem:[#allocation2 + $0x58] sm:$0xf] %vm3046, %v2986
      %3070 = vst.msk [vmem:[#allocation2 + $0x5c] sm:$0xf] %vm3046, %v2988
      %3071 = vst.msk [vmem:[#allocation2 + $0x60] sm:$0xf] %vm3046, %v2990
      %3072 = vst.msk [vmem:[#allocation2 + $0x64] sm:$0xf] %vm3046, %v2992
      %3073 = vst.msk [vmem:[#allocation2 + $0x68] sm:$0xf] %vm3046, %v2994
      %3074 = vst.msk [vmem:[#allocation2 + $0x6c] sm:$0xf] %vm3046, %v2996
      %3075 = vst.msk [vmem:[#allocation2 + $0x70] sm:$0xf] %vm3046, %v2998
      %3076 = vst.msk [vmem:[#allocation2 + $0x74] sm:$0xf] %vm3046, %v3000
      %3077 = vst.msk [vmem:[#allocation2 + $0x78] sm:$0xf] %vm3046, %v3002
      %3078 = vst.msk [vmem:[#allocation2 + $0x7c] sm:$0xf] %vm3046, %v3004
      %3079 = vst.msk [vmem:[#allocation2 + $0x80] sm:$0xf] %vm3046, %v3006
      %3080 = vst.msk [vmem:[#allocation2 + $0x84] sm:$0xf] %vm3046, %v3008
      %vm3081 = vcmask 222400
      %3082 = vst.msk [vmem:[#allocation2 + $0x88] sm:$0x3] %vm3081, %v3010
      %v3083 = vld [vmem:[%s367] sm:$0xf]
      %v3084 = vld [vmem:[%s367 + $0x4] sm:$0xf]
      %v3085 = vld [vmem:[%s367 + $0x8] sm:$0xf]
      %v3086 = vld [vmem:[%s367 + $0xc] sm:$0xf]
      %v3087 = vld [vmem:[%s367 + $0x10] sm:$0x3]
      %v3093 = vrot.slane %v3083, 6
      %v3094 = vrot.slane %v3093, 4
      %v3095 = vrot.slane %v3084, 6
      %v3096 = vsel %vm2480, %v3094, %v3095
      %v3097 = vrot.slane %v3095, 4
      %v3098 = vrot.slane %v3085, 6
      %v3099 = vsel %vm2480, %v3097, %v3098
      %v3100 = vrot.slane %v3098, 4
      %v3101 = vrot.slane %v3086, 6
      %v3102 = vsel %vm2480, %v3100, %v3101
      %v3103 = vrot.slane %v3101, 4
      %v3104 = vrot.slane %v3087, 6
      %v3105 = vsel %vm2480, %v3103, %v3104
      %3106 = vrot.lane.b32.xlu0 %v3093, 24
      %v3107 = vpop.permute.xlu0 %3106
      %3108 = vrot.lane.b32.xlu0 %v3096, 24
      %v3109 = vpop.permute.xlu0 %3108
      %3110 = vrot.lane.b32.xlu0 %v3099, 24
      %v3111 = vpop.permute.xlu0 %3110
      %3112 = vrot.lane.b32.xlu0 %v3102, 24
      %v3113 = vpop.permute.xlu0 %3112
      %3114 = vrot.lane.b32.xlu0 %v3105, 24
      %v3115 = vpop.permute.xlu0 %3114
      %vm3121 = vcmask 224450
      %3122 = vst.msk [vmem:[#allocation2 + $0x88] sm:$0xc] %vm3121, %v3107
      %3123 = vst.msk [vmem:[#allocation2 + $0x8c] sm:$0xf] %vm3046, %v3109
      %3124 = vst.msk [vmem:[#allocation2 + $0x90] sm:$0xf] %vm3046, %v3111
      %3125 = vst.msk [vmem:[#allocation2 + $0x94] sm:$0xf] %vm3046, %v3113
      %3126 = vst.msk [vmem:[#allocation2 + $0x98] sm:$0xf] %vm3046, %v3115
      %v3127 = vld [vmem:[%s353 + $0x10] sm:$0xc]
      %v3128 = vld [vmem:[%s353 + $0x14] sm:$0xf]
      %v3129 = vld [vmem:[%s353 + $0x18] sm:$0xf]
      %v3130 = vld [vmem:[%s353 + $0x1c] sm:$0xf]
      %v3131 = vld [vmem:[%s353 + $0x20] sm:$0xf]
      %v3132 = vld [vmem:[%s353 + $0x24] sm:$0xf]
      %v3133 = vld [vmem:[%s353 + $0x28] sm:$0xf]
      %v3134 = vld [vmem:[%s353 + $0x2c] sm:$0xf]
      %v3135 = vld [vmem:[%s353 + $0x30] sm:$0xf]
      %v3136 = vld [vmem:[%s353 + $0x34] sm:$0xf]
      %v3137 = vld [vmem:[%s353 + $0x38] sm:$0xf]
      %v3138 = vld [vmem:[%s353 + $0x3c] sm:$0xf]
      %v3139 = vld [vmem:[%s353 + $0x40] sm:$0xf]
      %v3140 = vld [vmem:[%s353 + $0x44] sm:$0xf]
      %v3141 = vld [vmem:[%s353 + $0x48] sm:$0xf]
      %v3142 = vld [vmem:[%s353 + $0x4c] sm:$0xf]
      %v3143 = vld [vmem:[%s353 + $0x50] sm:$0xf]
      %v3144 = vld [vmem:[%s353 + $0x54] sm:$0xf]
      %v3145 = vld [vmem:[%s353 + $0x58] sm:$0xf]
      %v3146 = vld [vmem:[%s353 + $0x5c] sm:$0xf]
      %v3147 = vld [vmem:[%s353 + $0x60] sm:$0xf]
      %v3148 = vld [vmem:[%s353 + $0x64] sm:$0xf]
      %v3149 = vld [vmem:[%s353 + $0x68] sm:$0xf]
      %v3150 = vld [vmem:[%s353 + $0x6c] sm:$0xf]
      %v3151 = vld [vmem:[%s353 + $0x70] sm:$0xf]
      %v3152 = vld [vmem:[%s353 + $0x74] sm:$0xf]
      %v3153 = vld [vmem:[%s353 + $0x78] sm:$0xf]
      %v3154 = vld [vmem:[%s353 + $0x7c] sm:$0xf]
      %v3155 = vld [vmem:[%s353 + $0x80] sm:$0xf]
      %v3156 = vld [vmem:[%s353 + $0x84] sm:$0xf]
      %v3157 = vld [vmem:[%s353 + $0x88] sm:$0xf]
      %v3158 = vld [vmem:[%s353 + $0x8c] sm:$0xf]
      %v3159 = vld [vmem:[%s353 + $0x90] sm:$0xf]
      %v3160 = vld [vmem:[%s353 + $0x94] sm:$0xf]
      %v3161 = vld [vmem:[%s353 + $0x98] sm:$0xf]
      %vm3162 = vsmask.f32 1280
      %vm3163 = vsmask.f32 5392
      %vm3164 = vmor %vm3162, %vm3163
      %v3166 = vshrl.u32 %v3127, 16
      %v3168 = vrot.slane %v3166, 6
      %v3169 = vshll.u32 %v3127, 16
      %v3171 = vrot.slane %v3169, 7
      %v3172 = vor.u32 %v3168, %v3171
      %v3173 = vrot.slane %v3172, 4
      %v3175 = vshrl.u32 %v3128, 16
      %v3177 = vrot.slane %v3175, 6
      %v3178 = vshll.u32 %v3128, 16
      %v3180 = vrot.slane %v3178, 7
      %v3181 = vor.u32 %v3177, %v3180
      %v3182 = vsel %vm3164, %v3173, %v3181
      %v3183 = vrot.slane %v3181, 4
      %v3185 = vshrl.u32 %v3129, 16
      %v3187 = vrot.slane %v3185, 6
      %v3188 = vshll.u32 %v3129, 16
      %v3190 = vrot.slane %v3188, 7
      %v3191 = vor.u32 %v3187, %v3190
      %v3192 = vsel %vm3164, %v3183, %v3191
      %v3193 = vrot.slane %v3191, 4
      %v3195 = vshrl.u32 %v3130, 16
      %v3197 = vrot.slane %v3195, 6
      %v3198 = vshll.u32 %v3130, 16
      %v3200 = vrot.slane %v3198, 7
      %v3201 = vor.u32 %v3197, %v3200
      %v3202 = vsel %vm3164, %v3193, %v3201
      %v3203 = vrot.slane %v3201, 4
      %v3205 = vshrl.u32 %v3131, 16
      %v3207 = vrot.slane %v3205, 6
      %v3208 = vshll.u32 %v3131, 16
      %v3210 = vrot.slane %v3208, 7
      %v3211 = vor.u32 %v3207, %v3210
      %v3212 = vsel %vm3164, %v3203, %v3211
      %v3213 = vrot.slane %v3211, 4
      %v3215 = vshrl.u32 %v3132, 16
      %v3217 = vrot.slane %v3215, 6
      %v3218 = vshll.u32 %v3132, 16
      %v3220 = vrot.slane %v3218, 7
      %v3221 = vor.u32 %v3217, %v3220
      %v3222 = vsel %vm3164, %v3213, %v3221
      %v3223 = vrot.slane %v3221, 4
      %v3225 = vshrl.u32 %v3133, 16
      %v3227 = vrot.slane %v3225, 6
      %v3228 = vshll.u32 %v3133, 16
      %v3230 = vrot.slane %v3228, 7
      %v3231 = vor.u32 %v3227, %v3230
      %v3232 = vsel %vm3164, %v3223, %v3231
      %v3233 = vrot.slane %v3231, 4
      %v3235 = vshrl.u32 %v3134, 16
      %v3237 = vrot.slane %v3235, 6
      %v3238 = vshll.u32 %v3134, 16
      %v3240 = vrot.slane %v3238, 7
      %v3241 = vor.u32 %v3237, %v3240
      %v3242 = vsel %vm3164, %v3233, %v3241
      %v3243 = vrot.slane %v3241, 4
      %v3245 = vshrl.u32 %v3135, 16
      %v3247 = vrot.slane %v3245, 6
      %v3248 = vshll.u32 %v3135, 16
      %v3250 = vrot.slane %v3248, 7
      %v3251 = vor.u32 %v3247, %v3250
      %v3252 = vsel %vm3164, %v3243, %v3251
      %v3253 = vrot.slane %v3251, 4
      %v3255 = vshrl.u32 %v3136, 16
      %v3257 = vrot.slane %v3255, 6
      %v3258 = vshll.u32 %v3136, 16
      %v3260 = vrot.slane %v3258, 7
      %v3261 = vor.u32 %v3257, %v3260
      %v3262 = vsel %vm3164, %v3253, %v3261
      %v3263 = vrot.slane %v3261, 4
      %v3265 = vshrl.u32 %v3137, 16
      %v3267 = vrot.slane %v3265, 6
      %v3268 = vshll.u32 %v3137, 16
      %v3270 = vrot.slane %v3268, 7
      %v3271 = vor.u32 %v3267, %v3270
      %v3272 = vsel %vm3164, %v3263, %v3271
      %v3273 = vrot.slane %v3271, 4
      %v3275 = vshrl.u32 %v3138, 16
      %v3277 = vrot.slane %v3275, 6
      %v3278 = vshll.u32 %v3138, 16
      %v3280 = vrot.slane %v3278, 7
      %v3281 = vor.u32 %v3277, %v3280
      %v3282 = vsel %vm3164, %v3273, %v3281
      %v3283 = vrot.slane %v3281, 4
      %v3285 = vshrl.u32 %v3139, 16
      %v3287 = vrot.slane %v3285, 6
      %v3288 = vshll.u32 %v3139, 16
      %v3290 = vrot.slane %v3288, 7
      %v3291 = vor.u32 %v3287, %v3290
      %v3292 = vsel %vm3164, %v3283, %v3291
      %v3293 = vrot.slane %v3291, 4
      %v3295 = vshrl.u32 %v3140, 16
      %v3297 = vrot.slane %v3295, 6
      %v3298 = vshll.u32 %v3140, 16
      %v3300 = vrot.slane %v3298, 7
      %v3301 = vor.u32 %v3297, %v3300
      %v3302 = vsel %vm3164, %v3293, %v3301
      %v3303 = vrot.slane %v3301, 4
      %v3305 = vshrl.u32 %v3141, 16
      %v3307 = vrot.slane %v3305, 6
      %v3308 = vshll.u32 %v3141, 16
      %v3310 = vrot.slane %v3308, 7
      %v3311 = vor.u32 %v3307, %v3310
      %v3312 = vsel %vm3164, %v3303, %v3311
      %v3313 = vrot.slane %v3311, 4
      %v3315 = vshrl.u32 %v3142, 16
      %v3317 = vrot.slane %v3315, 6
      %v3318 = vshll.u32 %v3142, 16
      %v3320 = vrot.slane %v3318, 7
      %v3321 = vor.u32 %v3317, %v3320
      %v3322 = vsel %vm3164, %v3313, %v3321
      %v3323 = vrot.slane %v3321, 4
      %v3325 = vshrl.u32 %v3143, 16
      %v3327 = vrot.slane %v3325, 6
      %v3328 = vshll.u32 %v3143, 16
      %v3330 = vrot.slane %v3328, 7
      %v3331 = vor.u32 %v3327, %v3330
      %v3332 = vsel %vm3164, %v3323, %v3331
      %v3333 = vrot.slane %v3331, 4
      %v3335 = vshrl.u32 %v3144, 16
      %v3337 = vrot.slane %v3335, 6
      %v3338 = vshll.u32 %v3144, 16
      %v3340 = vrot.slane %v3338, 7
      %v3341 = vor.u32 %v3337, %v3340
      %v3342 = vsel %vm3164, %v3333, %v3341
      %v3343 = vrot.slane %v3341, 4
      %v3345 = vshrl.u32 %v3145, 16
      %v3347 = vrot.slane %v3345, 6
      %v3348 = vshll.u32 %v3145, 16
      %v3350 = vrot.slane %v3348, 7
      %v3351 = vor.u32 %v3347, %v3350
      %v3352 = vsel %vm3164, %v3343, %v3351
      %v3353 = vrot.slane %v3351, 4
      %v3355 = vshrl.u32 %v3146, 16
      %v3357 = vrot.slane %v3355, 6
      %v3358 = vshll.u32 %v3146, 16
      %v3360 = vrot.slane %v3358, 7
      %v3361 = vor.u32 %v3357, %v3360
      %v3362 = vsel %vm3164, %v3353, %v3361
      %v3363 = vrot.slane %v3361, 4
      %v3365 = vshrl.u32 %v3147, 16
      %v3367 = vrot.slane %v3365, 6
      %v3368 = vshll.u32 %v3147, 16
      %v3370 = vrot.slane %v3368, 7
      %v3371 = vor.u32 %v3367, %v3370
      %v3372 = vsel %vm3164, %v3363, %v3371
      %v3373 = vrot.slane %v3371, 4
      %v3375 = vshrl.u32 %v3148, 16
      %v3377 = vrot.slane %v3375, 6
      %v3378 = vshll.u32 %v3148, 16
      %v3380 = vrot.slane %v3378, 7
      %v3381 = vor.u32 %v3377, %v3380
      %v3382 = vsel %vm3164, %v3373, %v3381
      %v3383 = vrot.slane %v3381, 4
      %v3385 = vshrl.u32 %v3149, 16
      %v3387 = vrot.slane %v3385, 6
      %v3388 = vshll.u32 %v3149, 16
      %v3390 = vrot.slane %v3388, 7
      %v3391 = vor.u32 %v3387, %v3390
      %v3392 = vsel %vm3164, %v3383, %v3391
      %v3393 = vrot.slane %v3391, 4
      %v3395 = vshrl.u32 %v3150, 16
      %v3397 = vrot.slane %v3395, 6
      %v3398 = vshll.u32 %v3150, 16
      %v3400 = vrot.slane %v3398, 7
      %v3401 = vor.u32 %v3397, %v3400
      %v3402 = vsel %vm3164, %v3393, %v3401
      %v3403 = vrot.slane %v3401, 4
      %v3405 = vshrl.u32 %v3151, 16
      %v3407 = vrot.slane %v3405, 6
      %v3408 = vshll.u32 %v3151, 16
      %v3410 = vrot.slane %v3408, 7
      %v3411 = vor.u32 %v3407, %v3410
      %v3412 = vsel %vm3164, %v3403, %v3411
      %v3413 = vrot.slane %v3411, 4
      %v3415 = vshrl.u32 %v3152, 16
      %v3417 = vrot.slane %v3415, 6
      %v3418 = vshll.u32 %v3152, 16
      %v3420 = vrot.slane %v3418, 7
      %v3421 = vor.u32 %v3417, %v3420
      %v3422 = vsel %vm3164, %v3413, %v3421
      %v3423 = vrot.slane %v3421, 4
      %v3425 = vshrl.u32 %v3153, 16
      %v3427 = vrot.slane %v3425, 6
      %v3428 = vshll.u32 %v3153, 16
      %v3430 = vrot.slane %v3428, 7
      %v3431 = vor.u32 %v3427, %v3430
      %v3432 = vsel %vm3164, %v3423, %v3431
      %v3433 = vrot.slane %v3431, 4
      %v3435 = vshrl.u32 %v3154, 16
      %v3437 = vrot.slane %v3435, 6
      %v3438 = vshll.u32 %v3154, 16
      %v3440 = vrot.slane %v3438, 7
      %v3441 = vor.u32 %v3437, %v3440
      %v3442 = vsel %vm3164, %v3433, %v3441
      %v3443 = vrot.slane %v3441, 4
      %v3445 = vshrl.u32 %v3155, 16
      %v3447 = vrot.slane %v3445, 6
      %v3448 = vshll.u32 %v3155, 16
      %v3450 = vrot.slane %v3448, 7
      %v3451 = vor.u32 %v3447, %v3450
      %v3452 = vsel %vm3164, %v3443, %v3451
      %v3453 = vrot.slane %v3451, 4
      %v3455 = vshrl.u32 %v3156, 16
      %v3457 = vrot.slane %v3455, 6
      %v3458 = vshll.u32 %v3156, 16
      %v3460 = vrot.slane %v3458, 7
      %v3461 = vor.u32 %v3457, %v3460
      %v3462 = vsel %vm3164, %v3453, %v3461
      %v3463 = vrot.slane %v3461, 4
      %v3465 = vshrl.u32 %v3157, 16
      %v3467 = vrot.slane %v3465, 6
      %v3468 = vshll.u32 %v3157, 16
      %v3470 = vrot.slane %v3468, 7
      %v3471 = vor.u32 %v3467, %v3470
      %v3472 = vsel %vm3164, %v3463, %v3471
      %v3473 = vrot.slane %v3471, 4
      %v3475 = vshrl.u32 %v3158, 16
      %v3477 = vrot.slane %v3475, 6
      %v3478 = vshll.u32 %v3158, 16
      %v3480 = vrot.slane %v3478, 7
      %v3481 = vor.u32 %v3477, %v3480
      %v3482 = vsel %vm3164, %v3473, %v3481
      %v3483 = vrot.slane %v3481, 4
      %v3485 = vshrl.u32 %v3159, 16
      %v3487 = vrot.slane %v3485, 6
      %v3488 = vshll.u32 %v3159, 16
      %v3490 = vrot.slane %v3488, 7
      %v3491 = vor.u32 %v3487, %v3490
      %v3492 = vsel %vm3164, %v3483, %v3491
      %v3493 = vrot.slane %v3491, 4
      %v3495 = vshrl.u32 %v3160, 16
      %v3497 = vrot.slane %v3495, 6
      %v3498 = vshll.u32 %v3160, 16
      %v3500 = vrot.slane %v3498, 7
      %v3501 = vor.u32 %v3497, %v3500
      %v3502 = vsel %vm3164, %v3493, %v3501
      %v3503 = vrot.slane %v3501, 4
      %v3505 = vshrl.u32 %v3161, 16
      %v3507 = vrot.slane %v3505, 6
      %v3508 = vshll.u32 %v3161, 16
      %v3510 = vrot.slane %v3508, 7
      %v3511 = vor.u32 %v3507, %v3510
      %v3512 = vsel %vm3164, %v3503, %v3511
      %v3513 = vrot.slane %v3511, 4
      %3514 = vrot.lane.b32.xlu0 %v3182, 28
      %v3515 = vpop.permute.xlu0 %3514
      %3516 = vrot.lane.b32.xlu0 %v3192, 28
      %v3517 = vpop.permute.xlu0 %3516
      %3518 = vrot.lane.b32.xlu0 %v3202, 28
      %v3519 = vpop.permute.xlu0 %3518
      %3520 = vrot.lane.b32.xlu0 %v3212, 28
      %v3521 = vpop.permute.xlu0 %3520
      %3522 = vrot.lane.b32.xlu0 %v3222, 28
      %v3523 = vpop.permute.xlu0 %3522
      %3524 = vrot.lane.b32.xlu0 %v3232, 28
      %v3525 = vpop.permute.xlu0 %3524
      %3526 = vrot.lane.b32.xlu0 %v3242, 28
      %v3527 = vpop.permute.xlu0 %3526
      %3528 = vrot.lane.b32.xlu0 %v3252, 28
      %v3529 = vpop.permute.xlu0 %3528
      %3530 = vrot.lane.b32.xlu0 %v3262, 28
      %v3531 = vpop.permute.xlu0 %3530
      %3532 = vrot.lane.b32.xlu0 %v3272, 28
      %v3533 = vpop.permute.xlu0 %3532
      %3534 = vrot.lane.b32.xlu0 %v3282, 28
      %v3535 = vpop.permute.xlu0 %3534
      %3536 = vrot.lane.b32.xlu0 %v3292, 28
      %v3537 = vpop.permute.xlu0 %3536
      %3538 = vrot.lane.b32.xlu0 %v3302, 28
      %v3539 = vpop.permute.xlu0 %3538
      %3540 = vrot.lane.b32.xlu0 %v3312, 28
      %v3541 = vpop.permute.xlu0 %3540
      %3542 = vrot.lane.b32.xlu0 %v3322, 28
      %v3543 = vpop.permute.xlu0 %3542
      %3544 = vrot.lane.b32.xlu0 %v3332, 28
      %v3545 = vpop.permute.xlu0 %3544
      %3546 = vrot.lane.b32.xlu0 %v3342, 28
      %v3547 = vpop.permute.xlu0 %3546
      %3548 = vrot.lane.b32.xlu0 %v3352, 28
      %v3549 = vpop.permute.xlu0 %3548
      %3550 = vrot.lane.b32.xlu0 %v3362, 28
      %v3551 = vpop.permute.xlu0 %3550
      %3552 = vrot.lane.b32.xlu0 %v3372, 28
      %v3553 = vpop.permute.xlu0 %3552
      %3554 = vrot.lane.b32.xlu0 %v3382, 28
      %v3555 = vpop.permute.xlu0 %3554
      %3556 = vrot.lane.b32.xlu0 %v3392, 28
      %v3557 = vpop.permute.xlu0 %3556
      %3558 = vrot.lane.b32.xlu0 %v3402, 28
      %v3559 = vpop.permute.xlu0 %3558
      %3560 = vrot.lane.b32.xlu0 %v3412, 28
      %v3561 = vpop.permute.xlu0 %3560
      %3562 = vrot.lane.b32.xlu0 %v3422, 28
      %v3563 = vpop.permute.xlu0 %3562
      %3564 = vrot.lane.b32.xlu0 %v3432, 28
      %v3565 = vpop.permute.xlu0 %3564
      %3566 = vrot.lane.b32.xlu0 %v3442, 28
      %v3567 = vpop.permute.xlu0 %3566
      %3568 = vrot.lane.b32.xlu0 %v3452, 28
      %v3569 = vpop.permute.xlu0 %3568
      %3570 = vrot.lane.b32.xlu0 %v3462, 28
      %v3571 = vpop.permute.xlu0 %3570
      %3572 = vrot.lane.b32.xlu0 %v3472, 28
      %v3573 = vpop.permute.xlu0 %3572
      %3574 = vrot.lane.b32.xlu0 %v3482, 28
      %v3575 = vpop.permute.xlu0 %3574
      %3576 = vrot.lane.b32.xlu0 %v3492, 28
      %v3577 = vpop.permute.xlu0 %3576
      %3578 = vrot.lane.b32.xlu0 %v3502, 28
      %v3579 = vpop.permute.xlu0 %3578
      %3580 = vrot.lane.b32.xlu0 %v3512, 28
      %v3581 = vpop.permute.xlu0 %3580
      %3582 = vrot.lane.b32.xlu0 %v3513, 28
      %v3583 = vpop.permute.xlu0 %3582
      %vm3619 = vcmask 257248
      %3620 = vst.msk [vmem:[#allocation2] sm:$0xf] %vm3619, %v3515
      %3621 = vst.msk [vmem:[#allocation2 + $0x4] sm:$0xf] %vm3619, %v3517
      %3622 = vst.msk [vmem:[#allocation2 + $0x8] sm:$0xf] %vm3619, %v3519
      %3623 = vst.msk [vmem:[#allocation2 + $0xc] sm:$0xf] %vm3619, %v3521
      %3624 = vst.msk [vmem:[#allocation2 + $0x10] sm:$0xf] %vm3619, %v3523
      %3625 = vst.msk [vmem:[#allocation2 + $0x14] sm:$0xf] %vm3619, %v3525
      %3626 = vst.msk [vmem:[#allocation2 + $0x18] sm:$0xf] %vm3619, %v3527
      %3627 = vst.msk [vmem:[#allocation2 + $0x1c] sm:$0xf] %vm3619, %v3529
      %3628 = vst.msk [vmem:[#allocation2 + $0x20] sm:$0xf] %vm3619, %v3531
      %3629 = vst.msk [vmem:[#allocation2 + $0x24] sm:$0xf] %vm3619, %v3533
      %3630 = vst.msk [vmem:[#allocation2 + $0x28] sm:$0xf] %vm3619, %v3535
      %3631 = vst.msk [vmem:[#allocation2 + $0x2c] sm:$0xf] %vm3619, %v3537
      %3632 = vst.msk [vmem:[#allocation2 + $0x30] sm:$0xf] %vm3619, %v3539
      %3633 = vst.msk [vmem:[#allocation2 + $0x34] sm:$0xf] %vm3619, %v3541
      %3634 = vst.msk [vmem:[#allocation2 + $0x38] sm:$0xf] %vm3619, %v3543
      %3635 = vst.msk [vmem:[#allocation2 + $0x3c] sm:$0xf] %vm3619, %v3545
      %3636 = vst.msk [vmem:[#allocation2 + $0x40] sm:$0xf] %vm3619, %v3547
      %3637 = vst.msk [vmem:[#allocation2 + $0x44] sm:$0xf] %vm3619, %v3549
      %3638 = vst.msk [vmem:[#allocation2 + $0x48] sm:$0xf] %vm3619, %v3551
      %3639 = vst.msk [vmem:[#allocation2 + $0x4c] sm:$0xf] %vm3619, %v3553
      %3640 = vst.msk [vmem:[#allocation2 + $0x50] sm:$0xf] %vm3619, %v3555
      %3641 = vst.msk [vmem:[#allocation2 + $0x54] sm:$0xf] %vm3619, %v3557
      %3642 = vst.msk [vmem:[#allocation2 + $0x58] sm:$0xf] %vm3619, %v3559
      %3643 = vst.msk [vmem:[#allocation2 + $0x5c] sm:$0xf] %vm3619, %v3561
      %3644 = vst.msk [vmem:[#allocation2 + $0x60] sm:$0xf] %vm3619, %v3563
      %3645 = vst.msk [vmem:[#allocation2 + $0x64] sm:$0xf] %vm3619, %v3565
      %3646 = vst.msk [vmem:[#allocation2 + $0x68] sm:$0xf] %vm3619, %v3567
      %3647 = vst.msk [vmem:[#allocation2 + $0x6c] sm:$0xf] %vm3619, %v3569
      %3648 = vst.msk [vmem:[#allocation2 + $0x70] sm:$0xf] %vm3619, %v3571
      %3649 = vst.msk [vmem:[#allocation2 + $0x74] sm:$0xf] %vm3619, %v3573
      %3650 = vst.msk [vmem:[#allocation2 + $0x78] sm:$0xf] %vm3619, %v3575
      %3651 = vst.msk [vmem:[#allocation2 + $0x7c] sm:$0xf] %vm3619, %v3577
      %3652 = vst.msk [vmem:[#allocation2 + $0x80] sm:$0xf] %vm3619, %v3579
      %3653 = vst.msk [vmem:[#allocation2 + $0x84] sm:$0xf] %vm3619, %v3581
      %vm3654 = vcmask 255200
      %vm3655 = vmand %vm3654, %vm3162
      %v3656 = vld [vmem:[#allocation2 + $0x88] sm:$0x3]
      %v3657 = vsel %vm3655, %v3583, %v3656
      %3658 = vst [vmem:[#allocation2 + $0x88] sm:$0x3] %v3657
      %v3659 = vld [vmem:[%s367] sm:$0xf]
      %v3660 = vld [vmem:[%s367 + $0x4] sm:$0xf]
      %v3661 = vld [vmem:[%s367 + $0x8] sm:$0xf]
      %v3662 = vld [vmem:[%s367 + $0xc] sm:$0xf]
      %v3663 = vld [vmem:[%s367 + $0x10] sm:$0x7]
      %v3665 = vshrl.u32 %v3659, 16
      %v3667 = vrot.slane %v3665, 6
      %v3668 = vshll.u32 %v3659, 16
      %v3670 = vrot.slane %v3668, 7
      %v3671 = vor.u32 %v3667, %v3670
      %v3672 = vrot.slane %v3671, 4
      %v3674 = vshrl.u32 %v3660, 16
      %v3676 = vrot.slane %v3674, 6
      %v3677 = vshll.u32 %v3660, 16
      %v3679 = vrot.slane %v3677, 7
      %v3680 = vor.u32 %v3676, %v3679
      %v3681 = vsel %vm3164, %v3672, %v3680
      %v3682 = vrot.slane %v3680, 4
      %v3684 = vshrl.u32 %v3661, 16
      %v3686 = vrot.slane %v3684, 6
      %v3687 = vshll.u32 %v3661, 16
      %v3689 = vrot.slane %v3687, 7
      %v3690 = vor.u32 %v3686, %v3689
      %v3691 = vsel %vm3164, %v3682, %v3690
      %v3692 = vrot.slane %v3690, 4
      %v3694 = vshrl.u32 %v3662, 16
      %v3696 = vrot.slane %v3694, 6
      %v3697 = vshll.u32 %v3662, 16
      %v3699 = vrot.slane %v3697, 7
      %v3700 = vor.u32 %v3696, %v3699
      %v3701 = vsel %vm3164, %v3692, %v3700
      %v3702 = vrot.slane %v3700, 4
      %v3704 = vshrl.u32 %v3663, 16
      %v3706 = vrot.slane %v3704, 6
      %v3707 = vshll.u32 %v3663, 16
      %v3709 = vrot.slane %v3707, 7
      %v3710 = vor.u32 %v3706, %v3709
      %v3711 = vsel %vm3164, %v3702, %v3710
      %3712 = vrot.lane.b32.xlu0 %v3671, 28
      %v3713 = vpop.permute.xlu0 %3712
      %3714 = vrot.lane.b32.xlu0 %v3681, 28
      %v3715 = vpop.permute.xlu0 %3714
      %3716 = vrot.lane.b32.xlu0 %v3691, 28
      %v3717 = vpop.permute.xlu0 %3716
      %3718 = vrot.lane.b32.xlu0 %v3701, 28
      %v3719 = vpop.permute.xlu0 %3718
      %3720 = vrot.lane.b32.xlu0 %v3711, 28
      %v3721 = vpop.permute.xlu0 %3720
      %vm3727 = vcmask 257249
      %vm3728 = vsmask.f32 7942
      %vm3729 = vmand %vm3727, %vm3728
      %v3730 = vld [vmem:[#allocation2 + $0x88] sm:$0xe]
      %v3731 = vsel %vm3729, %v3713, %v3730
      %3732 = vst [vmem:[#allocation2 + $0x88] sm:$0xe] %v3731
      %3733 = vst.msk [vmem:[#allocation2 + $0x8c] sm:$0xf] %vm3619, %v3715
      %3734 = vst.msk [vmem:[#allocation2 + $0x90] sm:$0xf] %vm3619, %v3717
      %3735 = vst.msk [vmem:[#allocation2 + $0x94] sm:$0xf] %vm3619, %v3719
      %3736 = vst.msk [vmem:[#allocation2 + $0x98] sm:$0xf] %vm3619, %v3721
      %v3737 = vld [vmem:[%s353 + $0x10] sm:$0x8]
      %v3738 = vld [vmem:[%s353 + $0x14] sm:$0xf]
      %v3739 = vld [vmem:[%s353 + $0x18] sm:$0xf]
      %v3740 = vld [vmem:[%s353 + $0x1c] sm:$0xf]
      %v3741 = vld [vmem:[%s353 + $0x20] sm:$0xf]
      %v3742 = vld [vmem:[%s353 + $0x24] sm:$0xf]
      %v3743 = vld [vmem:[%s353 + $0x28] sm:$0xf]
      %v3744 = vld [vmem:[%s353 + $0x2c] sm:$0xf]
      %v3745 = vld [vmem:[%s353 + $0x30] sm:$0xf]
      %v3746 = vld [vmem:[%s353 + $0x34] sm:$0xf]
      %v3747 = vld [vmem:[%s353 + $0x38] sm:$0xf]
      %v3748 = vld [vmem:[%s353 + $0x3c] sm:$0xf]
      %v3749 = vld [vmem:[%s353 + $0x40] sm:$0xf]
      %v3750 = vld [vmem:[%s353 + $0x44] sm:$0xf]
      %v3751 = vld [vmem:[%s353 + $0x48] sm:$0xf]
      %v3752 = vld [vmem:[%s353 + $0x4c] sm:$0xf]
      %v3753 = vld [vmem:[%s353 + $0x50] sm:$0xf]
      %v3754 = vld [vmem:[%s353 + $0x54] sm:$0xf]
      %v3755 = vld [vmem:[%s353 + $0x58] sm:$0xf]
      %v3756 = vld [vmem:[%s353 + $0x5c] sm:$0xf]
      %v3757 = vld [vmem:[%s353 + $0x60] sm:$0xf]
      %v3758 = vld [vmem:[%s353 + $0x64] sm:$0xf]
      %v3759 = vld [vmem:[%s353 + $0x68] sm:$0xf]
      %v3760 = vld [vmem:[%s353 + $0x6c] sm:$0xf]
      %v3761 = vld [vmem:[%s353 + $0x70] sm:$0xf]
      %v3762 = vld [vmem:[%s353 + $0x74] sm:$0xf]
      %v3763 = vld [vmem:[%s353 + $0x78] sm:$0xf]
      %v3764 = vld [vmem:[%s353 + $0x7c] sm:$0xf]
      %v3765 = vld [vmem:[%s353 + $0x80] sm:$0xf]
      %v3766 = vld [vmem:[%s353 + $0x84] sm:$0xf]
      %v3767 = vld [vmem:[%s353 + $0x88] sm:$0xf]
      %v3768 = vld [vmem:[%s353 + $0x8c] sm:$0xf]
      %v3769 = vld [vmem:[%s353 + $0x90] sm:$0xf]
      %v3770 = vld [vmem:[%s353 + $0x94] sm:$0xf]
      %v3771 = vld [vmem:[%s353 + $0x98] sm:$0xf]
      %vm3807 = vcmask 1040384
      %vm3808 = vcmask 1044484
      %vm3809 = vmor %vm3807, %vm3808
      %v3810 = vrot.slane %v3737, 7
      %v3811 = vrot.slane %v3810, 4
      %v3812 = vrot.slane %v3738, 7
      %v3813 = vsel %vm3809, %v3811, %v3812
      %v3814 = vrot.slane %v3812, 4
      %v3815 = vrot.slane %v3739, 7
      %v3816 = vsel %vm3809, %v3814, %v3815
      %v3817 = vrot.slane %v3815, 4
      %v3818 = vrot.slane %v3740, 7
      %v3819 = vsel %vm3809, %v3817, %v3818
      %v3820 = vrot.slane %v3818, 4
      %v3821 = vrot.slane %v3741, 7
      %v3822 = vsel %vm3809, %v3820, %v3821
      %v3823 = vrot.slane %v3821, 4
      %v3824 = vrot.slane %v3742, 7
      %v3825 = vsel %vm3809, %v3823, %v3824
      %v3826 = vrot.slane %v3824, 4
      %v3827 = vrot.slane %v3743, 7
      %v3828 = vsel %vm3809, %v3826, %v3827
      %v3829 = vrot.slane %v3827, 4
      %v3830 = vrot.slane %v3744, 7
      %v3831 = vsel %vm3809, %v3829, %v3830
      %v3832 = vrot.slane %v3830, 4
      %v3833 = vrot.slane %v3745, 7
      %v3834 = vsel %vm3809, %v3832, %v3833
      %v3835 = vrot.slane %v3833, 4
      %v3836 = vrot.slane %v3746, 7
      %v3837 = vsel %vm3809, %v3835, %v3836
      %v3838 = vrot.slane %v3836, 4
      %v3839 = vrot.slane %v3747, 7
      %v3840 = vsel %vm3809, %v3838, %v3839
      %v3841 = vrot.slane %v3839, 4
      %v3842 = vrot.slane %v3748, 7
      %v3843 = vsel %vm3809, %v3841, %v3842
      %v3844 = vrot.slane %v3842, 4
      %v3845 = vrot.slane %v3749, 7
      %v3846 = vsel %vm3809, %v3844, %v3845
      %v3847 = vrot.slane %v3845, 4
      %v3848 = vrot.slane %v3750, 7
      %v3849 = vsel %vm3809, %v3847, %v3848
      %v3850 = vrot.slane %v3848, 4
      %v3851 = vrot.slane %v3751, 7
      %v3852 = vsel %vm3809, %v3850, %v3851
      %v3853 = vrot.slane %v3851, 4
      %v3854 = vrot.slane %v3752, 7
      %v3855 = vsel %vm3809, %v3853, %v3854
      %v3856 = vrot.slane %v3854, 4
      %v3857 = vrot.slane %v3753, 7
      %v3858 = vsel %vm3809, %v3856, %v3857
      %v3859 = vrot.slane %v3857, 4
      %v3860 = vrot.slane %v3754, 7
      %v3861 = vsel %vm3809, %v3859, %v3860
      %v3862 = vrot.slane %v3860, 4
      %v3863 = vrot.slane %v3755, 7
      %v3864 = vsel %vm3809, %v3862, %v3863
      %v3865 = vrot.slane %v3863, 4
      %v3866 = vrot.slane %v3756, 7
      %v3867 = vsel %vm3809, %v3865, %v3866
      %v3868 = vrot.slane %v3866, 4
      %v3869 = vrot.slane %v3757, 7
      %v3870 = vsel %vm3809, %v3868, %v3869
      %v3871 = vrot.slane %v3869, 4
      %v3872 = vrot.slane %v3758, 7
      %v3873 = vsel %vm3809, %v3871, %v3872
      %v3874 = vrot.slane %v3872, 4
      %v3875 = vrot.slane %v3759, 7
      %v3876 = vsel %vm3809, %v3874, %v3875
      %v3877 = vrot.slane %v3875, 4
      %v3878 = vrot.slane %v3760, 7
      %v3879 = vsel %vm3809, %v3877, %v3878
      %v3880 = vrot.slane %v3878, 4
      %v3881 = vrot.slane %v3761, 7
      %v3882 = vsel %vm3809, %v3880, %v3881
      %v3883 = vrot.slane %v3881, 4
      %v3884 = vrot.slane %v3762, 7
      %v3885 = vsel %vm3809, %v3883, %v3884
      %v3886 = vrot.slane %v3884, 4
      %v3887 = vrot.slane %v3763, 7
      %v3888 = vsel %vm3809, %v3886, %v3887
      %v3889 = vrot.slane %v3887, 4
      %v3890 = vrot.slane %v3764, 7
      %v3891 = vsel %vm3809, %v3889, %v3890
      %v3892 = vrot.slane %v3890, 4
      %v3893 = vrot.slane %v3765, 7
      %v3894 = vsel %vm3809, %v3892, %v3893
      %v3895 = vrot.slane %v3893, 4
      %v3896 = vrot.slane %v3766, 7
      %v3897 = vsel %vm3809, %v3895, %v3896
      %v3898 = vrot.slane %v3896, 4
      %v3899 = vrot.slane %v3767, 7
      %v3900 = vsel %vm3809, %v3898, %v3899
      %v3901 = vrot.slane %v3899, 4
      %v3902 = vrot.slane %v3768, 7
      %v3903 = vsel %vm3809, %v3901, %v3902
      %v3904 = vrot.slane %v3902, 4
      %v3905 = vrot.slane %v3769, 7
      %v3906 = vsel %vm3809, %v3904, %v3905
      %v3907 = vrot.slane %v3905, 4
      %v3908 = vrot.slane %v3770, 7
      %v3909 = vsel %vm3809, %v3907, %v3908
      %v3910 = vrot.slane %v3908, 4
      %v3911 = vrot.slane %v3771, 7
      %v3912 = vsel %vm3809, %v3910, %v3911
      %v3913 = vrot.slane %v3911, 4
      %3914 = vrot.lane.b32.xlu0 %v3813, 32
      %v3915 = vpop.permute.xlu0 %3914
      %3916 = vrot.lane.b32.xlu0 %v3816, 32
      %v3917 = vpop.permute.xlu0 %3916
      %3918 = vrot.lane.b32.xlu0 %v3819, 32
      %v3919 = vpop.permute.xlu0 %3918
      %3920 = vrot.lane.b32.xlu0 %v3822, 32
      %v3921 = vpop.permute.xlu0 %3920
      %3922 = vrot.lane.b32.xlu0 %v3825, 32
      %v3923 = vpop.permute.xlu0 %3922
      %3924 = vrot.lane.b32.xlu0 %v3828, 32
      %v3925 = vpop.permute.xlu0 %3924
      %3926 = vrot.lane.b32.xlu0 %v3831, 32
      %v3927 = vpop.permute.xlu0 %3926
      %3928 = vrot.lane.b32.xlu0 %v3834, 32
      %v3929 = vpop.permute.xlu0 %3928
      %3930 = vrot.lane.b32.xlu0 %v3837, 32
      %v3931 = vpop.permute.xlu0 %3930
      %3932 = vrot.lane.b32.xlu0 %v3840, 32
      %v3933 = vpop.permute.xlu0 %3932
      %3934 = vrot.lane.b32.xlu0 %v3843, 32
      %v3935 = vpop.permute.xlu0 %3934
      %3936 = vrot.lane.b32.xlu0 %v3846, 32
      %v3937 = vpop.permute.xlu0 %3936
      %3938 = vrot.lane.b32.xlu0 %v3849, 32
      %v3939 = vpop.permute.xlu0 %3938
      %3940 = vrot.lane.b32.xlu0 %v3852, 32
      %v3941 = vpop.permute.xlu0 %3940
      %3942 = vrot.lane.b32.xlu0 %v3855, 32
      %v3943 = vpop.permute.xlu0 %3942
      %3944 = vrot.lane.b32.xlu0 %v3858, 32
      %v3945 = vpop.permute.xlu0 %3944
      %3946 = vrot.lane.b32.xlu0 %v3861, 32
      %v3947 = vpop.permute.xlu0 %3946
      %3948 = vrot.lane.b32.xlu0 %v3864, 32
      %v3949 = vpop.permute.xlu0 %3948
      %3950 = vrot.lane.b32.xlu0 %v3867, 32
      %v3951 = vpop.permute.xlu0 %3950
      %3952 = vrot.lane.b32.xlu0 %v3870, 32
      %v3953 = vpop.permute.xlu0 %3952
      %3954 = vrot.lane.b32.xlu0 %v3873, 32
      %v3955 = vpop.permute.xlu0 %3954
      %3956 = vrot.lane.b32.xlu0 %v3876, 32
      %v3957 = vpop.permute.xlu0 %3956
      %3958 = vrot.lane.b32.xlu0 %v3879, 32
      %v3959 = vpop.permute.xlu0 %3958
      %3960 = vrot.lane.b32.xlu0 %v3882, 32
      %v3961 = vpop.permute.xlu0 %3960
      %3962 = vrot.lane.b32.xlu0 %v3885, 32
      %v3963 = vpop.permute.xlu0 %3962
      %3964 = vrot.lane.b32.xlu0 %v3888, 32
      %v3965 = vpop.permute.xlu0 %3964
      %3966 = vrot.lane.b32.xlu0 %v3891, 32
      %v3967 = vpop.permute.xlu0 %3966
      %3968 = vrot.lane.b32.xlu0 %v3894, 32
      %v3969 = vpop.permute.xlu0 %3968
      %3970 = vrot.lane.b32.xlu0 %v3897, 32
      %v3971 = vpop.permute.xlu0 %3970
      %3972 = vrot.lane.b32.xlu0 %v3900, 32
      %v3973 = vpop.permute.xlu0 %3972
      %3974 = vrot.lane.b32.xlu0 %v3903, 32
      %v3975 = vpop.permute.xlu0 %3974
      %3976 = vrot.lane.b32.xlu0 %v3906, 32
      %v3977 = vpop.permute.xlu0 %3976
      %3978 = vrot.lane.b32.xlu0 %v3909, 32
      %v3979 = vpop.permute.xlu0 %3978
      %3980 = vrot.lane.b32.xlu0 %v3912, 32
      %v3981 = vpop.permute.xlu0 %3980
      %3982 = vrot.lane.b32.xlu0 %v3913, 32
      %v3983 = vpop.permute.xlu0 %3982
      %vm4019 = vcmask 290048
      %4020 = vst.msk [vmem:[#allocation2] sm:$0xf] %vm4019, %v3915
      %4021 = vst.msk [vmem:[#allocation2 + $0x4] sm:$0xf] %vm4019, %v3917
      %4022 = vst.msk [vmem:[#allocation2 + $0x8] sm:$0xf] %vm4019, %v3919
      %4023 = vst.msk [vmem:[#allocation2 + $0xc] sm:$0xf] %vm4019, %v3921
      %4024 = vst.msk [vmem:[#allocation2 + $0x10] sm:$0xf] %vm4019, %v3923
      %4025 = vst.msk [vmem:[#allocation2 + $0x14] sm:$0xf] %vm4019, %v3925
      %4026 = vst.msk [vmem:[#allocation2 + $0x18] sm:$0xf] %vm4019, %v3927
      %4027 = vst.msk [vmem:[#allocation2 + $0x1c] sm:$0xf] %vm4019, %v3929
      %4028 = vst.msk [vmem:[#allocation2 + $0x20] sm:$0xf] %vm4019, %v3931
      %4029 = vst.msk [vmem:[#allocation2 + $0x24] sm:$0xf] %vm4019, %v3933
      %4030 = vst.msk [vmem:[#allocation2 + $0x28] sm:$0xf] %vm4019, %v3935
      %4031 = vst.msk [vmem:[#allocation2 + $0x2c] sm:$0xf] %vm4019, %v3937
      %4032 = vst.msk [vmem:[#allocation2 + $0x30] sm:$0xf] %vm4019, %v3939
      %4033 = vst.msk [vmem:[#allocation2 + $0x34] sm:$0xf] %vm4019, %v3941
      %4034 = vst.msk [vmem:[#allocation2 + $0x38] sm:$0xf] %vm4019, %v3943
      %4035 = vst.msk [vmem:[#allocation2 + $0x3c] sm:$0xf] %vm4019, %v3945
      %4036 = vst.msk [vmem:[#allocation2 + $0x40] sm:$0xf] %vm4019, %v3947
      %4037 = vst.msk [vmem:[#allocation2 + $0x44] sm:$0xf] %vm4019, %v3949
      %4038 = vst.msk [vmem:[#allocation2 + $0x48] sm:$0xf] %vm4019, %v3951
      %4039 = vst.msk [vmem:[#allocation2 + $0x4c] sm:$0xf] %vm4019, %v3953
      %4040 = vst.msk [vmem:[#allocation2 + $0x50] sm:$0xf] %vm4019, %v3955
      %4041 = vst.msk [vmem:[#allocation2 + $0x54] sm:$0xf] %vm4019, %v3957
      %4042 = vst.msk [vmem:[#allocation2 + $0x58] sm:$0xf] %vm4019, %v3959
      %4043 = vst.msk [vmem:[#allocation2 + $0x5c] sm:$0xf] %vm4019, %v3961
      %4044 = vst.msk [vmem:[#allocation2 + $0x60] sm:$0xf] %vm4019, %v3963
      %4045 = vst.msk [vmem:[#allocation2 + $0x64] sm:$0xf] %vm4019, %v3965
      %4046 = vst.msk [vmem:[#allocation2 + $0x68] sm:$0xf] %vm4019, %v3967
      %4047 = vst.msk [vmem:[#allocation2 + $0x6c] sm:$0xf] %vm4019, %v3969
      %4048 = vst.msk [vmem:[#allocation2 + $0x70] sm:$0xf] %vm4019, %v3971
      %4049 = vst.msk [vmem:[#allocation2 + $0x74] sm:$0xf] %vm4019, %v3973
      %4050 = vst.msk [vmem:[#allocation2 + $0x78] sm:$0xf] %vm4019, %v3975
      %4051 = vst.msk [vmem:[#allocation2 + $0x7c] sm:$0xf] %vm4019, %v3977
      %4052 = vst.msk [vmem:[#allocation2 + $0x80] sm:$0xf] %vm4019, %v3979
      %4053 = vst.msk [vmem:[#allocation2 + $0x84] sm:$0xf] %vm4019, %v3981
      %vm4054 = vcmask 286976
      %4055 = vst.msk [vmem:[#allocation2 + $0x88] sm:$0x1] %vm4054, %v3983
      %v4056 = vld [vmem:[%s367] sm:$0xf]
      %v4057 = vld [vmem:[%s367 + $0x4] sm:$0xf]
      %v4058 = vld [vmem:[%s367 + $0x8] sm:$0xf]
      %v4059 = vld [vmem:[%s367 + $0xc] sm:$0xf]
      %v4060 = vld [vmem:[%s367 + $0x10] sm:$0x7]
      %v4066 = vrot.slane %v4056, 7
      %v4067 = vrot.slane %v4066, 4
      %v4068 = vrot.slane %v4057, 7
      %v4069 = vsel %vm3809, %v4067, %v4068
      %v4070 = vrot.slane %v4068, 4
      %v4071 = vrot.slane %v4058, 7
      %v4072 = vsel %vm3809, %v4070, %v4071
      %v4073 = vrot.slane %v4071, 4
      %v4074 = vrot.slane %v4059, 7
      %v4075 = vsel %vm3809, %v4073, %v4074
      %v4076 = vrot.slane %v4074, 4
      %v4077 = vrot.slane %v4060, 7
      %v4078 = vsel %vm3809, %v4076, %v4077
      %4079 = vrot.lane.b32.xlu0 %v4066, 32
      %v4080 = vpop.permute.xlu0 %4079
      %4081 = vrot.lane.b32.xlu0 %v4069, 32
      %v4082 = vpop.permute.xlu0 %4081
      %4083 = vrot.lane.b32.xlu0 %v4072, 32
      %v4084 = vpop.permute.xlu0 %4083
      %4085 = vrot.lane.b32.xlu0 %v4075, 32
      %v4086 = vpop.permute.xlu0 %4085
      %4087 = vrot.lane.b32.xlu0 %v4078, 32
      %v4088 = vpop.permute.xlu0 %4087
      %vm4094 = vcmask 290049
      %4095 = vst.msk [vmem:[#allocation2 + $0x88] sm:$0xe] %vm4094, %v4080
      %4096 = vst.msk [vmem:[#allocation2 + $0x8c] sm:$0xf] %vm4019, %v4082
      %4097 = vst.msk [vmem:[#allocation2 + $0x90] sm:$0xf] %vm4019, %v4084
      %4098 = vst.msk [vmem:[#allocation2 + $0x94] sm:$0xf] %vm4019, %v4086
      %4099 = vst.msk [vmem:[#allocation2 + $0x98] sm:$0xf] %vm4019, %v4088
      %v4100 = vld [vmem:[#allocation2] sm:$0xf]
      %v4101 = vld [vmem:[#allocation2 + $0x4] sm:$0xf]
      %v4102 = vld [vmem:[#allocation2 + $0x8] sm:$0xf]
      %v4103 = vld [vmem:[#allocation2 + $0xc] sm:$0xf]
      %v4104 = vld [vmem:[#allocation2 + $0x10] sm:$0xf]
      %v4105 = vld [vmem:[#allocation2 + $0x14] sm:$0xf]
      %v4106 = vld [vmem:[#allocation2 + $0x18] sm:$0xf]
      %v4107 = vld [vmem:[#allocation2 + $0x1c] sm:$0xf]
      %v4108 = vld [vmem:[#allocation2 + $0x20] sm:$0xf]
      %v4109 = vld [vmem:[#allocation2 + $0x24] sm:$0xf]
      %v4110 = vld [vmem:[#allocation2 + $0x28] sm:$0xf]
      %v4111 = vld [vmem:[#allocation2 + $0x2c] sm:$0xf]
      %v4112 = vld [vmem:[#allocation2 + $0x30] sm:$0xf]
      %v4113 = vld [vmem:[#allocation2 + $0x34] sm:$0xf]
      %v4114 = vld [vmem:[#allocation2 + $0x38] sm:$0xf]
      %v4115 = vld [vmem:[#allocation2 + $0x3c] sm:$0xf]
      %v4116 = vld [vmem:[#allocation2 + $0x40] sm:$0xf]
      %v4117 = vld [vmem:[#allocation2 + $0x44] sm:$0xf]
      %v4118 = vld [vmem:[#allocation2 + $0x48] sm:$0xf]
      %v4119 = vld [vmem:[#allocation2 + $0x4c] sm:$0xf]
      %v4120 = vld [vmem:[#allocation2 + $0x50] sm:$0xf]
      %v4121 = vld [vmem:[#allocation2 + $0x54] sm:$0xf]
      %v4122 = vld [vmem:[#allocation2 + $0x58] sm:$0xf]
      %v4123 = vld [vmem:[#allocation2 + $0x5c] sm:$0xf]
      %v4124 = vld [vmem:[#allocation2 + $0x60] sm:$0xf]
      %v4125 = vld [vmem:[#allocation2 + $0x64] sm:$0xf]
      %v4126 = vld [vmem:[#allocation2 + $0x68] sm:$0xf]
      %v4127 = vld [vmem:[#allocation2 + $0x6c] sm:$0xf]
      %v4128 = vld [vmem:[#allocation2 + $0x70] sm:$0xf]
      %v4129 = vld [vmem:[#allocation2 + $0x74] sm:$0xf]
      %v4130 = vld [vmem:[#allocation2 + $0x78] sm:$0xf]
      %v4131 = vld [vmem:[#allocation2 + $0x7c] sm:$0xf]
      %v4132 = vld [vmem:[#allocation2 + $0x80] sm:$0xf]
      %v4133 = vld [vmem:[#allocation2 + $0x84] sm:$0xf]
      %v4134 = vld [vmem:[#allocation2 + $0x88] sm:$0xf]
      %v4135 = vld [vmem:[#allocation2 + $0x8c] sm:$0xf]
      %v4136 = vld [vmem:[#allocation2 + $0x90] sm:$0xf]
      %v4137 = vld [vmem:[#allocation2 + $0x94] sm:$0xf]
      %v4138 = vld [vmem:[#allocation2 + $0x98] sm:$0xf]
      %v4139 = vld [vmem:[%s3] sm:$0xff]
      %v4140 = vld [vmem:[%s3 + $0x8] sm:$0xff]
      %v4141 = vld [vmem:[%s3 + $0x10] sm:$0xff]
      %v4142 = vld [vmem:[%s3 + $0x18] sm:$0xff]
      %v4143 = vld [vmem:[%s3 + $0x20] sm:$0x33]
      %v4144 = vld [vmem:[%s4] sm:$0x3]
      %v4146 = vlaneseq
      %v4147 = vshrl.u32 %v4146, 7
      %v4148 = vsub.s32 0, %v4147
      %v4149 = vrot.slane %v4144, %v4148
      %v4150 = vlaneseq
      %v4151 = vshrl.u32 %v4150, 7
      %v4152 = vsub.s32 1, %v4151
      %v4153 = vrot.slane %v4144, %v4152
      %v4195 = vunpack.c.l.b16 %v4100
      %v4196 = vunpack.c.l.b16 %v4101
      %v4197 = vunpack.c.l.b16 %v4102
      %v4198 = vunpack.c.l.b16 %v4103
      %v4199 = vunpack.c.l.b16 %v4104
      %v4200 = vunpack.c.l.b16 %v4105
      %v4201 = vunpack.c.l.b16 %v4106
      %v4202 = vunpack.c.l.b16 %v4107
      %v4203 = vunpack.c.l.b16 %v4108
      %v4204 = vunpack.c.l.b16 %v4109
      %v4205 = vunpack.c.l.b16 %v4110
      %v4206 = vunpack.c.l.b16 %v4111
      %v4207 = vunpack.c.l.b16 %v4112
      %v4208 = vunpack.c.l.b16 %v4113
      %v4209 = vunpack.c.l.b16 %v4114
      %v4210 = vunpack.c.l.b16 %v4115
      %v4211 = vunpack.c.l.b16 %v4116
      %v4212 = vunpack.c.l.b16 %v4117
      %v4213 = vunpack.c.l.b16 %v4118
      %v4214 = vunpack.c.l.b16 %v4119
      %v4215 = vunpack.c.l.b16 %v4120
      %v4216 = vunpack.c.l.b16 %v4121
      %v4217 = vunpack.c.l.b16 %v4122
      %v4218 = vunpack.c.l.b16 %v4123
      %v4219 = vunpack.c.l.b16 %v4124
      %v4220 = vunpack.c.l.b16 %v4125
      %v4221 = vunpack.c.l.b16 %v4126
      %v4222 = vunpack.c.l.b16 %v4127
      %v4223 = vunpack.c.l.b16 %v4128
      %v4224 = vunpack.c.l.b16 %v4129
      %v4225 = vunpack.c.l.b16 %v4130
      %v4226 = vunpack.c.l.b16 %v4131
      %v4227 = vunpack.c.l.b16 %v4132
      %v4228 = vunpack.c.l.b16 %v4133
      %v4229 = vunpack.c.l.b16 %v4134
      %v4230 = vunpack.c.l.b16 %v4135
      %v4231 = vunpack.c.l.b16 %v4136
      %v4232 = vunpack.c.l.b16 %v4137
      %v4233 = vunpack.c.l.b16 %v4138
      %v4234 = vpack.c.b16 %v4196, %v4195
      %v4235 = vpack.c.b16 %v4198, %v4197
      %v4236 = vpack.c.b16 %v4200, %v4199
      %v4237 = vpack.c.b16 %v4202, %v4201
      %v4238 = vpack.c.b16 %v4204, %v4203
      %v4239 = vpack.c.b16 %v4206, %v4205
      %v4240 = vpack.c.b16 %v4208, %v4207
      %v4241 = vpack.c.b16 %v4210, %v4209
      %v4242 = vpack.c.b16 %v4212, %v4211
      %v4243 = vpack.c.b16 %v4214, %v4213
      %v4244 = vpack.c.b16 %v4216, %v4215
      %v4245 = vpack.c.b16 %v4218, %v4217
      %v4246 = vpack.c.b16 %v4220, %v4219
      %v4247 = vpack.c.b16 %v4222, %v4221
      %v4248 = vpack.c.b16 %v4224, %v4223
      %v4249 = vpack.c.b16 %v4226, %v4225
      %v4250 = vpack.c.b16 %v4228, %v4227
      %v4251 = vpack.c.b16 %v4230, %v4229
      %v4252 = vpack.c.b16 %v4232, %v4231
      %v4253 = vpack.c.b16 %v4233, %v4233
      %v4259 = vunpack.c.l.b16 %v4139
      %v4260 = vunpack.c.h.b16 %v4139
      %v4261 = vunpack.c.l.b16 %v4140
      %v4262 = vunpack.c.h.b16 %v4140
      %v4263 = vunpack.c.l.b16 %v4141
      %v4264 = vunpack.c.h.b16 %v4141
      %v4265 = vunpack.c.l.b16 %v4142
      %v4266 = vunpack.c.h.b16 %v4142
      %v4267 = vunpack.c.l.b16 %v4143
      %v4268 = vunpack.c.h.b16 %v4143
      %v4269 = vpack.c.b16 %v4261, %v4259
      %v4270 = vpack.c.b16 %v4262, %v4260
      %v4271 = vpack.c.b16 %v4265, %v4263
      %v4272 = vpack.c.b16 %v4266, %v4264
      %v4273 = vpack.c.b16 %v4267, %v4267
      %v4274 = vpack.c.b16 %v4268, %v4268
      %vm4279 = vcmask 293888
      %v4281 = vsel %vm4279, %v4234, 0
      %v4284 = vsel %vm4279, %v4235, 0
      %v4287 = vsel %vm4279, %v4236, 0
      %v4290 = vsel %vm4279, %v4237, 0
      %v4293 = vsel %vm4279, %v4238, 0
      %v4296 = vsel %vm4279, %v4239, 0
      %v4299 = vsel %vm4279, %v4240, 0
      %v4302 = vsel %vm4279, %v4241, 0
      %v4305 = vsel %vm4279, %v4242, 0
      %v4308 = vsel %vm4279, %v4243, 0
      %v4311 = vsel %vm4279, %v4244, 0
      %v4314 = vsel %vm4279, %v4245, 0
      %v4317 = vsel %vm4279, %v4246, 0
      %v4320 = vsel %vm4279, %v4247, 0
      %v4323 = vsel %vm4279, %v4248, 0
      %v4326 = vsel %vm4279, %v4249, 0
      %v4329 = vsel %vm4279, %v4250, 0
      %v4332 = vsel %vm4279, %v4251, 0
      %v4335 = vsel %vm4279, %v4252, 0
      %v4338 = vsel %vm4279, %v4253, 0
      %vm4340 = vcmask 1041408
      %v4342 = vsel %vm4340, %v4273, 0
      %v4345 = vsel %vm4340, %v4274, 0
      %4347 = vmatprep.subr.bf16.mxu0 %v4270
      %4348 = vmatpush1.bf16.msra.mxu0 %v4269
      %4349 = vmatprep.subr.bf16.mxu0 %v4272
      %4350 = vmatpush1.bf16.msra.mxu0 %v4271
      %4351 = vmatprep.subr.bf16.mxu0 %v4345
      %4352 = vmatpush1.bf16.msra.mxu0 %v4342
      %4353 = vmatprep.subr.bf16.mxu0 0
      %4354 = vmatpush1.bf16.msra.mxu0 0
      %4355 = vmatprep.subr.bf16.mxu0 0
      %4356 = vmatpush1.bf16.msra.mxu0 0
      %4357 = vmatprep.subr.bf16.mxu0 0
      %4358 = vmatpush1.bf16.msra.mxu0 0
      %4359 = vmatprep.subr.bf16.mxu0 0
      %4360 = vmatpush1.bf16.msra.mxu0 0
      %4361 = vmatprep.subr.bf16.mxu0 0
      %4362 = vmatpush1.bf16.msra.mxu0 0
      %4363 = vmatprep.subr.bf16.mxu0 0
      %4364 = vmatpush1.bf16.msra.mxu0 0
      %4365 = vmatprep.subr.bf16.mxu0 0
      %4366 = vmatpush1.bf16.msra.mxu0 0
      %4367 = vmatprep.subr.bf16.mxu0 0
      %4368 = vmatpush1.bf16.msra.mxu0 0
      %4369 = vmatprep.subr.bf16.mxu0 0
      %4370 = vmatpush1.bf16.msra.mxu0 0
      %4371 = vmatprep.subr.bf16.mxu0 0
      %4372 = vmatpush1.bf16.msra.mxu0 0
      %4373 = vmatprep.subr.bf16.mxu0 0
      %4374 = vmatpush1.bf16.msra.mxu0 0
      %4375 = vmatprep.subr.bf16.mxu0 0
      %4376 = vmatpush1.bf16.msra.mxu0 0
      %4377 = vmatprep.subr.bf16.mxu0 0
      %4378 = vmatpush1.bf16.msra.mxu0 0
      %4379 = vmatprep.mubr.bf16.mxu0 0
      %4380 = vmatmul.mubr.bf16.gmra.mrb[0].mxu0 %v4281
      %v4381 = vpop.f32.mrb[0].mxu0
      %v4382 = vadd.f32 %v4149, %v4381
      %v4383 = vpop.f32.mrb[0].mxu0
      %v4384 = vadd.f32 %v4153, %v4383
      %v4385 = vpop.f32.mrb[0].mxu0
      %v4386 = vadd.f32 %v4149, %v4385
      %v4387 = vpop.f32.mrb[0].mxu0
      %v4388 = vadd.f32 %v4153, %v4387
      %4389 = vmatprep.mubr.bf16.mxu0 0
      %4390 = vmatmul.mubr.bf16.gmra.mrb[0].mxu0 %v4284
      %v4391 = vpop.f32.mrb[0].mxu0
      %v4392 = vadd.f32 %v4149, %v4391
      %v4393 = vpop.f32.mrb[0].mxu0
      %v4394 = vadd.f32 %v4153, %v4393
      %v4395 = vpop.f32.mrb[0].mxu0
      %v4396 = vadd.f32 %v4149, %v4395
      %v4397 = vpop.f32.mrb[0].mxu0
      %v4398 = vadd.f32 %v4153, %v4397
      %4399 = vmatprep.mubr.bf16.mxu0 0
      %4400 = vmatmul.mubr.bf16.gmra.mrb[0].mxu0 %v4287
      %v4401 = vpop.f32.mrb[0].mxu0
      %v4402 = vadd.f32 %v4149, %v4401
      %v4403 = vpop.f32.mrb[0].mxu0
      %v4404 = vadd.f32 %v4153, %v4403
      %v4405 = vpop.f32.mrb[0].mxu0
      %v4406 = vadd.f32 %v4149, %v4405
      %v4407 = vpop.f32.mrb[0].mxu0
      %v4408 = vadd.f32 %v4153, %v4407
      %4409 = vmatprep.mubr.bf16.mxu0 0
      %4410 = vmatmul.mubr.bf16.gmra.mrb[0].mxu0 %v4290
      %v4411 = vpop.f32.mrb[0].mxu0
      %v4412 = vadd.f32 %v4149, %v4411
      %v4413 = vpop.f32.mrb[0].mxu0
      %v4414 = vadd.f32 %v4153, %v4413
      %v4415 = vpop.f32.mrb[0].mxu0
      %v4416 = vadd.f32 %v4149, %v4415
      %v4417 = vpop.f32.mrb[0].mxu0
      %v4418 = vadd.f32 %v4153, %v4417
      %4419 = vmatprep.mubr.bf16.mxu0 0
      %4420 = vmatmul.mubr.bf16.gmra.mrb[0].mxu0 %v4293
      %v4421 = vpop.f32.mrb[0].mxu0
      %v4422 = vadd.f32 %v4149, %v4421
      %v4423 = vpop.f32.mrb[0].mxu0
      %v4424 = vadd.f32 %v4153, %v4423
      %v4425 = vpop.f32.mrb[0].mxu0
      %v4426 = vadd.f32 %v4149, %v4425
      %v4427 = vpop.f32.mrb[0].mxu0
      %v4428 = vadd.f32 %v4153, %v4427
      %4429 = vmatprep.mubr.bf16.mxu0 0
      %4430 = vmatmul.mubr.bf16.gmra.mrb[0].mxu0 %v4296
      %v4431 = vpop.f32.mrb[0].mxu0
      %v4432 = vadd.f32 %v4149, %v4431
      %v4433 = vpop.f32.mrb[0].mxu0
      %v4434 = vadd.f32 %v4153, %v4433
      %v4435 = vpop.f32.mrb[0].mxu0
      %v4436 = vadd.f32 %v4149, %v4435
      %v4437 = vpop.f32.mrb[0].mxu0
      %v4438 = vadd.f32 %v4153, %v4437
      %4439 = vmatprep.mubr.bf16.mxu0 0
      %4440 = vmatmul.mubr.bf16.gmra.mrb[0].mxu0 %v4299
      %v4441 = vpop.f32.mrb[0].mxu0
      %v4442 = vadd.f32 %v4149, %v4441
      %v4443 = vpop.f32.mrb[0].mxu0
      %v4444 = vadd.f32 %v4153, %v4443
      %v4445 = vpop.f32.mrb[0].mxu0
      %v4446 = vadd.f32 %v4149, %v4445
      %v4447 = vpop.f32.mrb[0].mxu0
      %v4448 = vadd.f32 %v4153, %v4447
      %4449 = vmatprep.mubr.bf16.mxu0 0
      %4450 = vmatmul.mubr.bf16.gmra.mrb[0].mxu0 %v4302
      %v4451 = vpop.f32.mrb[0].mxu0
      %v4452 = vadd.f32 %v4149, %v4451
      %v4453 = vpop.f32.mrb[0].mxu0
      %v4454 = vadd.f32 %v4153, %v4453
      %v4455 = vpop.f32.mrb[0].mxu0
      %v4456 = vadd.f32 %v4149, %v4455
      %v4457 = vpop.f32.mrb[0].mxu0
      %v4458 = vadd.f32 %v4153, %v4457
      %4459 = vmatprep.mubr.bf16.mxu0 0
      %4460 = vmatmul.mubr.bf16.gmra.mrb[0].mxu0 %v4305
      %v4461 = vpop.f32.mrb[0].mxu0
      %v4462 = vadd.f32 %v4149, %v4461
      %v4463 = vpop.f32.mrb[0].mxu0
      %v4464 = vadd.f32 %v4153, %v4463
      %v4465 = vpop.f32.mrb[0].mxu0
      %v4466 = vadd.f32 %v4149, %v4465
      %v4467 = vpop.f32.mrb[0].mxu0
      %v4468 = vadd.f32 %v4153, %v4467
      %4469 = vmatprep.mubr.bf16.mxu0 0
      %4470 = vmatmul.mubr.bf16.gmra.mrb[0].mxu0 %v4308
      %v4471 = vpop.f32.mrb[0].mxu0
      %v4472 = vadd.f32 %v4149, %v4471
      %v4473 = vpop.f32.mrb[0].mxu0
      %v4474 = vadd.f32 %v4153, %v4473
      %v4475 = vpop.f32.mrb[0].mxu0
      %v4476 = vadd.f32 %v4149, %v4475
      %v4477 = vpop.f32.mrb[0].mxu0
      %v4478 = vadd.f32 %v4153, %v4477
      %4479 = vmatprep.mubr.bf16.mxu0 0
      %4480 = vmatmul.mubr.bf16.gmra.mrb[0].mxu0 %v4311
      %v4481 = vpop.f32.mrb[0].mxu0
      %v4482 = vadd.f32 %v4149, %v4481
      %v4483 = vpop.f32.mrb[0].mxu0
      %v4484 = vadd.f32 %v4153, %v4483
      %v4485 = vpop.f32.mrb[0].mxu0
      %v4486 = vadd.f32 %v4149, %v4485
      %v4487 = vpop.f32.mrb[0].mxu0
      %v4488 = vadd.f32 %v4153, %v4487
      %4489 = vmatprep.mubr.bf16.mxu0 0
      %4490 = vmatmul.mubr.bf16.gmra.mrb[0].mxu0 %v4314
      %v4491 = vpop.f32.mrb[0].mxu0
      %v4492 = vadd.f32 %v4149, %v4491
      %v4493 = vpop.f32.mrb[0].mxu0
      %v4494 = vadd.f32 %v4153, %v4493
      %v4495 = vpop.f32.mrb[0].mxu0
      %v4496 = vadd.f32 %v4149, %v4495
      %v4497 = vpop.f32.mrb[0].mxu0
      %v4498 = vadd.f32 %v4153, %v4497
      %4499 = vmatprep.mubr.bf16.mxu0 0
      %4500 = vmatmul.mubr.bf16.gmra.mrb[0].mxu0 %v4317
      %v4501 = vpop.f32.mrb[0].mxu0
      %v4502 = vadd.f32 %v4149, %v4501
      %v4503 = vpop.f32.mrb[0].mxu0
      %v4504 = vadd.f32 %v4153, %v4503
      %v4505 = vpop.f32.mrb[0].mxu0
      %v4506 = vadd.f32 %v4149, %v4505
      %v4507 = vpop.f32.mrb[0].mxu0
      %v4508 = vadd.f32 %v4153, %v4507
      %4509 = vmatprep.mubr.bf16.mxu0 0
      %4510 = vmatmul.mubr.bf16.gmra.mrb[0].mxu0 %v4320
      %v4511 = vpop.f32.mrb[0].mxu0
      %v4512 = vadd.f32 %v4149, %v4511
      %v4513 = vpop.f32.mrb[0].mxu0
      %v4514 = vadd.f32 %v4153, %v4513
      %v4515 = vpop.f32.mrb[0].mxu0
      %v4516 = vadd.f32 %v4149, %v4515
      %v4517 = vpop.f32.mrb[0].mxu0
      %v4518 = vadd.f32 %v4153, %v4517
      %4519 = vmatprep.mubr.bf16.mxu0 0
      %4520 = vmatmul.mubr.bf16.gmra.mrb[0].mxu0 %v4323
      %v4521 = vpop.f32.mrb[0].mxu0
      %v4522 = vadd.f32 %v4149, %v4521
      %v4523 = vpop.f32.mrb[0].mxu0
      %v4524 = vadd.f32 %v4153, %v4523
      %v4525 = vpop.f32.mrb[0].mxu0
      %v4526 = vadd.f32 %v4149, %v4525
      %v4527 = vpop.f32.mrb[0].mxu0
      %v4528 = vadd.f32 %v4153, %v4527
      %4529 = vmatprep.mubr.bf16.mxu0 0
      %4530 = vmatmul.mubr.bf16.gmra.mrb[0].mxu0 %v4326
      %v4531 = vpop.f32.mrb[0].mxu0
      %v4532 = vadd.f32 %v4149, %v4531
      %v4533 = vpop.f32.mrb[0].mxu0
      %v4534 = vadd.f32 %v4153, %v4533
      %v4535 = vpop.f32.mrb[0].mxu0
      %v4536 = vadd.f32 %v4149, %v4535
      %v4537 = vpop.f32.mrb[0].mxu0
      %v4538 = vadd.f32 %v4153, %v4537
      %4539 = vmatprep.mubr.bf16.mxu0 0
      %4540 = vmatmul.mubr.bf16.gmra.mrb[0].mxu0 %v4329
      %v4541 = vpop.f32.mrb[0].mxu0
      %v4542 = vadd.f32 %v4149, %v4541
      %v4543 = vpop.f32.mrb[0].mxu0
      %v4544 = vadd.f32 %v4153, %v4543
      %v4545 = vpop.f32.mrb[0].mxu0
      %v4546 = vadd.f32 %v4149, %v4545
      %v4547 = vpop.f32.mrb[0].mxu0
      %v4548 = vadd.f32 %v4153, %v4547
      %4549 = vmatprep.mubr.bf16.mxu0 0
      %4550 = vmatmul.mubr.bf16.gmra.mrb[0].mxu0 %v4332
      %v4551 = vpop.f32.mrb[0].mxu0
      %v4552 = vadd.f32 %v4149, %v4551
      %v4553 = vpop.f32.mrb[0].mxu0
      %v4554 = vadd.f32 %v4153, %v4553
      %v4555 = vpop.f32.mrb[0].mxu0
      %v4556 = vadd.f32 %v4149, %v4555
      %v4557 = vpop.f32.mrb[0].mxu0
      %v4558 = vadd.f32 %v4153, %v4557
      %4559 = vmatprep.mubr.bf16.mxu0 0
      %4560 = vmatmul.mubr.bf16.gmra.mrb[0].mxu0 %v4335
      %v4561 = vpop.f32.mrb[0].mxu0
      %v4562 = vadd.f32 %v4149, %v4561
      %v4563 = vpop.f32.mrb[0].mxu0
      %v4564 = vadd.f32 %v4153, %v4563
      %v4565 = vpop.f32.mrb[0].mxu0
      %v4566 = vadd.f32 %v4149, %v4565
      %v4567 = vpop.f32.mrb[0].mxu0
      %v4568 = vadd.f32 %v4153, %v4567
      %4569 = vmatprep.mubr.bf16.mxu0 0
      %4570 = vmatmul.mubr.bf16.gmra.mrb[0].mxu0 %v4338
      %v4571 = vpop.f32.mrb[0].mxu0
      %v4572 = vadd.f32 %v4149, %v4571
      %v4573 = vpop.f32.mrb[0].mxu0
      %v4574 = vadd.f32 %v4153, %v4573
      %v4575 = vpop.f32.mrb[0].mxu0
      %v4576 = vpop.f32.mrb[0].mxu0
      %4577 = vdwg.mxu0
      %v4578 = vmax.f32 %v4382, 0.0
      %v4579 = vmax.f32 %v4384, 0.0
      %v4580 = vmax.f32 %v4386, 0.0
      %v4581 = vmax.f32 %v4388, 0.0
      %v4582 = vmax.f32 %v4392, 0.0
      %v4583 = vmax.f32 %v4394, 0.0
      %v4584 = vmax.f32 %v4396, 0.0
      %v4585 = vmax.f32 %v4398, 0.0
      %v4586 = vmax.f32 %v4402, 0.0
      %v4587 = vmax.f32 %v4404, 0.0
      %v4588 = vmax.f32 %v4406, 0.0
      %v4589 = vmax.f32 %v4408, 0.0
      %v4590 = vmax.f32 %v4412, 0.0
      %v4591 = vmax.f32 %v4414, 0.0
      %v4592 = vmax.f32 %v4416, 0.0
      %v4593 = vmax.f32 %v4418, 0.0
      %v4594 = vmax.f32 %v4422, 0.0
      %v4595 = vmax.f32 %v4424, 0.0
      %v4596 = vmax.f32 %v4426, 0.0
      %v4597 = vmax.f32 %v4428, 0.0
      %v4598 = vmax.f32 %v4432, 0.0
      %v4599 = vmax.f32 %v4434, 0.0
      %v4600 = vmax.f32 %v4436, 0.0
      %v4601 = vmax.f32 %v4438, 0.0
      %v4602 = vmax.f32 %v4442, 0.0
      %v4603 = vmax.f32 %v4444, 0.0
      %v4604 = vmax.f32 %v4446, 0.0
      %v4605 = vmax.f32 %v4448, 0.0
      %v4606 = vmax.f32 %v4452, 0.0
      %v4607 = vmax.f32 %v4454, 0.0
      %v4608 = vmax.f32 %v4456, 0.0
      %v4609 = vmax.f32 %v4458, 0.0
      %v4610 = vmax.f32 %v4462, 0.0
      %v4611 = vmax.f32 %v4464, 0.0
      %v4612 = vmax.f32 %v4466, 0.0
      %v4613 = vmax.f32 %v4468, 0.0
      %v4614 = vmax.f32 %v4472, 0.0
      %v4615 = vmax.f32 %v4474, 0.0
      %v4616 = vmax.f32 %v4476, 0.0
      %v4617 = vmax.f32 %v4478, 0.0
      %v4618 = vmax.f32 %v4482, 0.0
      %v4619 = vmax.f32 %v4484, 0.0
      %v4620 = vmax.f32 %v4486, 0.0
      %v4621 = vmax.f32 %v4488, 0.0
      %v4622 = vmax.f32 %v4492, 0.0
      %v4623 = vmax.f32 %v4494, 0.0
      %v4624 = vmax.f32 %v4496, 0.0
      %v4625 = vmax.f32 %v4498, 0.0
      %v4626 = vmax.f32 %v4502, 0.0
      %v4627 = vmax.f32 %v4504, 0.0
      %v4628 = vmax.f32 %v4506, 0.0
      %v4629 = vmax.f32 %v4508, 0.0
      %v4630 = vmax.f32 %v4512, 0.0
      %v4631 = vmax.f32 %v4514, 0.0
      %v4632 = vmax.f32 %v4516, 0.0
      %v4633 = vmax.f32 %v4518, 0.0
      %v4634 = vmax.f32 %v4522, 0.0
      %v4635 = vmax.f32 %v4524, 0.0
      %v4636 = vmax.f32 %v4526, 0.0
      %v4637 = vmax.f32 %v4528, 0.0
      %v4638 = vmax.f32 %v4532, 0.0
      %v4639 = vmax.f32 %v4534, 0.0
      %v4640 = vmax.f32 %v4536, 0.0
      %v4641 = vmax.f32 %v4538, 0.0
      %v4642 = vmax.f32 %v4542, 0.0
      %v4643 = vmax.f32 %v4544, 0.0
      %v4644 = vmax.f32 %v4546, 0.0
      %v4645 = vmax.f32 %v4548, 0.0
      %v4646 = vmax.f32 %v4552, 0.0
      %v4647 = vmax.f32 %v4554, 0.0
      %v4648 = vmax.f32 %v4556, 0.0
      %v4649 = vmax.f32 %v4558, 0.0
      %v4650 = vmax.f32 %v4562, 0.0
      %v4651 = vmax.f32 %v4564, 0.0
      %v4652 = vmax.f32 %v4566, 0.0
      %v4653 = vmax.f32 %v4568, 0.0
      %v4654 = vmax.f32 %v4572, 0.0
      %v4655 = vmax.f32 %v4574, 0.0
      %v4656 = vld [vmem:[#allocation3] sm:$0x3]
      %v4657 = vld [vmem:[%s371] sm:$0x7]
      %v4659 = vlaneseq
      %v4660 = vshrl.u32 %v4659, 7
      %v4661 = vsub.s32 0, %v4660
      %v4662 = vrot.slane %v4657, %v4661
      %v4663 = vlaneseq
      %v4664 = vshrl.u32 %v4663, 7
      %v4665 = vsub.s32 1, %v4664
      %v4666 = vrot.slane %v4657, %v4665
      %v4667 = vlaneseq
      %v4668 = vshrl.u32 %v4667, 7
      %v4669 = vsub.s32 2, %v4668
      %v4670 = vrot.slane %v4657, %v4669
      %vm4673 = vcmask 457728
      %v4674 = vsel %vm4673, %v4670, 0
      %4676 = vmatprep.subr.mxu0 %v4579
      %4677 = vmatpush1.msra.mxu0 %v4578
      %4678 = vmatprep.subr.mxu0 %v4581
      %4679 = vmatpush1.msra.mxu0 %v4580
      %4680 = vmatprep.subr.mxu0 %v4583
      %4681 = vmatpush1.msra.mxu0 %v4582
      %4682 = vmatprep.subr.mxu0 %v4585
      %4683 = vmatpush1.msra.mxu0 %v4584
      %4684 = vmatprep.subr.mxu0 %v4587
      %4685 = vmatpush1.msra.mxu0 %v4586
      %4686 = vmatprep.subr.mxu0 %v4589
      %4687 = vmatpush1.msra.mxu0 %v4588
      %4688 = vmatprep.subr.mxu0 %v4591
      %4689 = vmatpush1.msra.mxu0 %v4590
      %4690 = vmatprep.subr.mxu0 %v4593
      %4691 = vmatpush1.msra.mxu0 %v4592
      %4692 = vmatprep.subr.mxu0 %v4595
      %4693 = vmatpush1.msra.mxu0 %v4594
      %4694 = vmatprep.subr.mxu0 %v4597
      %4695 = vmatpush1.msra.mxu0 %v4596
      %4696 = vmatprep.subr.mxu0 %v4599
      %4697 = vmatpush1.msra.mxu0 %v4598
      %4698 = vmatprep.subr.mxu0 %v4601
      %4699 = vmatpush1.msra.mxu0 %v4600
      %4700 = vmatprep.subr.mxu0 %v4603
      %4701 = vmatpush1.msra.mxu0 %v4602
      %4702 = vmatprep.subr.mxu0 %v4605
      %4703 = vmatpush1.msra.mxu0 %v4604
      %4704 = vmatprep.subr.mxu0 %v4607
      %4705 = vmatpush1.msra.mxu0 %v4606
      %4706 = vmatprep.subr.mxu0 %v4609
      %4707 = vmatpush1.msra.mxu0 %v4608
      %4708 = vmatprep.subr.mxu0 %v4611
      %4709 = vmatpush1.msra.mxu0 %v4610
      %4710 = vmatprep.subr.mxu0 %v4613
      %4711 = vmatpush1.msra.mxu0 %v4612
      %4712 = vmatprep.subr.mxu0 %v4615
      %4713 = vmatpush1.msra.mxu0 %v4614
      %4714 = vmatprep.subr.mxu0 %v4617
      %4715 = vmatpush1.msra.mxu0 %v4616
      %4716 = vmatprep.subr.mxu0 %v4619
      %4717 = vmatpush1.msra.mxu0 %v4618
      %4718 = vmatprep.subr.mxu0 %v4621
      %4719 = vmatpush1.msra.mxu0 %v4620
      %4720 = vmatprep.subr.mxu0 %v4623
      %4721 = vmatpush1.msra.mxu0 %v4622
      %4722 = vmatprep.subr.mxu0 %v4625
      %4723 = vmatpush1.msra.mxu0 %v4624
      %4724 = vmatprep.subr.mxu0 %v4627
      %4725 = vmatpush1.msra.mxu0 %v4626
      %4726 = vmatprep.subr.mxu0 %v4629
      %4727 = vmatpush1.msra.mxu0 %v4628
      %4728 = vmatprep.subr.mxu0 %v4631
      %4729 = vmatpush1.msra.mxu0 %v4630
      %4730 = vmatprep.subr.mxu0 %v4633
      %4731 = vmatpush1.msra.mxu0 %v4632
      %4732 = vmatprep.subr.mxu0 %v4635
      %4733 = vmatpush1.msra.mxu0 %v4634
      %4734 = vmatprep.subr.mxu0 %v4637
      %4735 = vmatpush1.msra.mxu0 %v4636
      %4736 = vmatprep.subr.mxu0 %v4639
      %4737 = vmatpush1.msra.mxu0 %v4638
      %4738 = vmatprep.subr.mxu0 %v4641
      %4739 = vmatpush1.msra.mxu0 %v4640
      %4740 = vmatprep.mubr.f32.mxu0 %v4666
      %4741 = vmatmul.mubr.f32.gmra.mrb[0].mxu0 %v4662
      %v4742 = vpop.f32.mrb[0].mxu0
      %v4743 = vadd.f32 0.0, %v4742
      %v4744 = vpop.f32.mrb[0].mxu0
      %v4745 = vadd.f32 0.0, %v4744
      %4746 = vdwg.mxu0
      %4747 = vmatprep.subr.mxu0 %v4643
      %4748 = vmatpush1.msra.mxu0 %v4642
      %4749 = vmatprep.subr.mxu0 %v4645
      %4750 = vmatpush1.msra.mxu0 %v4644
      %4751 = vmatprep.subr.mxu0 %v4647
      %4752 = vmatpush1.msra.mxu0 %v4646
      %4753 = vmatprep.subr.mxu0 %v4649
      %4754 = vmatpush1.msra.mxu0 %v4648
      %4755 = vmatprep.subr.mxu0 %v4651
      %4756 = vmatpush1.msra.mxu0 %v4650
      %4757 = vmatprep.subr.mxu0 %v4653
      %4758 = vmatpush1.msra.mxu0 %v4652
      %4759 = vmatprep.subr.mxu0 %v4655
      %4760 = vmatpush1.msra.mxu0 %v4654
      %4761 = vmatprep.subr.mxu0 0.0
      %4762 = vmatpush1.msra.mxu0 0.0
      %4763 = vmatprep.subr.mxu0 0.0
      %4764 = vmatpush1.msra.mxu0 0.0
      %4765 = vmatprep.subr.mxu0 0.0
      %4766 = vmatpush1.msra.mxu0 0.0
      %4767 = vmatprep.subr.mxu0 0.0
      %4768 = vmatpush1.msra.mxu0 0.0
      %4769 = vmatprep.subr.mxu0 0.0
      %4770 = vmatpush1.msra.mxu0 0.0
      %4771 = vmatprep.subr.mxu0 0.0
      %4772 = vmatpush1.msra.mxu0 0.0
      %4773 = vmatprep.subr.mxu0 0.0
      %4774 = vmatpush1.msra.mxu0 0.0
      %4775 = vmatprep.subr.mxu0 0.0
      %4776 = vmatpush1.msra.mxu0 0.0
      %4777 = vmatprep.subr.mxu0 0.0
      %4778 = vmatpush1.msra.mxu0 0.0
      %4779 = vmatprep.subr.mxu0 0.0
      %4780 = vmatpush1.msra.mxu0 0.0
      %4781 = vmatprep.subr.mxu0 0.0
      %4782 = vmatpush1.msra.mxu0 0.0
      %4783 = vmatprep.subr.mxu0 0.0
      %4784 = vmatpush1.msra.mxu0 0.0
      %4785 = vmatprep.subr.mxu0 0.0
      %4786 = vmatpush1.msra.mxu0 0.0
      %4787 = vmatprep.subr.mxu0 0.0
      %4788 = vmatpush1.msra.mxu0 0.0
      %4789 = vmatprep.subr.mxu0 0.0
      %4790 = vmatpush1.msra.mxu0 0.0
      %4791 = vmatprep.subr.mxu0 0.0
      %4792 = vmatpush1.msra.mxu0 0.0
      %4793 = vmatprep.subr.mxu0 0.0
      %4794 = vmatpush1.msra.mxu0 0.0
      %4795 = vmatprep.subr.mxu0 0.0
      %4796 = vmatpush1.msra.mxu0 0.0
      %4797 = vmatprep.subr.mxu0 0.0
      %4798 = vmatpush1.msra.mxu0 0.0
      %4799 = vmatprep.subr.mxu0 0.0
      %4800 = vmatpush1.msra.mxu0 0.0
      %4801 = vmatprep.subr.mxu0 0.0
      %4802 = vmatpush1.msra.mxu0 0.0
      %4803 = vmatprep.subr.mxu0 0.0
      %4804 = vmatpush1.msra.mxu0 0.0
      %4805 = vmatprep.subr.mxu0 0.0
      %4806 = vmatpush1.msra.mxu0 0.0
      %4807 = vmatprep.subr.mxu0 0.0
      %4808 = vmatpush1.msra.mxu0 0.0
      %4809 = vmatprep.subr.mxu0 0.0
      %4810 = vmatpush1.msra.mxu0 0.0
      %4811 = vmatprep.mubr.f32.mxu0 0.0
      %4812 = vmatmul.mubr.f32.gmra.mrb[0].mxu0 %v4674
      %v4813 = vpop.f32.mrb[0].mxu0
      %v4814 = vadd.f32 %v4743, %v4813
      %v4815 = vpop.f32.mrb[0].mxu0
      %v4816 = vadd.f32 %v4745, %v4815
      %4817 = vdwg.mxu0
      %v4820 = vcombine.low %v4814, %v4816
      %v4822 = vunpack.c.l.s4 1966171168
      %v4823 = vunpack.c.0.s8 %v4822
      %v4824 = vlaneseq
      %v4825 = vshrl.u32 %v4824, 7
      %v4826 = vsub.s32 %v4823, %v4825
      %v4827 = vrot.slane %v4820, %v4826
      %v4829 = vunpack.c.l.s4 1966171168
      %v4830 = vunpack.c.0.s8 %v4829
      %v4831 = vlaneseq
      %v4832 = vshrl.u32 %v4831, 7
      %v4833 = vsub.s32 %v4830, %v4832
      %v4834 = vrot.slane %v4827, %v4833
      %v4836 = vadd.f32 %v4656, %v4834
      %v4837 = vlaneseq
      %vm4838 = vcmp.ge.s32.totalorder %v4837, 0
      %vm4839 = vcmp.lt.s32.totalorder %v4837, 256
      %vm4840 = vmand %vm4838, %vm4839
      %4841 = vst.msk [vmem:[#allocation3] sm:$0x3] %vm4840, %v4836
      // Predicated region
      $region53: #{bird_clef_forward.1} parent=47 // pred_check
        %p4842 = pneg %p377
      $region54: #{bird_clef_forward.1} parent=47 // pred_check_branch
        %4844 = sbr.rel (%p4842) target = $region56
      $region55: #{bird_clef_forward.1} parent=47 // pred_region
        %v4845 = vld [vmem:[#allocation3] sm:$0x3]
        %v4847 = vlaneseq
        %v4848 = vshrl.u32 %v4847, 7
        %v4849 = vsub.s32 0, %v4848
        %v4850 = vrot.slane %v4845, %v4849
        %v4851 = vlaneseq
        %v4852 = vshrl.u32 %v4851, 7
        %v4853 = vsub.s32 1, %v4852
        %v4854 = vrot.slane %v4845, %v4853
        %v4857 = vpack.c.bf16 %v4850, %v4850
        %v4858 = vpack.c.bf16 %v4854, %v4854
        %v4859 = vld [vmem:[%s5] sm:$0xff]
        %v4860 = vld [vmem:[%s5 + $0x8] sm:$0xff]
        %v4861 = vld [vmem:[%s5 + $0x10] sm:$0xff]
        %v4862 = vld [vmem:[%s5 + $0x18] sm:$0xff]
        %v4863 = vld [vmem:[%s5 + $0x20] sm:$0xff]
        %v4864 = vld [vmem:[%s5 + $0x28] sm:$0xff]
        %v4865 = vld [vmem:[%s5 + $0x30] sm:$0xff]
        %v4866 = vld [vmem:[%s5 + $0x38] sm:$0xff]
        %v4867 = vld [vmem:[%s5 + $0x40] sm:$0xff]
        %v4868 = vld [vmem:[%s5 + $0x48] sm:$0xff]
        %v4869 = vld [vmem:[%s5 + $0x50] sm:$0xff]
        %v4870 = vld [vmem:[%s5 + $0x58] sm:$0xff]
        %v4871 = vld [vmem:[%s5 + $0x60] sm:$0xff]
        %v4872 = vld [vmem:[%s5 + $0x68] sm:$0xff]
        %v4873 = vld [vmem:[%s5 + $0x70] sm:$0xff]
        %v4874 = vld [vmem:[%s5 + $0x78] sm:$0xff]
        %v4875 = vld [vmem:[%s5 + $0x80] sm:$0xff]
        %v4876 = vld [vmem:[%s5 + $0x88] sm:$0xff]
        %v4877 = vld [vmem:[%s5 + $0x90] sm:$0xff]
        %v4878 = vld [vmem:[%s5 + $0x98] sm:$0xff]
        %v4879 = vld [vmem:[%s5 + $0xa0] sm:$0xff]
        %v4880 = vld [vmem:[%s5 + $0xa8] sm:$0xff]
        %v4881 = vld [vmem:[%s5 + $0xb0] sm:$0xff]
        %v4882 = vld [vmem:[%s5 + $0xb8] sm:$0xff]
        %v4883 = vld [vmem:[%s5 + $0xc0] sm:$0xff]
        %v4884 = vld [vmem:[%s5 + $0xc8] sm:$0xff]
        %v4885 = vld [vmem:[%s5 + $0xd0] sm:$0xff]
        %v4886 = vld [vmem:[%s5 + $0xd8] sm:$0xff]
        %v4887 = vld [vmem:[%s5 + $0xe0] sm:$0xff]
        %v4888 = vld [vmem:[%s5 + $0xe8] sm:$0xff]
        %v4889 = vld [vmem:[%s5 + $0xf0] sm:$0xff]
        %v4890 = vld [vmem:[%s5 + $0xf8] sm:$0xff]
        %v4891 = vld [vmem:[%s6] sm:$0x3]
        %v4924 = vunpack.c.l.b16 %v4859
        %v4925 = vunpack.c.h.b16 %v4859
        %v4926 = vunpack.c.l.b16 %v4860
        %v4927 = vunpack.c.h.b16 %v4860
        %v4928 = vunpack.c.l.b16 %v4861
        %v4929 = vunpack.c.h.b16 %v4861
        %v4930 = vunpack.c.l.b16 %v4862
        %v4931 = vunpack.c.h.b16 %v4862
        %v4932 = vunpack.c.l.b16 %v4863
        %v4933 = vunpack.c.h.b16 %v4863
        %v4934 = vunpack.c.l.b16 %v4864
        %v4935 = vunpack.c.h.b16 %v4864
        %v4936 = vunpack.c.l.b16 %v4865
        %v4937 = vunpack.c.h.b16 %v4865
        %v4938 = vunpack.c.l.b16 %v4866
        %v4939 = vunpack.c.h.b16 %v4866
        %v4940 = vunpack.c.l.b16 %v4867
        %v4941 = vunpack.c.h.b16 %v4867
        %v4942 = vunpack.c.l.b16 %v4868
        %v4943 = vunpack.c.h.b16 %v4868
        %v4944 = vunpack.c.l.b16 %v4869
        %v4945 = vunpack.c.h.b16 %v4869
        %v4946 = vunpack.c.l.b16 %v4870
        %v4947 = vunpack.c.h.b16 %v4870
        %v4948 = vunpack.c.l.b16 %v4871
        %v4949 = vunpack.c.h.b16 %v4871
        %v4950 = vunpack.c.l.b16 %v4872
        %v4951 = vunpack.c.h.b16 %v4872
        %v4952 = vunpack.c.l.b16 %v4873
        %v4953 = vunpack.c.h.b16 %v4873
        %v4954 = vunpack.c.l.b16 %v4874
        %v4955 = vunpack.c.h.b16 %v4874
        %v4956 = vunpack.c.l.b16 %v4875
        %v4957 = vunpack.c.h.b16 %v4875
        %v4958 = vunpack.c.l.b16 %v4876
        %v4959 = vunpack.c.h.b16 %v4876
        %v4960 = vunpack.c.l.b16 %v4877
        %v4961 = vunpack.c.h.b16 %v4877
        %v4962 = vunpack.c.l.b16 %v4878
        %v4963 = vunpack.c.h.b16 %v4878
        %v4964 = vunpack.c.l.b16 %v4879
        %v4965 = vunpack.c.h.b16 %v4879
        %v4966 = vunpack.c.l.b16 %v4880
        %v4967 = vunpack.c.h.b16 %v4880
        %v4968 = vunpack.c.l.b16 %v4881
        %v4969 = vunpack.c.h.b16 %v4881
        %v4970 = vunpack.c.l.b16 %v4882
        %v4971 = vunpack.c.h.b16 %v4882
        %v4972 = vunpack.c.l.b16 %v4883
        %v4973 = vunpack.c.h.b16 %v4883
        %v4974 = vunpack.c.l.b16 %v4884
        %v4975 = vunpack.c.h.b16 %v4884
        %v4976 = vunpack.c.l.b16 %v4885
        %v4977 = vunpack.c.h.b16 %v4885
        %v4978 = vunpack.c.l.b16 %v4886
        %v4979 = vunpack.c.h.b16 %v4886
        %v4980 = vunpack.c.l.b16 %v4887
        %v4981 = vunpack.c.h.b16 %v4887
        %v4982 = vunpack.c.l.b16 %v4888
        %v4983 = vunpack.c.h.b16 %v4888
        %v4984 = vunpack.c.l.b16 %v4889
        %v4985 = vunpack.c.h.b16 %v4889
        %v4986 = vunpack.c.l.b16 %v4890
        %v4987 = vunpack.c.h.b16 %v4890
        %v4988 = vpack.c.b16 %v4926, %v4924
        %v4989 = vpack.c.b16 %v4927, %v4925
        %v4990 = vpack.c.b16 %v4930, %v4928
        %v4991 = vpack.c.b16 %v4931, %v4929
        %v4992 = vpack.c.b16 %v4934, %v4932
        %v4993 = vpack.c.b16 %v4935, %v4933
        %v4994 = vpack.c.b16 %v4938, %v4936
        %v4995 = vpack.c.b16 %v4939, %v4937
        %v4996 = vpack.c.b16 %v4942, %v4940
        %v4997 = vpack.c.b16 %v4943, %v4941
        %v4998 = vpack.c.b16 %v4946, %v4944
        %v4999 = vpack.c.b16 %v4947, %v4945
        %v5000 = vpack.c.b16 %v4950, %v4948
        %v5001 = vpack.c.b16 %v4951, %v4949
        %v5002 = vpack.c.b16 %v4954, %v4952
        %v5003 = vpack.c.b16 %v4955, %v4953
        %v5004 = vpack.c.b16 %v4958, %v4956
        %v5005 = vpack.c.b16 %v4959, %v4957
        %v5006 = vpack.c.b16 %v4962, %v4960
        %v5007 = vpack.c.b16 %v4963, %v4961
        %v5008 = vpack.c.b16 %v4966, %v4964
        %v5009 = vpack.c.b16 %v4967, %v4965
        %v5010 = vpack.c.b16 %v4970, %v4968
        %v5011 = vpack.c.b16 %v4971, %v4969
        %v5012 = vpack.c.b16 %v4974, %v4972
        %v5013 = vpack.c.b16 %v4975, %v4973
        %v5014 = vpack.c.b16 %v4978, %v4976
        %v5015 = vpack.c.b16 %v4979, %v4977
        %v5016 = vpack.c.b16 %v4982, %v4980
        %v5017 = vpack.c.b16 %v4983, %v4981
        %v5018 = vpack.c.b16 %v4986, %v4984
        %v5019 = vpack.c.b16 %v4987, %v4985
        %v5053 = vlaneseq
        %v5054 = vshrl.u32 %v5053, 7
        %v5055 = vsub.s32 0, %v5054
        %v5056 = vrot.slane %v4891, %v5055
        %v5057 = vlaneseq
        %v5058 = vshrl.u32 %v5057, 7
        %v5059 = vsub.s32 1, %v5058
        %v5060 = vrot.slane %v4891, %v5059
        %5063 = vmatprep.subr.bf16.mxu0 %v4989
        %5064 = vmatpush1.bf16.msra.mxu0 %v4988
        %5065 = vmatprep.subr.bf16.mxu0 %v4991
        %5066 = vmatpush1.bf16.msra.mxu0 %v4990
        %5067 = vmatprep.subr.bf16.mxu0 %v4993
        %5068 = vmatpush1.bf16.msra.mxu0 %v4992
        %5069 = vmatprep.subr.bf16.mxu0 %v4995
        %5070 = vmatpush1.bf16.msra.mxu0 %v4994
        %5071 = vmatprep.subr.bf16.mxu0 %v4997
        %5072 = vmatpush1.bf16.msra.mxu0 %v4996
        %5073 = vmatprep.subr.bf16.mxu0 %v4999
        %5074 = vmatpush1.bf16.msra.mxu0 %v4998
        %5075 = vmatprep.subr.bf16.mxu0 %v5001
        %5076 = vmatpush1.bf16.msra.mxu0 %v5000
        %5077 = vmatprep.subr.bf16.mxu0 %v5003
        %5078 = vmatpush1.bf16.msra.mxu0 %v5002
        %5079 = vmatprep.subr.bf16.mxu0 %v5005
        %5080 = vmatpush1.bf16.msra.mxu0 %v5004
        %5081 = vmatprep.subr.bf16.mxu0 %v5007
        %5082 = vmatpush1.bf16.msra.mxu0 %v5006
        %5083 = vmatprep.subr.bf16.mxu0 %v5009
        %5084 = vmatpush1.bf16.msra.mxu0 %v5008
        %5085 = vmatprep.subr.bf16.mxu0 %v5011
        %5086 = vmatpush1.bf16.msra.mxu0 %v5010
        %5087 = vmatprep.subr.bf16.mxu0 %v5013
        %5088 = vmatpush1.bf16.msra.mxu0 %v5012
        %5089 = vmatprep.subr.bf16.mxu0 %v5015
        %5090 = vmatpush1.bf16.msra.mxu0 %v5014
        %5091 = vmatprep.subr.bf16.mxu0 %v5017
        %5092 = vmatpush1.bf16.msra.mxu0 %v5016
        %5093 = vmatprep.subr.bf16.mxu0 %v5019
        %5094 = vmatpush1.bf16.msra.mxu0 %v5018
        %5095 = vmatprep.mubr.bf16.mxu0 %v4858
        %5096 = vmatmul.mubr.bf16.gmra.mrb[0].mxu0 %v4857
        %v5097 = vpop.f32.mrb[0].mxu0
        %v5098 = vadd.f32 %v5056, %v5097
        %v5099 = vpop.f32.mrb[0].mxu0
        %v5100 = vadd.f32 %v5060, %v5099
        %v5101 = vpop.f32.mrb[0].mxu0
        %v5102 = vpop.f32.mrb[0].mxu0
        %5103 = vdwg.mxu0
        %v5106 = vcombine.low %v5098, %v5100
        %v5108 = vunpack.c.l.s4 1966171168
        %v5109 = vunpack.c.0.s8 %v5108
        %v5110 = vlaneseq
        %v5111 = vshrl.u32 %v5110, 7
        %v5112 = vsub.s32 %v5109, %v5111
        %v5113 = vrot.slane %v5106, %v5112
        %v5115 = vunpack.c.l.s4 1966171168
        %v5116 = vunpack.c.0.s8 %v5115
        %v5117 = vlaneseq
        %v5118 = vshrl.u32 %v5117, 7
        %v5119 = vsub.s32 %v5116, %v5118
        %v5120 = vrot.slane %v5113, %v5119
        %5122 = vst.msk [vmem:[%s375] sm:$0x3] %vm4840, %v5120
      $region56: #{bird_clef_forward.1} parent=47 // pred_fallthru
        _
      %p5123 = scmp.lt.s32.totalorder %s22, 1
      %s5124 = scalar_select %p5123, %s22, 1
      %s5125 = smul.addr %s5124, 2
      %s5126 = scalar_lea.vmem %s7, %s5125
      // Predicated region
      $region57: #{bird_clef_forward.1} parent=47 // pred_check
        %p5127 = pneg %p214
      $region58: #{bird_clef_forward.1} parent=47 // pred_check_branch
        %5129 = sbr.rel (%p5127) target = $region60
      $region59: #{bird_clef_forward.1} parent=47 // pred_region
        _
      $region60: #{bird_clef_forward.1} parent=47 // pred_fallthru
        _
    $region48: #{bird_clef_forward.1} parent=5 // pred_fallthru
      _
    %p5130 = scmp.le.s32.totalorder 2, %s13
    // Predicated region
    $region61: #{bird_clef_forward.1} parent=5 // pred_check
      %p5131 = pneg %p5130
    $region62: #{bird_clef_forward.1} parent=5 // pred_check_branch
      %5133 = sbr.rel (%p5131) target = $region64
    $region63: #{bird_clef_forward.1} parent=5 // pred_region
      %s5134 = ssub.s32 %s13, 2
      // Predicated region
      $region65: #{bird_clef_forward.1} parent=63 // pred_check
        %p5135 = pneg %p220
      $region66: #{bird_clef_forward.1} parent=63 // pred_check_branch
        %5137 = sbr.rel (%p5135) target = $region68
      $region67: #{bird_clef_forward.1} parent=63 // pred_region
        %p5138 = scmp.lt.s32.totalorder %s24, 1
        %s5139 = scalar_select %p5138, %s24, 1
        %s5140 = smul.addr %s5139, 2
        %s5141 = scalar_lea.vmem %s7, %s5140
      $region68: #{bird_clef_forward.1} parent=63 // pred_fallthru
        _
    $region64: #{bird_clef_forward.1} parent=5 // pred_fallthru
      _
  $region6: #{bird_clef_forward.1} parent=0 // loop_footer
    %s17 = sadd.s32 1, %s13
  $region7: #{bird_clef_forward.1} parent=0 // loop_footer_branch
    %12 = sbr.rel target = $region3
  $region8: #{bird_clef_forward.1} parent=0 // loop_exit
    _

</llo_original>
